<compile_context>
chip_gen: v7x
topology: tpu7x:2x2x1
jax: 0.10.0
libtpu: 0.0.40
codegen_flags: <defaults>
</compile_context>

<pallas_src>
import functools
import math

import jax
import jax.numpy as jnp
from jax import lax
from jax.experimental import pallas as pl
from jax.experimental.pallas import tpu as pltpu

BF16 = jnp.bfloat16
F32 = jnp.float32
LANE = 128


def _layer_norm(x, g, b, eps=1e-5):
    mu = jnp.mean(x, axis=-1, keepdims=True)
    var = jnp.mean(jnp.square(x - mu), axis=-1, keepdims=True)
    return (x - mu) * lax.rsqrt(var + eps) * g + b


# ----------------------------- fully fused forward kernel -----------------------------

def _xtransformer_kernel(
    x_smem,                                  # (bs, input_dim) f32, SMEM
    pw_ref, pb_ref,                          # (input_dim, N, dim) f32 / (N, dim) f32
    inw_ref, embb_ref,                       # (dim, dim) bf16 / (N, dim) f32
    ln1g_ref, ln1b_ref,                      # (depth, 1, dim) f32
    wqkv_ref, wo_ref, bo_ref,                # (depth, dim, 3*H*HP) bf16 / (depth, H*HP, dim) bf16 / (depth,1,dim) f32
    ln2g_ref, ln2b_ref,                      # (depth, 1, dim) f32
    w1_ref, b1_ref, w2_ref, b2_ref,          # (depth, dim, ff) bf16 / (depth,1,ff) f32 / (depth, ff, dim) bf16 / (depth,1,dim) f32
    lnfg_ref, lnfb_ref,                      # (1, dim) f32
    outw_ref, outb_ref,                      # (dim, c_pad) bf16 / (1, c_pad) f32
    o_ref,                                   # (1, N, c_pad) f32
    *, depth, heads, head_pad, scale):
    b = pl.program_id(0)
    idim, n, dim = pw_ref.shape

    # ---- initial_proj: Linear(input_dim -> N*dim), viewed as (N, dim) ----
    # input_dim is tiny; unrolled scalar(SMEM)-FMA avoids any lane->sublane reshape.
    h0 = pb_ref[...]
    for i in range(idim):
        h0 = h0 + x_smem[b, i] * pw_ref[i]

    # ---- project_in + scaled absolute positional embedding (bias folded at init) ----
    h = jnp.dot(h0.astype(BF16), inw_ref[...],
                preferred_element_type=F32) + embb_ref[...]        # residual stream, f32

    # causal mask, shared across layers / heads
    rows = lax.broadcasted_iota(jnp.int32, (n, n), 0)
    cols = lax.broadcasted_iota(jnp.int32, (n, n), 1)
    causal = cols <= rows

    qk_dims = (((1,), (1,)), ((), ()))                              # q @ k^T

    for ld in range(depth):                                         # static, unrolled
        # ----- attention block: preLN -> QKV -> causal MHA -> out-proj -> +residual -----
        y = _layer_norm(h, ln1g_ref[ld], ln1b_ref[ld]).astype(BF16)
        qkv = jnp.dot(y, wqkv_ref[ld], preferred_element_type=F32)  # (N, 3*H*HP)
        wo_l = wo_ref[ld]                                           # (H*HP, dim) bf16
        acc = jnp.zeros((n, dim), F32)
        for hh in range(heads):                                     # 128-aligned slices
            q = qkv[:, hh * head_pad:(hh + 1) * head_pad].astype(BF16)
            k = qkv[:, (heads + hh) * head_pad:(heads + hh + 1) * head_pad].astype(BF16)
            v = qkv[:, (2 * heads + hh) * head_pad:(2 * heads + hh + 1) * head_pad].astype(BF16)
            s = lax.dot_general(q, k, qk_dims, preferred_element_type=F32) * scale
            s = jnp.where(causal, s, -1e30)
            s = s - jnp.max(s, axis=-1, keepdims=True)
            p = jnp.exp(s)
            p = p * pl.reciprocal(jnp.sum(p, axis=-1, keepdims=True), approx=True)
            o_h = jnp.dot(p.astype(BF16), v, preferred_element_type=F32)   # (N, HP)
            # per-head out-projection accumulation (no lane-dim concat / relayout)
            acc = acc + jnp.dot(o_h.astype(BF16),
                                wo_l[hh * head_pad:(hh + 1) * head_pad, :],
                                preferred_element_type=F32)
        h = h + acc + bo_ref[ld]

        # ----- feed-forward block: preLN -> W1 -> GELU -> W2 -> +residual -----
        y = _layer_norm(h, ln2g_ref[ld], ln2b_ref[ld]).astype(BF16)
        f = jnp.dot(y, w1_ref[ld], preferred_element_type=F32) + b1_ref[ld]
        # TODO(synk): PyTorch nn.GELU default is exact erf; tanh approximation used (EUP-friendly).
        f = jax.nn.gelu(f, approximate=True)
        h = h + jnp.dot(f.astype(BF16), w2_ref[ld],
                        preferred_element_type=F32) + b2_ref[ld]

    # ----- final LayerNorm + project_out (128-lane padded output: lane-dense stores) -----
    y = _layer_norm(h, lnfg_ref[...], lnfb_ref[...]).astype(BF16)
    out = jnp.dot(y, outw_ref[...], preferred_element_type=F32) + outb_ref[...]
    o_ref[0] = out.astype(o_ref.dtype)


# ----------------------------- parameters -----------------------------

def init_params(key, *, input_dim, image_size, channels, dim, depth, heads, dim_head):
    N = image_size * image_size
    inner = heads * dim_head
    head_pad = ((dim_head + LANE - 1) // LANE) * LANE
    ff_hidden = 4 * dim
    c_pad = ((channels + LANE - 1) // LANE) * LANE

    def dense(k, fan_in, fan_out):
        return jax.random.normal(k, (fan_in, fan_out), F32) / math.sqrt(fan_in)

    keys = iter(jax.random.split(key, 4 + 6 * depth))

    proj_w = dense(next(keys), input_dim, N * dim)
    proj_b = jnp.zeros((N * dim,), F32)
    in_w = dense(next(keys), dim, dim)
    in_b = jnp.zeros((dim,), F32)
    pos_emb = jax.random.normal(next(keys), (N, dim), F32)          # abs pos emb (scaled dim**-0.5 at use)
    out_w = dense(next(keys), dim, channels)

    def pad_head_cols(w):    # (dim, inner) -> (dim, heads*head_pad), per-head zero-padded columns
        w3 = w.reshape(dim, heads, dim_head)
        wp = jnp.zeros((dim, heads, head_pad), F32).at[:, :, :dim_head].set(w3)
        return wp.reshape(dim, heads * head_pad)

    def pad_head_rows(w):    # (inner, dim) -> (heads*head_pad, dim), per-head zero-padded rows
        w3 = w.reshape(heads, dim_head, dim)
        wp = jnp.zeros((heads, head_pad, dim), F32).at[:, :dim_head, :].set(w3)
        return wp.reshape(heads * head_pad, dim)

    L = {k: [] for k in ("ln1_g", "ln1_b", "wqkv", "wo", "bo",
                         "ln2_g", "ln2_b", "w1", "b1", "w2", "b2")}
    for _ in range(depth):
        wq = dense(next(keys), dim, inner)
        wk = dense(next(keys), dim, inner)
        wv = dense(next(keys), dim, inner)
        wo = dense(next(keys), inner, dim)
        w1 = dense(next(keys), dim, ff_hidden)
        w2 = dense(next(keys), ff_hidden, dim)
        L["ln1_g"].append(jnp.ones((1, dim), F32))
        L["ln1_b"].append(jnp.zeros((1, dim), F32))
        L["wqkv"].append(jnp.concatenate(
            [pad_head_cols(wq), pad_head_cols(wk), pad_head_cols(wv)], axis=1))
        L["wo"].append(pad_head_rows(wo))
        L["bo"].append(jnp.zeros((1, dim), F32))
        L["ln2_g"].append(jnp.ones((1, dim), F32))
        L["ln2_b"].append(jnp.zeros((1, dim), F32))
        L["w1"].append(w1)
        L["b1"].append(jnp.zeros((1, ff_hidden), F32))
        L["w2"].append(w2)
        L["b2"].append(jnp.zeros((1, dim), F32))

    return {
        # initial_proj weight viewed as (input_dim, N, dim): pure layout reshape, no math
        "pw": proj_w.reshape(input_dim, N, dim),
        "pb": proj_b.reshape(N, dim),
        "in_w": in_w.astype(BF16),
        # project_in bias + scaled absolute positional embedding, folded once at init
        "emb_bias": in_b[None, :] + pos_emb * (dim ** -0.5),
        "ln1_g": jnp.stack(L["ln1_g"]), "ln1_b": jnp.stack(L["ln1_b"]),
        "wqkv": jnp.stack(L["wqkv"]).astype(BF16),
        "wo": jnp.stack(L["wo"]).astype(BF16),
        "bo": jnp.stack(L["bo"]),
        "ln2_g": jnp.stack(L["ln2_g"]), "ln2_b": jnp.stack(L["ln2_b"]),
        "w1": jnp.stack(L["w1"]).astype(BF16),
        "b1": jnp.stack(L["b1"]),
        "w2": jnp.stack(L["w2"]).astype(BF16),
        "b2": jnp.stack(L["b2"]),
        "final_ln_g": jnp.ones((1, dim), F32),
        "final_ln_b": jnp.zeros((1, dim), F32),
        "out_w": jnp.zeros((dim, c_pad), F32).at[:, :channels].set(out_w).astype(BF16),
        "out_b": jnp.zeros((1, c_pad), F32),
    }


# ----------------------------- forward -----------------------------

def xtransformer_forward(params, x, *, image_size, channels, heads, dim_head):
    bs, input_dim = x.shape
    N = image_size * image_size
    dim = params["pw"].shape[2]
    depth = params["wqkv"].shape[0]
    ffh = params["w1"].shape[2]
    cp = params["out_w"].shape[1]
    head_pad = params["wqkv"].shape[2] // (3 * heads)

    kernel = functools.partial(
        _xtransformer_kernel, depth=depth, heads=heads,
        head_pad=head_pad, scale=dim_head ** -0.5)

    full3 = lambda b: (0, 0, 0)
    full2 = lambda b: (0, 0)

    out = pl.pallas_call(
        kernel,
        out_shape=jax.ShapeDtypeStruct((bs, N, cp), F32),
        grid=(bs,),
        in_specs=[
            pl.BlockSpec(memory_space=pltpu.MemorySpace.SMEM),           # x (per-batch scalars)
            pl.BlockSpec((input_dim, N, dim), full3),                    # pw
            pl.BlockSpec((N, dim), full2),                               # pb
            pl.BlockSpec((dim, dim), full2),                             # in_w
            pl.BlockSpec((N, dim), full2),                               # emb_bias (+pos)
            pl.BlockSpec((depth, 1, dim), full3),                        # ln1_g
            pl.BlockSpec((depth, 1, dim), full3),                        # ln1_b
            pl.BlockSpec((depth, dim, 3 * heads * head_pad), full3),     # wqkv (head-padded)
            pl.BlockSpec((depth, heads * head_pad, dim), full3),         # wo   (head-padded)
            pl.BlockSpec((depth, 1, dim), full3),                        # bo
            pl.BlockSpec((depth, 1, dim), full3),                        # ln2_g
            pl.BlockSpec((depth, 1, dim), full3),                        # ln2_b
            pl.BlockSpec((depth, dim, ffh), full3),                      # w1
            pl.BlockSpec((depth, 1, ffh), full3),                        # b1
            pl.BlockSpec((depth, ffh, dim), full3),                      # w2
            pl.BlockSpec((depth, 1, dim), full3),                        # b2
            pl.BlockSpec((1, dim), full2),                               # final_ln_g
            pl.BlockSpec((1, dim), full2),                               # final_ln_b
            pl.BlockSpec((dim, cp), full2),                              # out_w (lane-padded)
            pl.BlockSpec((1, cp), full2),                                # out_b (lane-padded)
        ],
        out_specs=pl.BlockSpec((1, N, cp), lambda b: (b, 0, 0)),
        compiler_params=pltpu.CompilerParams(
            dimension_semantics=("parallel",)),
    )(x, params["pw"], params["pb"], params["in_w"], params["emb_bias"],
      params["ln1_g"], params["ln1_b"], params["wqkv"], params["wo"], params["bo"],
      params["ln2_g"], params["ln2_b"], params["w1"], params["b1"],
      params["w2"], params["b2"], params["final_ln_g"], params["final_ln_b"],
      params["out_w"], params["out_b"])

    out = out[:, :, :channels]                                           # drop lane padding
    out = out.reshape(bs, image_size, image_size, channels)
    return out.transpose(0, 3, 1, 2)                                     # NHWC -> NCHW


# ----------------------------- main -----------------------------

if __name__ == "__main__":
    input_dim = 8
    image_size = 4
    channels = 3
    dim = 32
    depth = 2
    heads = 4
    dim_head = 64      # x-transformers Attention default dim_head
    batch = 2

    params = init_params(
        jax.random.PRNGKey(42),
        input_dim=input_dim, image_size=image_size, channels=channels,
        dim=dim, depth=depth, heads=heads, dim_head=dim_head)

    x = jax.random.normal(jax.random.PRNGKey(0), (batch, input_dim), F32)

    fwd = jax.jit(functools.partial(
        xtransformer_forward,
        image_size=image_size, channels=channels, heads=heads, dim_head=dim_head))

    out = jax.block_until_ready(fwd(params, x))
    assert out.shape == (batch, channels, image_size, image_size), out.shape
    assert bool(jnp.all(jnp.isfinite(out)))
    print("KERNEL_OK")
</pallas_src>

<mosaic_0001>
module attributes {stable_mosaic.version = 11 : i64} {
  func.func @_xtransformer_kernel(%arg0: i32, %arg1: memref<2x8xf32, #tpu.memory_space<smem>>, %arg2: memref<8x16x32xf32, #tpu.memory_space<vmem>>, %arg3: memref<16x32xf32, #tpu.memory_space<vmem>>, %arg4: memref<32x32xbf16, #tpu.memory_space<vmem>>, %arg5: memref<16x32xf32, #tpu.memory_space<vmem>>, %arg6: memref<2x1x32xf32, #tpu.memory_space<vmem>>, %arg7: memref<2x1x32xf32, #tpu.memory_space<vmem>>, %arg8: memref<2x32x1536xbf16, #tpu.memory_space<vmem>>, %arg9: memref<2x512x32xbf16, #tpu.memory_space<vmem>>, %arg10: memref<2x1x32xf32, #tpu.memory_space<vmem>>, %arg11: memref<2x1x32xf32, #tpu.memory_space<vmem>>, %arg12: memref<2x1x32xf32, #tpu.memory_space<vmem>>, %arg13: memref<2x32x128xbf16, #tpu.memory_space<vmem>>, %arg14: memref<2x1x128xf32, #tpu.memory_space<vmem>>, %arg15: memref<2x128x32xbf16, #tpu.memory_space<vmem>>, %arg16: memref<2x1x32xf32, #tpu.memory_space<vmem>>, %arg17: memref<1x32xf32, #tpu.memory_space<vmem>>, %arg18: memref<1x32xf32, #tpu.memory_space<vmem>>, %arg19: memref<32x128xbf16, #tpu.memory_space<vmem>>, %arg20: memref<1x128xf32, #tpu.memory_space<vmem>>, %arg21: memref<1x16x128xf32, #tpu.memory_space<vmem>>) attributes {dimension_semantics = [#tpu.dimension_semantics<parallel>], iteration_bounds = array<i64: 2>, scalar_prefetch = 0 : i64, scratch_operands = 0 : i64, tpu.core_type = #tpu.core_type<tc>, window_params = [{transform_indices = @transform_0, window_bounds = array<i64: 2, 8>}, {pipeline_mode = #tpu.pipeline_mode<synchronous>, transform_indices = @transform_1, window_bounds = array<i64: 8, 16, 32>}, {pipeline_mode = #tpu.pipeline_mode<synchronous>, transform_indices = @transform_2, window_bounds = array<i64: 16, 32>}, {pipeline_mode = #tpu.pipeline_mode<synchronous>, transform_indices = @transform_3, window_bounds = array<i64: 32, 32>}, {pipeline_mode = #tpu.pipeline_mode<synchronous>, transform_indices = @transform_4, window_bounds = array<i64: 16, 32>}, {pipeline_mode = #tpu.pipeline_mode<synchronous>, transform_indices = @transform_5, window_bounds = array<i64: 2, 1, 32>}, {pipeline_mode = #tpu.pipeline_mode<synchronous>, transform_indices = @transform_6, window_bounds = array<i64: 2, 1, 32>}, {pipeline_mode = #tpu.pipeline_mode<synchronous>, transform_indices = @transform_7, window_bounds = array<i64: 2, 32, 1536>}, {pipeline_mode = #tpu.pipeline_mode<synchronous>, transform_indices = @transform_8, window_bounds = array<i64: 2, 512, 32>}, {pipeline_mode = #tpu.pipeline_mode<synchronous>, transform_indices = @transform_9, window_bounds = array<i64: 2, 1, 32>}, {pipeline_mode = #tpu.pipeline_mode<synchronous>, transform_indices = @transform_10, window_bounds = array<i64: 2, 1, 32>}, {pipeline_mode = #tpu.pipeline_mode<synchronous>, transform_indices = @transform_11, window_bounds = array<i64: 2, 1, 32>}, {pipeline_mode = #tpu.pipeline_mode<synchronous>, transform_indices = @transform_12, window_bounds = array<i64: 2, 32, 128>}, {pipeline_mode = #tpu.pipeline_mode<synchronous>, transform_indices = @transform_13, window_bounds = array<i64: 2, 1, 128>}, {pipeline_mode = #tpu.pipeline_mode<synchronous>, transform_indices = @transform_14, window_bounds = array<i64: 2, 128, 32>}, {pipeline_mode = #tpu.pipeline_mode<synchronous>, transform_indices = @transform_15, window_bounds = array<i64: 2, 1, 32>}, {pipeline_mode = #tpu.pipeline_mode<synchronous>, transform_indices = @transform_16, window_bounds = array<i64: 1, 32>}, {pipeline_mode = #tpu.pipeline_mode<synchronous>, transform_indices = @transform_17, window_bounds = array<i64: 1, 32>}, {pipeline_mode = #tpu.pipeline_mode<synchronous>, transform_indices = @transform_18, window_bounds = array<i64: 32, 128>}, {pipeline_mode = #tpu.pipeline_mode<synchronous>, transform_indices = @transform_19, window_bounds = array<i64: 1, 128>}, {transform_indices = @transform_20, window_bounds = array<i64: 1, 16, 128>}]} {
    %c0 = arith.constant 0 : index
    %c0_0 = arith.constant 0 : index
    %0 = vector.load %arg3[%c0, %c0_0] : memref<16x32xf32, #tpu.memory_space<vmem>>, vector<16x32xf32>
    %1 = arith.index_cast %arg0 : i32 to index
    %c0_1 = arith.constant 0 : index
    %2 = memref.load %arg1[%1, %c0_1] : memref<2x8xf32, #tpu.memory_space<smem>>
    %c0_2 = arith.constant 0 : index
    %c0_3 = arith.constant 0 : index
    %c0_4 = arith.constant 0 : index
    %3 = vector.load %arg2[%c0_2, %c0_3, %c0_4] : memref<8x16x32xf32, #tpu.memory_space<vmem>>, vector<1x16x32xf32>
    %4 = vector.shape_cast %3 : vector<1x16x32xf32> to vector<16x32xf32>
    %5 = vector.broadcast %2 : f32 to vector<16x32xf32>
    %6 = arith.mulf %5, %4 : vector<16x32xf32>
    %7 = arith.addf %0, %6 : vector<16x32xf32>
    %8 = arith.index_cast %arg0 : i32 to index
    %c1 = arith.constant 1 : index
    %9 = memref.load %arg1[%8, %c1] : memref<2x8xf32, #tpu.memory_space<smem>>
    %c1_5 = arith.constant 1 : index
    %c0_6 = arith.constant 0 : index
    %c0_7 = arith.constant 0 : index
    %10 = vector.load %arg2[%c1_5, %c0_6, %c0_7] : memref<8x16x32xf32, #tpu.memory_space<vmem>>, vector<1x16x32xf32>
    %11 = vector.shape_cast %10 : vector<1x16x32xf32> to vector<16x32xf32>
    %12 = vector.broadcast %9 : f32 to vector<16x32xf32>
    %13 = arith.mulf %12, %11 : vector<16x32xf32>
    %14 = arith.addf %7, %13 : vector<16x32xf32>
    %15 = arith.index_cast %arg0 : i32 to index
    %c2 = arith.constant 2 : index
    %16 = memref.load %arg1[%15, %c2] : memref<2x8xf32, #tpu.memory_space<smem>>
    %c2_8 = arith.constant 2 : index
    %c0_9 = arith.constant 0 : index
    %c0_10 = arith.constant 0 : index
    %17 = vector.load %arg2[%c2_8, %c0_9, %c0_10] : memref<8x16x32xf32, #tpu.memory_space<vmem>>, vector<1x16x32xf32>
    %18 = vector.shape_cast %17 : vector<1x16x32xf32> to vector<16x32xf32>
    %19 = vector.broadcast %16 : f32 to vector<16x32xf32>
    %20 = arith.mulf %19, %18 : vector<16x32xf32>
    %21 = arith.addf %14, %20 : vector<16x32xf32>
    %22 = arith.index_cast %arg0 : i32 to index
    %c3 = arith.constant 3 : index
    %23 = memref.load %arg1[%22, %c3] : memref<2x8xf32, #tpu.memory_space<smem>>
    %c3_11 = arith.constant 3 : index
    %c0_12 = arith.constant 0 : index
    %c0_13 = arith.constant 0 : index
    %24 = vector.load %arg2[%c3_11, %c0_12, %c0_13] : memref<8x16x32xf32, #tpu.memory_space<vmem>>, vector<1x16x32xf32>
    %25 = vector.shape_cast %24 : vector<1x16x32xf32> to vector<16x32xf32>
    %26 = vector.broadcast %23 : f32 to vector<16x32xf32>
    %27 = arith.mulf %26, %25 : vector<16x32xf32>
    %28 = arith.addf %21, %27 : vector<16x32xf32>
    %29 = arith.index_cast %arg0 : i32 to index
    %c4 = arith.constant 4 : index
    %30 = memref.load %arg1[%29, %c4] : memref<2x8xf32, #tpu.memory_space<smem>>
    %c4_14 = arith.constant 4 : index
    %c0_15 = arith.constant 0 : index
    %c0_16 = arith.constant 0 : index
    %31 = vector.load %arg2[%c4_14, %c0_15, %c0_16] : memref<8x16x32xf32, #tpu.memory_space<vmem>>, vector<1x16x32xf32>
    %32 = vector.shape_cast %31 : vector<1x16x32xf32> to vector<16x32xf32>
    %33 = vector.broadcast %30 : f32 to vector<16x32xf32>
    %34 = arith.mulf %33, %32 : vector<16x32xf32>
    %35 = arith.addf %28, %34 : vector<16x32xf32>
    %36 = arith.index_cast %arg0 : i32 to index
    %c5 = arith.constant 5 : index
    %37 = memref.load %arg1[%36, %c5] : memref<2x8xf32, #tpu.memory_space<smem>>
    %c5_17 = arith.constant 5 : index
    %c0_18 = arith.constant 0 : index
    %c0_19 = arith.constant 0 : index
    %38 = vector.load %arg2[%c5_17, %c0_18, %c0_19] : memref<8x16x32xf32, #tpu.memory_space<vmem>>, vector<1x16x32xf32>
    %39 = vector.shape_cast %38 : vector<1x16x32xf32> to vector<16x32xf32>
    %40 = vector.broadcast %37 : f32 to vector<16x32xf32>
    %41 = arith.mulf %40, %39 : vector<16x32xf32>
    %42 = arith.addf %35, %41 : vector<16x32xf32>
    %43 = arith.index_cast %arg0 : i32 to index
    %c6 = arith.constant 6 : index
    %44 = memref.load %arg1[%43, %c6] : memref<2x8xf32, #tpu.memory_space<smem>>
    %c6_20 = arith.constant 6 : index
    %c0_21 = arith.constant 0 : index
    %c0_22 = arith.constant 0 : index
    %45 = vector.load %arg2[%c6_20, %c0_21, %c0_22] : memref<8x16x32xf32, #tpu.memory_space<vmem>>, vector<1x16x32xf32>
    %46 = vector.shape_cast %45 : vector<1x16x32xf32> to vector<16x32xf32>
    %47 = vector.broadcast %44 : f32 to vector<16x32xf32>
    %48 = arith.mulf %47, %46 : vector<16x32xf32>
    %49 = arith.addf %42, %48 : vector<16x32xf32>
    %50 = arith.index_cast %arg0 : i32 to index
    %c7 = arith.constant 7 : index
    %51 = memref.load %arg1[%50, %c7] : memref<2x8xf32, #tpu.memory_space<smem>>
    %c7_23 = arith.constant 7 : index
    %c0_24 = arith.constant 0 : index
    %c0_25 = arith.constant 0 : index
    %52 = vector.load %arg2[%c7_23, %c0_24, %c0_25] : memref<8x16x32xf32, #tpu.memory_space<vmem>>, vector<1x16x32xf32>
    %53 = vector.shape_cast %52 : vector<1x16x32xf32> to vector<16x32xf32>
    %54 = vector.broadcast %51 : f32 to vector<16x32xf32>
    %55 = arith.mulf %54, %53 : vector<16x32xf32>
    %56 = arith.addf %49, %55 : vector<16x32xf32>
    %57 = arith.truncf %56 : vector<16x32xf32> to vector<16x32xbf16>
    %c0_26 = arith.constant 0 : index
    %c0_27 = arith.constant 0 : index
    %58 = vector.load %arg4[%c0_26, %c0_27] : memref<32x32xbf16, #tpu.memory_space<vmem>>, vector<32x32xbf16>
    %cst = arith.constant dense<0.000000e+00> : vector<16x32xf32>
    %59 = tpu.matmul %57, %58, %cst {dimension_numbers = #tpu.dot_dimension_numbers<[1], [0], [0], [1], [0, 0, 1, 1], [], []>} : vector<16x32xbf16>, vector<32x32xbf16>, vector<16x32xf32> -> vector<16x32xf32>
    %c0_28 = arith.constant 0 : index
    %c0_29 = arith.constant 0 : index
    %60 = vector.load %arg5[%c0_28, %c0_29] : memref<16x32xf32, #tpu.memory_space<vmem>>, vector<16x32xf32>
    %61 = arith.addf %59, %60 : vector<16x32xf32>
    %62 = tpu.iota {dimensions = array<i32: 0>} : vector<16x16xi32>
    %63 = tpu.iota {dimensions = array<i32: 1>} : vector<16x16xi32>
    %64 = arith.cmpi sle, %63, %62 : vector<16x16xi32>
    %c0_30 = arith.constant 0 : index
    %c0_31 = arith.constant 0 : index
    %c0_32 = arith.constant 0 : index
    %65 = vector.load %arg6[%c0_30, %c0_31, %c0_32] : memref<2x1x32xf32, #tpu.memory_space<vmem>>, vector<1x1x32xf32>
    %66 = vector.shape_cast %65 : vector<1x1x32xf32> to vector<1x32xf32>
    %c0_33 = arith.constant 0 : index
    %c0_34 = arith.constant 0 : index
    %c0_35 = arith.constant 0 : index
    %67 = vector.load %arg7[%c0_33, %c0_34, %c0_35] : memref<2x1x32xf32, #tpu.memory_space<vmem>>, vector<1x1x32xf32>
    %68 = vector.shape_cast %67 : vector<1x1x32xf32> to vector<1x32xf32>
    %cst_36 = arith.constant dense<0.000000e+00> : vector<16xf32>
    %69 = vector.multi_reduction <add>, %61, %cst_36 [1] : vector<16x32xf32> to vector<16xf32>
    %70 = vector.shape_cast %69 : vector<16xf32> to vector<16x1xf32>
    %cst_37 = arith.constant 3.200000e+01 : f32
    %71 = vector.broadcast %cst_37 : f32 to vector<16x1xf32>
    %72 = arith.divf %70, %71 : vector<16x1xf32>
    %73 = vector.broadcast %72 : vector<16x1xf32> to vector<16x32xf32>
    %74 = arith.subf %61, %73 : vector<16x32xf32>
    %75 = arith.mulf %74, %74 : vector<16x32xf32>
    %cst_38 = arith.constant dense<0.000000e+00> : vector<16xf32>
    %76 = vector.multi_reduction <add>, %75, %cst_38 [1] : vector<16x32xf32> to vector<16xf32>
    %77 = vector.shape_cast %76 : vector<16xf32> to vector<16x1xf32>
    %cst_39 = arith.constant 3.200000e+01 : f32
    %78 = vector.broadcast %cst_39 : f32 to vector<16x1xf32>
    %79 = arith.divf %77, %78 : vector<16x1xf32>
    %80 = vector.broadcast %72 : vector<16x1xf32> to vector<16x32xf32>
    %81 = arith.subf %61, %80 : vector<16x32xf32>
    %cst_40 = arith.constant 9.99999974E-6 : f32
    %82 = vector.broadcast %cst_40 : f32 to vector<16x1xf32>
    %83 = arith.addf %79, %82 : vector<16x1xf32>
    %84 = math.rsqrt %83 : vector<16x1xf32>
    %85 = vector.broadcast %84 : vector<16x1xf32> to vector<16x32xf32>
    %86 = arith.mulf %81, %85 : vector<16x32xf32>
    %87 = vector.broadcast %66 : vector<1x32xf32> to vector<16x32xf32>
    %88 = arith.mulf %86, %87 : vector<16x32xf32>
    %89 = vector.broadcast %68 : vector<1x32xf32> to vector<16x32xf32>
    %90 = arith.addf %88, %89 : vector<16x32xf32>
    %91 = arith.truncf %90 : vector<16x32xf32> to vector<16x32xbf16>
    %c0_41 = arith.constant 0 : index
    %c0_42 = arith.constant 0 : index
    %c0_43 = arith.constant 0 : index
    %92 = vector.load %arg8[%c0_41, %c0_42, %c0_43] : memref<2x32x1536xbf16, #tpu.memory_space<vmem>>, vector<1x32x1536xbf16>
    %93 = vector.shape_cast %92 : vector<1x32x1536xbf16> to vector<32x1536xbf16>
    %cst_44 = arith.constant dense<0.000000e+00> : vector<16x1536xf32>
    %94 = tpu.matmul %91, %93, %cst_44 {dimension_numbers = #tpu.dot_dimension_numbers<[1], [0], [0], [1], [0, 0, 1, 1], [], []>} : vector<16x32xbf16>, vector<32x1536xbf16>, vector<16x1536xf32> -> vector<16x1536xf32>
    %c0_45 = arith.constant 0 : index
    %c0_46 = arith.constant 0 : index
    %c0_47 = arith.constant 0 : index
    %95 = vector.load %arg9[%c0_45, %c0_46, %c0_47] : memref<2x512x32xbf16, #tpu.memory_space<vmem>>, vector<1x512x32xbf16>
    %96 = vector.shape_cast %95 : vector<1x512x32xbf16> to vector<512x32xbf16>
    %cst_48 = arith.constant 0.000000e+00 : f32
    %97 = vector.broadcast %cst_48 : f32 to vector<16x32xf32>
    %98 = vector.extract_strided_slice %94 {offsets = [0, 0], sizes = [16, 128], strides = [1, 1]} : vector<16x1536xf32> to vector<16x128xf32>
    %99 = arith.truncf %98 : vector<16x128xf32> to vector<16x128xbf16>
    %100 = vector.extract_strided_slice %94 {offsets = [0, 512], sizes = [16, 128], strides = [1, 1]} : vector<16x1536xf32> to vector<16x128xf32>
    %101 = arith.truncf %100 : vector<16x128xf32> to vector<16x128xbf16>
    %102 = vector.extract_strided_slice %94 {offsets = [0, 1024], sizes = [16, 128], strides = [1, 1]} : vector<16x1536xf32> to vector<16x128xf32>
    %103 = arith.truncf %102 : vector<16x128xf32> to vector<16x128xbf16>
    %cst_49 = arith.constant dense<0.000000e+00> : vector<16x16xf32>
    %104 = tpu.matmul %99, %101, %cst_49 {dimension_numbers = #tpu.dot_dimension_numbers<[1], [1], [0], [0], [0, 0, 1, 0], [], []>} : vector<16x128xbf16>, vector<16x128xbf16>, vector<16x16xf32> -> vector<16x16xf32>
    %cst_50 = arith.constant 1.250000e-01 : f32
    %105 = vector.broadcast %cst_50 : f32 to vector<16x16xf32>
    %106 = arith.mulf %104, %105 : vector<16x16xf32>
    %cst_51 = arith.constant -1.000000e+30 : f32
    %107 = vector.broadcast %cst_51 : f32 to vector<16x16xf32>
    %108 = arith.select %64, %106, %107 : vector<16x16xi1>, vector<16x16xf32>
    %cst_52 = arith.constant dense<0xFF800000> : vector<16xf32>
    %109 = vector.multi_reduction <maximumf>, %108, %cst_52 [1] : vector<16x16xf32> to vector<16xf32>
    %110 = vector.shape_cast %109 : vector<16xf32> to vector<16x1xf32>
    %111 = vector.broadcast %110 : vector<16x1xf32> to vector<16x16xf32>
    %112 = arith.subf %108, %111 : vector<16x16xf32>
    %113 = math.exp %112 : vector<16x16xf32>
    %cst_53 = arith.constant dense<0.000000e+00> : vector<16xf32>
    %114 = vector.multi_reduction <add>, %113, %cst_53 [1] : vector<16x16xf32> to vector<16xf32>
    %115 = vector.shape_cast %114 : vector<16xf32> to vector<16x1xf32>
    %116 = tpu.reciprocal %115 {approx = true} : vector<16x1xf32> -> vector<16x1xf32>
    %117 = vector.broadcast %116 : vector<16x1xf32> to vector<16x16xf32>
    %118 = arith.mulf %113, %117 : vector<16x16xf32>
    %119 = arith.truncf %118 : vector<16x16xf32> to vector<16x16xbf16>
    %cst_54 = arith.constant dense<0.000000e+00> : vector<16x128xf32>
    %120 = tpu.matmul %119, %103, %cst_54 {dimension_numbers = #tpu.dot_dimension_numbers<[1], [0], [0], [1], [0, 0, 1, 1], [], []>} : vector<16x16xbf16>, vector<16x128xbf16>, vector<16x128xf32> -> vector<16x128xf32>
    %121 = arith.truncf %120 : vector<16x128xf32> to vector<16x128xbf16>
    %122 = vector.extract_strided_slice %96 {offsets = [0, 0], sizes = [128, 32], strides = [1, 1]} : vector<512x32xbf16> to vector<128x32xbf16>
    %cst_55 = arith.constant dense<0.000000e+00> : vector<16x32xf32>
    %123 = tpu.matmul %121, %122, %cst_55 {dimension_numbers = #tpu.dot_dimension_numbers<[1], [0], [0], [1], [0, 0, 1, 1], [], []>} : vector<16x128xbf16>, vector<128x32xbf16>, vector<16x32xf32> -> vector<16x32xf32>
    %124 = arith.addf %97, %123 : vector<16x32xf32>
    %125 = vector.extract_strided_slice %94 {offsets = [0, 128], sizes = [16, 128], strides = [1, 1]} : vector<16x1536xf32> to vector<16x128xf32>
    %126 = arith.truncf %125 : vector<16x128xf32> to vector<16x128xbf16>
    %127 = vector.extract_strided_slice %94 {offsets = [0, 640], sizes = [16, 128], strides = [1, 1]} : vector<16x1536xf32> to vector<16x128xf32>
    %128 = arith.truncf %127 : vector<16x128xf32> to vector<16x128xbf16>
    %129 = vector.extract_strided_slice %94 {offsets = [0, 1152], sizes = [16, 128], strides = [1, 1]} : vector<16x1536xf32> to vector<16x128xf32>
    %130 = arith.truncf %129 : vector<16x128xf32> to vector<16x128xbf16>
    %cst_56 = arith.constant dense<0.000000e+00> : vector<16x16xf32>
    %131 = tpu.matmul %126, %128, %cst_56 {dimension_numbers = #tpu.dot_dimension_numbers<[1], [1], [0], [0], [0, 0, 1, 0], [], []>} : vector<16x128xbf16>, vector<16x128xbf16>, vector<16x16xf32> -> vector<16x16xf32>
    %cst_57 = arith.constant 1.250000e-01 : f32
    %132 = vector.broadcast %cst_57 : f32 to vector<16x16xf32>
    %133 = arith.mulf %131, %132 : vector<16x16xf32>
    %cst_58 = arith.constant -1.000000e+30 : f32
    %134 = vector.broadcast %cst_58 : f32 to vector<16x16xf32>
    %135 = arith.select %64, %133, %134 : vector<16x16xi1>, vector<16x16xf32>
    %cst_59 = arith.constant dense<0xFF800000> : vector<16xf32>
    %136 = vector.multi_reduction <maximumf>, %135, %cst_59 [1] : vector<16x16xf32> to vector<16xf32>
    %137 = vector.shape_cast %136 : vector<16xf32> to vector<16x1xf32>
    %138 = vector.broadcast %137 : vector<16x1xf32> to vector<16x16xf32>
    %139 = arith.subf %135, %138 : vector<16x16xf32>
    %140 = math.exp %139 : vector<16x16xf32>
    %cst_60 = arith.constant dense<0.000000e+00> : vector<16xf32>
    %141 = vector.multi_reduction <add>, %140, %cst_60 [1] : vector<16x16xf32> to vector<16xf32>
    %142 = vector.shape_cast %141 : vector<16xf32> to vector<16x1xf32>
    %143 = tpu.reciprocal %142 {approx = true} : vector<16x1xf32> -> vector<16x1xf32>
    %144 = vector.broadcast %143 : vector<16x1xf32> to vector<16x16xf32>
    %145 = arith.mulf %140, %144 : vector<16x16xf32>
    %146 = arith.truncf %145 : vector<16x16xf32> to vector<16x16xbf16>
    %cst_61 = arith.constant dense<0.000000e+00> : vector<16x128xf32>
    %147 = tpu.matmul %146, %130, %cst_61 {dimension_numbers = #tpu.dot_dimension_numbers<[1], [0], [0], [1], [0, 0, 1, 1], [], []>} : vector<16x16xbf16>, vector<16x128xbf16>, vector<16x128xf32> -> vector<16x128xf32>
    %148 = arith.truncf %147 : vector<16x128xf32> to vector<16x128xbf16>
    %149 = vector.extract_strided_slice %96 {offsets = [128, 0], sizes = [128, 32], strides = [1, 1]} : vector<512x32xbf16> to vector<128x32xbf16>
    %cst_62 = arith.constant dense<0.000000e+00> : vector<16x32xf32>
    %150 = tpu.matmul %148, %149, %cst_62 {dimension_numbers = #tpu.dot_dimension_numbers<[1], [0], [0], [1], [0, 0, 1, 1], [], []>} : vector<16x128xbf16>, vector<128x32xbf16>, vector<16x32xf32> -> vector<16x32xf32>
    %151 = arith.addf %124, %150 : vector<16x32xf32>
    %152 = vector.extract_strided_slice %94 {offsets = [0, 256], sizes = [16, 128], strides = [1, 1]} : vector<16x1536xf32> to vector<16x128xf32>
    %153 = arith.truncf %152 : vector<16x128xf32> to vector<16x128xbf16>
    %154 = vector.extract_strided_slice %94 {offsets = [0, 768], sizes = [16, 128], strides = [1, 1]} : vector<16x1536xf32> to vector<16x128xf32>
    %155 = arith.truncf %154 : vector<16x128xf32> to vector<16x128xbf16>
    %156 = vector.extract_strided_slice %94 {offsets = [0, 1280], sizes = [16, 128], strides = [1, 1]} : vector<16x1536xf32> to vector<16x128xf32>
    %157 = arith.truncf %156 : vector<16x128xf32> to vector<16x128xbf16>
    %cst_63 = arith.constant dense<0.000000e+00> : vector<16x16xf32>
    %158 = tpu.matmul %153, %155, %cst_63 {dimension_numbers = #tpu.dot_dimension_numbers<[1], [1], [0], [0], [0, 0, 1, 0], [], []>} : vector<16x128xbf16>, vector<16x128xbf16>, vector<16x16xf32> -> vector<16x16xf32>
    %cst_64 = arith.constant 1.250000e-01 : f32
    %159 = vector.broadcast %cst_64 : f32 to vector<16x16xf32>
    %160 = arith.mulf %158, %159 : vector<16x16xf32>
    %cst_65 = arith.constant -1.000000e+30 : f32
    %161 = vector.broadcast %cst_65 : f32 to vector<16x16xf32>
    %162 = arith.select %64, %160, %161 : vector<16x16xi1>, vector<16x16xf32>
    %cst_66 = arith.constant dense<0xFF800000> : vector<16xf32>
    %163 = vector.multi_reduction <maximumf>, %162, %cst_66 [1] : vector<16x16xf32> to vector<16xf32>
    %164 = vector.shape_cast %163 : vector<16xf32> to vector<16x1xf32>
    %165 = vector.broadcast %164 : vector<16x1xf32> to vector<16x16xf32>
    %166 = arith.subf %162, %165 : vector<16x16xf32>
    %167 = math.exp %166 : vector<16x16xf32>
    %cst_67 = arith.constant dense<0.000000e+00> : vector<16xf32>
    %168 = vector.multi_reduction <add>, %167, %cst_67 [1] : vector<16x16xf32> to vector<16xf32>
    %169 = vector.shape_cast %168 : vector<16xf32> to vector<16x1xf32>
    %170 = tpu.reciprocal %169 {approx = true} : vector<16x1xf32> -> vector<16x1xf32>
    %171 = vector.broadcast %170 : vector<16x1xf32> to vector<16x16xf32>
    %172 = arith.mulf %167, %171 : vector<16x16xf32>
    %173 = arith.truncf %172 : vector<16x16xf32> to vector<16x16xbf16>
    %cst_68 = arith.constant dense<0.000000e+00> : vector<16x128xf32>
    %174 = tpu.matmul %173, %157, %cst_68 {dimension_numbers = #tpu.dot_dimension_numbers<[1], [0], [0], [1], [0, 0, 1, 1], [], []>} : vector<16x16xbf16>, vector<16x128xbf16>, vector<16x128xf32> -> vector<16x128xf32>
    %175 = arith.truncf %174 : vector<16x128xf32> to vector<16x128xbf16>
    %176 = vector.extract_strided_slice %96 {offsets = [256, 0], sizes = [128, 32], strides = [1, 1]} : vector<512x32xbf16> to vector<128x32xbf16>
    %cst_69 = arith.constant dense<0.000000e+00> : vector<16x32xf32>
    %177 = tpu.matmul %175, %176, %cst_69 {dimension_numbers = #tpu.dot_dimension_numbers<[1], [0], [0], [1], [0, 0, 1, 1], [], []>} : vector<16x128xbf16>, vector<128x32xbf16>, vector<16x32xf32> -> vector<16x32xf32>
    %178 = arith.addf %151, %177 : vector<16x32xf32>
    %179 = vector.extract_strided_slice %94 {offsets = [0, 384], sizes = [16, 128], strides = [1, 1]} : vector<16x1536xf32> to vector<16x128xf32>
    %180 = arith.truncf %179 : vector<16x128xf32> to vector<16x128xbf16>
    %181 = vector.extract_strided_slice %94 {offsets = [0, 896], sizes = [16, 128], strides = [1, 1]} : vector<16x1536xf32> to vector<16x128xf32>
    %182 = arith.truncf %181 : vector<16x128xf32> to vector<16x128xbf16>
    %183 = vector.extract_strided_slice %94 {offsets = [0, 1408], sizes = [16, 128], strides = [1, 1]} : vector<16x1536xf32> to vector<16x128xf32>
    %184 = arith.truncf %183 : vector<16x128xf32> to vector<16x128xbf16>
    %cst_70 = arith.constant dense<0.000000e+00> : vector<16x16xf32>
    %185 = tpu.matmul %180, %182, %cst_70 {dimension_numbers = #tpu.dot_dimension_numbers<[1], [1], [0], [0], [0, 0, 1, 0], [], []>} : vector<16x128xbf16>, vector<16x128xbf16>, vector<16x16xf32> -> vector<16x16xf32>
    %cst_71 = arith.constant 1.250000e-01 : f32
    %186 = vector.broadcast %cst_71 : f32 to vector<16x16xf32>
    %187 = arith.mulf %185, %186 : vector<16x16xf32>
    %cst_72 = arith.constant -1.000000e+30 : f32
    %188 = vector.broadcast %cst_72 : f32 to vector<16x16xf32>
    %189 = arith.select %64, %187, %188 : vector<16x16xi1>, vector<16x16xf32>
    %cst_73 = arith.constant dense<0xFF800000> : vector<16xf32>
    %190 = vector.multi_reduction <maximumf>, %189, %cst_73 [1] : vector<16x16xf32> to vector<16xf32>
    %191 = vector.shape_cast %190 : vector<16xf32> to vector<16x1xf32>
    %192 = vector.broadcast %191 : vector<16x1xf32> to vector<16x16xf32>
    %193 = arith.subf %189, %192 : vector<16x16xf32>
    %194 = math.exp %193 : vector<16x16xf32>
    %cst_74 = arith.constant dense<0.000000e+00> : vector<16xf32>
    %195 = vector.multi_reduction <add>, %194, %cst_74 [1] : vector<16x16xf32> to vector<16xf32>
    %196 = vector.shape_cast %195 : vector<16xf32> to vector<16x1xf32>
    %197 = tpu.reciprocal %196 {approx = true} : vector<16x1xf32> -> vector<16x1xf32>
    %198 = vector.broadcast %197 : vector<16x1xf32> to vector<16x16xf32>
    %199 = arith.mulf %194, %198 : vector<16x16xf32>
    %200 = arith.truncf %199 : vector<16x16xf32> to vector<16x16xbf16>
    %cst_75 = arith.constant dense<0.000000e+00> : vector<16x128xf32>
    %201 = tpu.matmul %200, %184, %cst_75 {dimension_numbers = #tpu.dot_dimension_numbers<[1], [0], [0], [1], [0, 0, 1, 1], [], []>} : vector<16x16xbf16>, vector<16x128xbf16>, vector<16x128xf32> -> vector<16x128xf32>
    %202 = arith.truncf %201 : vector<16x128xf32> to vector<16x128xbf16>
    %203 = vector.extract_strided_slice %96 {offsets = [384, 0], sizes = [128, 32], strides = [1, 1]} : vector<512x32xbf16> to vector<128x32xbf16>
    %cst_76 = arith.constant dense<0.000000e+00> : vector<16x32xf32>
    %204 = tpu.matmul %202, %203, %cst_76 {dimension_numbers = #tpu.dot_dimension_numbers<[1], [0], [0], [1], [0, 0, 1, 1], [], []>} : vector<16x128xbf16>, vector<128x32xbf16>, vector<16x32xf32> -> vector<16x32xf32>
    %205 = arith.addf %178, %204 : vector<16x32xf32>
    %206 = arith.addf %61, %205 : vector<16x32xf32>
    %c0_77 = arith.constant 0 : index
    %c0_78 = arith.constant 0 : index
    %c0_79 = arith.constant 0 : index
    %207 = vector.load %arg10[%c0_77, %c0_78, %c0_79] : memref<2x1x32xf32, #tpu.memory_space<vmem>>, vector<1x1x32xf32>
    %208 = vector.shape_cast %207 : vector<1x1x32xf32> to vector<1x32xf32>
    %209 = vector.broadcast %208 : vector<1x32xf32> to vector<16x32xf32>
    %210 = arith.addf %206, %209 : vector<16x32xf32>
    %c0_80 = arith.constant 0 : index
    %c0_81 = arith.constant 0 : index
    %c0_82 = arith.constant 0 : index
    %211 = vector.load %arg11[%c0_80, %c0_81, %c0_82] : memref<2x1x32xf32, #tpu.memory_space<vmem>>, vector<1x1x32xf32>
    %212 = vector.shape_cast %211 : vector<1x1x32xf32> to vector<1x32xf32>
    %c0_83 = arith.constant 0 : index
    %c0_84 = arith.constant 0 : index
    %c0_85 = arith.constant 0 : index
    %213 = vector.load %arg12[%c0_83, %c0_84, %c0_85] : memref<2x1x32xf32, #tpu.memory_space<vmem>>, vector<1x1x32xf32>
    %214 = vector.shape_cast %213 : vector<1x1x32xf32> to vector<1x32xf32>
    %cst_86 = arith.constant dense<0.000000e+00> : vector<16xf32>
    %215 = vector.multi_reduction <add>, %210, %cst_86 [1] : vector<16x32xf32> to vector<16xf32>
    %216 = vector.shape_cast %215 : vector<16xf32> to vector<16x1xf32>
    %cst_87 = arith.constant 3.200000e+01 : f32
    %217 = vector.broadcast %cst_87 : f32 to vector<16x1xf32>
    %218 = arith.divf %216, %217 : vector<16x1xf32>
    %219 = vector.broadcast %218 : vector<16x1xf32> to vector<16x32xf32>
    %220 = arith.subf %210, %219 : vector<16x32xf32>
    %221 = arith.mulf %220, %220 : vector<16x32xf32>
    %cst_88 = arith.constant dense<0.000000e+00> : vector<16xf32>
    %222 = vector.multi_reduction <add>, %221, %cst_88 [1] : vector<16x32xf32> to vector<16xf32>
    %223 = vector.shape_cast %222 : vector<16xf32> to vector<16x1xf32>
    %cst_89 = arith.constant 3.200000e+01 : f32
    %224 = vector.broadcast %cst_89 : f32 to vector<16x1xf32>
    %225 = arith.divf %223, %224 : vector<16x1xf32>
    %226 = vector.broadcast %218 : vector<16x1xf32> to vector<16x32xf32>
    %227 = arith.subf %210, %226 : vector<16x32xf32>
    %cst_90 = arith.constant 9.99999974E-6 : f32
    %228 = vector.broadcast %cst_90 : f32 to vector<16x1xf32>
    %229 = arith.addf %225, %228 : vector<16x1xf32>
    %230 = math.rsqrt %229 : vector<16x1xf32>
    %231 = vector.broadcast %230 : vector<16x1xf32> to vector<16x32xf32>
    %232 = arith.mulf %227, %231 : vector<16x32xf32>
    %233 = vector.broadcast %212 : vector<1x32xf32> to vector<16x32xf32>
    %234 = arith.mulf %232, %233 : vector<16x32xf32>
    %235 = vector.broadcast %214 : vector<1x32xf32> to vector<16x32xf32>
    %236 = arith.addf %234, %235 : vector<16x32xf32>
    %237 = arith.truncf %236 : vector<16x32xf32> to vector<16x32xbf16>
    %c0_91 = arith.constant 0 : index
    %c0_92 = arith.constant 0 : index
    %c0_93 = arith.constant 0 : index
    %238 = vector.load %arg13[%c0_91, %c0_92, %c0_93] : memref<2x32x128xbf16, #tpu.memory_space<vmem>>, vector<1x32x128xbf16>
    %239 = vector.shape_cast %238 : vector<1x32x128xbf16> to vector<32x128xbf16>
    %cst_94 = arith.constant dense<0.000000e+00> : vector<16x128xf32>
    %240 = tpu.matmul %237, %239, %cst_94 {dimension_numbers = #tpu.dot_dimension_numbers<[1], [0], [0], [1], [0, 0, 1, 1], [], []>} : vector<16x32xbf16>, vector<32x128xbf16>, vector<16x128xf32> -> vector<16x128xf32>
    %c0_95 = arith.constant 0 : index
    %c0_96 = arith.constant 0 : index
    %c0_97 = arith.constant 0 : index
    %241 = vector.load %arg14[%c0_95, %c0_96, %c0_97] : memref<2x1x128xf32, #tpu.memory_space<vmem>>, vector<1x1x128xf32>
    %242 = vector.shape_cast %241 : vector<1x1x128xf32> to vector<1x128xf32>
    %243 = vector.broadcast %242 : vector<1x128xf32> to vector<16x128xf32>
    %244 = arith.addf %240, %243 : vector<16x128xf32>
    %245 = arith.mulf %244, %244 : vector<16x128xf32>
    %246 = arith.mulf %244, %245 : vector<16x128xf32>
    %cst_98 = arith.constant 4.471500e-02 : f32
    %247 = vector.broadcast %cst_98 : f32 to vector<16x128xf32>
    %248 = arith.mulf %247, %246 : vector<16x128xf32>
    %249 = arith.addf %244, %248 : vector<16x128xf32>
    %cst_99 = arith.constant 0.797884583 : f32
    %250 = vector.broadcast %cst_99 : f32 to vector<16x128xf32>
    %251 = arith.mulf %250, %249 : vector<16x128xf32>
    %252 = math.tanh %251 : vector<16x128xf32>
    %cst_100 = arith.constant 1.000000e+00 : f32
    %253 = vector.broadcast %cst_100 : f32 to vector<16x128xf32>
    %254 = arith.addf %253, %252 : vector<16x128xf32>
    %cst_101 = arith.constant 5.000000e-01 : f32
    %255 = vector.broadcast %cst_101 : f32 to vector<16x128xf32>
    %256 = arith.mulf %255, %254 : vector<16x128xf32>
    %257 = arith.mulf %244, %256 : vector<16x128xf32>
    %258 = arith.truncf %257 : vector<16x128xf32> to vector<16x128xbf16>
    %c0_102 = arith.constant 0 : index
    %c0_103 = arith.constant 0 : index
    %c0_104 = arith.constant 0 : index
    %259 = vector.load %arg15[%c0_102, %c0_103, %c0_104] : memref<2x128x32xbf16, #tpu.memory_space<vmem>>, vector<1x128x32xbf16>
    %260 = vector.shape_cast %259 : vector<1x128x32xbf16> to vector<128x32xbf16>
    %cst_105 = arith.constant dense<0.000000e+00> : vector<16x32xf32>
    %261 = tpu.matmul %258, %260, %cst_105 {dimension_numbers = #tpu.dot_dimension_numbers<[1], [0], [0], [1], [0, 0, 1, 1], [], []>} : vector<16x128xbf16>, vector<128x32xbf16>, vector<16x32xf32> -> vector<16x32xf32>
    %262 = arith.addf %210, %261 : vector<16x32xf32>
    %c0_106 = arith.constant 0 : index
    %c0_107 = arith.constant 0 : index
    %c0_108 = arith.constant 0 : index
    %263 = vector.load %arg16[%c0_106, %c0_107, %c0_108] : memref<2x1x32xf32, #tpu.memory_space<vmem>>, vector<1x1x32xf32>
    %264 = vector.shape_cast %263 : vector<1x1x32xf32> to vector<1x32xf32>
    %265 = vector.broadcast %264 : vector<1x32xf32> to vector<16x32xf32>
    %266 = arith.addf %262, %265 : vector<16x32xf32>
    %c1_109 = arith.constant 1 : index
    %c0_110 = arith.constant 0 : index
    %c0_111 = arith.constant 0 : index
    %267 = vector.load %arg6[%c1_109, %c0_110, %c0_111] : memref<2x1x32xf32, #tpu.memory_space<vmem>>, vector<1x1x32xf32>
    %268 = vector.shape_cast %267 : vector<1x1x32xf32> to vector<1x32xf32>
    %c1_112 = arith.constant 1 : index
    %c0_113 = arith.constant 0 : index
    %c0_114 = arith.constant 0 : index
    %269 = vector.load %arg7[%c1_112, %c0_113, %c0_114] : memref<2x1x32xf32, #tpu.memory_space<vmem>>, vector<1x1x32xf32>
    %270 = vector.shape_cast %269 : vector<1x1x32xf32> to vector<1x32xf32>
    %cst_115 = arith.constant dense<0.000000e+00> : vector<16xf32>
    %271 = vector.multi_reduction <add>, %266, %cst_115 [1] : vector<16x32xf32> to vector<16xf32>
    %272 = vector.shape_cast %271 : vector<16xf32> to vector<16x1xf32>
    %cst_116 = arith.constant 3.200000e+01 : f32
    %273 = vector.broadcast %cst_116 : f32 to vector<16x1xf32>
    %274 = arith.divf %272, %273 : vector<16x1xf32>
    %275 = vector.broadcast %274 : vector<16x1xf32> to vector<16x32xf32>
    %276 = arith.subf %266, %275 : vector<16x32xf32>
    %277 = arith.mulf %276, %276 : vector<16x32xf32>
    %cst_117 = arith.constant dense<0.000000e+00> : vector<16xf32>
    %278 = vector.multi_reduction <add>, %277, %cst_117 [1] : vector<16x32xf32> to vector<16xf32>
    %279 = vector.shape_cast %278 : vector<16xf32> to vector<16x1xf32>
    %cst_118 = arith.constant 3.200000e+01 : f32
    %280 = vector.broadcast %cst_118 : f32 to vector<16x1xf32>
    %281 = arith.divf %279, %280 : vector<16x1xf32>
    %282 = vector.broadcast %274 : vector<16x1xf32> to vector<16x32xf32>
    %283 = arith.subf %266, %282 : vector<16x32xf32>
    %cst_119 = arith.constant 9.99999974E-6 : f32
    %284 = vector.broadcast %cst_119 : f32 to vector<16x1xf32>
    %285 = arith.addf %281, %284 : vector<16x1xf32>
    %286 = math.rsqrt %285 : vector<16x1xf32>
    %287 = vector.broadcast %286 : vector<16x1xf32> to vector<16x32xf32>
    %288 = arith.mulf %283, %287 : vector<16x32xf32>
    %289 = vector.broadcast %268 : vector<1x32xf32> to vector<16x32xf32>
    %290 = arith.mulf %288, %289 : vector<16x32xf32>
    %291 = vector.broadcast %270 : vector<1x32xf32> to vector<16x32xf32>
    %292 = arith.addf %290, %291 : vector<16x32xf32>
    %293 = arith.truncf %292 : vector<16x32xf32> to vector<16x32xbf16>
    %c1_120 = arith.constant 1 : index
    %c0_121 = arith.constant 0 : index
    %c0_122 = arith.constant 0 : index
    %294 = vector.load %arg8[%c1_120, %c0_121, %c0_122] : memref<2x32x1536xbf16, #tpu.memory_space<vmem>>, vector<1x32x1536xbf16>
    %295 = vector.shape_cast %294 : vector<1x32x1536xbf16> to vector<32x1536xbf16>
    %cst_123 = arith.constant dense<0.000000e+00> : vector<16x1536xf32>
    %296 = tpu.matmul %293, %295, %cst_123 {dimension_numbers = #tpu.dot_dimension_numbers<[1], [0], [0], [1], [0, 0, 1, 1], [], []>} : vector<16x32xbf16>, vector<32x1536xbf16>, vector<16x1536xf32> -> vector<16x1536xf32>
    %c1_124 = arith.constant 1 : index
    %c0_125 = arith.constant 0 : index
    %c0_126 = arith.constant 0 : index
    %297 = vector.load %arg9[%c1_124, %c0_125, %c0_126] : memref<2x512x32xbf16, #tpu.memory_space<vmem>>, vector<1x512x32xbf16>
    %298 = vector.shape_cast %297 : vector<1x512x32xbf16> to vector<512x32xbf16>
    %cst_127 = arith.constant 0.000000e+00 : f32
    %299 = vector.broadcast %cst_127 : f32 to vector<16x32xf32>
    %300 = vector.extract_strided_slice %296 {offsets = [0, 0], sizes = [16, 128], strides = [1, 1]} : vector<16x1536xf32> to vector<16x128xf32>
    %301 = arith.truncf %300 : vector<16x128xf32> to vector<16x128xbf16>
    %302 = vector.extract_strided_slice %296 {offsets = [0, 512], sizes = [16, 128], strides = [1, 1]} : vector<16x1536xf32> to vector<16x128xf32>
    %303 = arith.truncf %302 : vector<16x128xf32> to vector<16x128xbf16>
    %304 = vector.extract_strided_slice %296 {offsets = [0, 1024], sizes = [16, 128], strides = [1, 1]} : vector<16x1536xf32> to vector<16x128xf32>
    %305 = arith.truncf %304 : vector<16x128xf32> to vector<16x128xbf16>
    %cst_128 = arith.constant dense<0.000000e+00> : vector<16x16xf32>
    %306 = tpu.matmul %301, %303, %cst_128 {dimension_numbers = #tpu.dot_dimension_numbers<[1], [1], [0], [0], [0, 0, 1, 0], [], []>} : vector<16x128xbf16>, vector<16x128xbf16>, vector<16x16xf32> -> vector<16x16xf32>
    %cst_129 = arith.constant 1.250000e-01 : f32
    %307 = vector.broadcast %cst_129 : f32 to vector<16x16xf32>
    %308 = arith.mulf %306, %307 : vector<16x16xf32>
    %cst_130 = arith.constant -1.000000e+30 : f32
    %309 = vector.broadcast %cst_130 : f32 to vector<16x16xf32>
    %310 = arith.select %64, %308, %309 : vector<16x16xi1>, vector<16x16xf32>
    %cst_131 = arith.constant dense<0xFF800000> : vector<16xf32>
    %311 = vector.multi_reduction <maximumf>, %310, %cst_131 [1] : vector<16x16xf32> to vector<16xf32>
    %312 = vector.shape_cast %311 : vector<16xf32> to vector<16x1xf32>
    %313 = vector.broadcast %312 : vector<16x1xf32> to vector<16x16xf32>
    %314 = arith.subf %310, %313 : vector<16x16xf32>
    %315 = math.exp %314 : vector<16x16xf32>
    %cst_132 = arith.constant dense<0.000000e+00> : vector<16xf32>
    %316 = vector.multi_reduction <add>, %315, %cst_132 [1] : vector<16x16xf32> to vector<16xf32>
    %317 = vector.shape_cast %316 : vector<16xf32> to vector<16x1xf32>
    %318 = tpu.reciprocal %317 {approx = true} : vector<16x1xf32> -> vector<16x1xf32>
    %319 = vector.broadcast %318 : vector<16x1xf32> to vector<16x16xf32>
    %320 = arith.mulf %315, %319 : vector<16x16xf32>
    %321 = arith.truncf %320 : vector<16x16xf32> to vector<16x16xbf16>
    %cst_133 = arith.constant dense<0.000000e+00> : vector<16x128xf32>
    %322 = tpu.matmul %321, %305, %cst_133 {dimension_numbers = #tpu.dot_dimension_numbers<[1], [0], [0], [1], [0, 0, 1, 1], [], []>} : vector<16x16xbf16>, vector<16x128xbf16>, vector<16x128xf32> -> vector<16x128xf32>
    %323 = arith.truncf %322 : vector<16x128xf32> to vector<16x128xbf16>
    %324 = vector.extract_strided_slice %298 {offsets = [0, 0], sizes = [128, 32], strides = [1, 1]} : vector<512x32xbf16> to vector<128x32xbf16>
    %cst_134 = arith.constant dense<0.000000e+00> : vector<16x32xf32>
    %325 = tpu.matmul %323, %324, %cst_134 {dimension_numbers = #tpu.dot_dimension_numbers<[1], [0], [0], [1], [0, 0, 1, 1], [], []>} : vector<16x128xbf16>, vector<128x32xbf16>, vector<16x32xf32> -> vector<16x32xf32>
    %326 = arith.addf %299, %325 : vector<16x32xf32>
    %327 = vector.extract_strided_slice %296 {offsets = [0, 128], sizes = [16, 128], strides = [1, 1]} : vector<16x1536xf32> to vector<16x128xf32>
    %328 = arith.truncf %327 : vector<16x128xf32> to vector<16x128xbf16>
    %329 = vector.extract_strided_slice %296 {offsets = [0, 640], sizes = [16, 128], strides = [1, 1]} : vector<16x1536xf32> to vector<16x128xf32>
    %330 = arith.truncf %329 : vector<16x128xf32> to vector<16x128xbf16>
    %331 = vector.extract_strided_slice %296 {offsets = [0, 1152], sizes = [16, 128], strides = [1, 1]} : vector<16x1536xf32> to vector<16x128xf32>
    %332 = arith.truncf %331 : vector<16x128xf32> to vector<16x128xbf16>
    %cst_135 = arith.constant dense<0.000000e+00> : vector<16x16xf32>
    %333 = tpu.matmul %328, %330, %cst_135 {dimension_numbers = #tpu.dot_dimension_numbers<[1], [1], [0], [0], [0, 0, 1, 0], [], []>} : vector<16x128xbf16>, vector<16x128xbf16>, vector<16x16xf32> -> vector<16x16xf32>
    %cst_136 = arith.constant 1.250000e-01 : f32
    %334 = vector.broadcast %cst_136 : f32 to vector<16x16xf32>
    %335 = arith.mulf %333, %334 : vector<16x16xf32>
    %cst_137 = arith.constant -1.000000e+30 : f32
    %336 = vector.broadcast %cst_137 : f32 to vector<16x16xf32>
    %337 = arith.select %64, %335, %336 : vector<16x16xi1>, vector<16x16xf32>
    %cst_138 = arith.constant dense<0xFF800000> : vector<16xf32>
    %338 = vector.multi_reduction <maximumf>, %337, %cst_138 [1] : vector<16x16xf32> to vector<16xf32>
    %339 = vector.shape_cast %338 : vector<16xf32> to vector<16x1xf32>
    %340 = vector.broadcast %339 : vector<16x1xf32> to vector<16x16xf32>
    %341 = arith.subf %337, %340 : vector<16x16xf32>
    %342 = math.exp %341 : vector<16x16xf32>
    %cst_139 = arith.constant dense<0.000000e+00> : vector<16xf32>
    %343 = vector.multi_reduction <add>, %342, %cst_139 [1] : vector<16x16xf32> to vector<16xf32>
    %344 = vector.shape_cast %343 : vector<16xf32> to vector<16x1xf32>
    %345 = tpu.reciprocal %344 {approx = true} : vector<16x1xf32> -> vector<16x1xf32>
    %346 = vector.broadcast %345 : vector<16x1xf32> to vector<16x16xf32>
    %347 = arith.mulf %342, %346 : vector<16x16xf32>
    %348 = arith.truncf %347 : vector<16x16xf32> to vector<16x16xbf16>
    %cst_140 = arith.constant dense<0.000000e+00> : vector<16x128xf32>
    %349 = tpu.matmul %348, %332, %cst_140 {dimension_numbers = #tpu.dot_dimension_numbers<[1], [0], [0], [1], [0, 0, 1, 1], [], []>} : vector<16x16xbf16>, vector<16x128xbf16>, vector<16x128xf32> -> vector<16x128xf32>
    %350 = arith.truncf %349 : vector<16x128xf32> to vector<16x128xbf16>
    %351 = vector.extract_strided_slice %298 {offsets = [128, 0], sizes = [128, 32], strides = [1, 1]} : vector<512x32xbf16> to vector<128x32xbf16>
    %cst_141 = arith.constant dense<0.000000e+00> : vector<16x32xf32>
    %352 = tpu.matmul %350, %351, %cst_141 {dimension_numbers = #tpu.dot_dimension_numbers<[1], [0], [0], [1], [0, 0, 1, 1], [], []>} : vector<16x128xbf16>, vector<128x32xbf16>, vector<16x32xf32> -> vector<16x32xf32>
    %353 = arith.addf %326, %352 : vector<16x32xf32>
    %354 = vector.extract_strided_slice %296 {offsets = [0, 256], sizes = [16, 128], strides = [1, 1]} : vector<16x1536xf32> to vector<16x128xf32>
    %355 = arith.truncf %354 : vector<16x128xf32> to vector<16x128xbf16>
    %356 = vector.extract_strided_slice %296 {offsets = [0, 768], sizes = [16, 128], strides = [1, 1]} : vector<16x1536xf32> to vector<16x128xf32>
    %357 = arith.truncf %356 : vector<16x128xf32> to vector<16x128xbf16>
    %358 = vector.extract_strided_slice %296 {offsets = [0, 1280], sizes = [16, 128], strides = [1, 1]} : vector<16x1536xf32> to vector<16x128xf32>
    %359 = arith.truncf %358 : vector<16x128xf32> to vector<16x128xbf16>
    %cst_142 = arith.constant dense<0.000000e+00> : vector<16x16xf32>
    %360 = tpu.matmul %355, %357, %cst_142 {dimension_numbers = #tpu.dot_dimension_numbers<[1], [1], [0], [0], [0, 0, 1, 0], [], []>} : vector<16x128xbf16>, vector<16x128xbf16>, vector<16x16xf32> -> vector<16x16xf32>
    %cst_143 = arith.constant 1.250000e-01 : f32
    %361 = vector.broadcast %cst_143 : f32 to vector<16x16xf32>
    %362 = arith.mulf %360, %361 : vector<16x16xf32>
    %cst_144 = arith.constant -1.000000e+30 : f32
    %363 = vector.broadcast %cst_144 : f32 to vector<16x16xf32>
    %364 = arith.select %64, %362, %363 : vector<16x16xi1>, vector<16x16xf32>
    %cst_145 = arith.constant dense<0xFF800000> : vector<16xf32>
    %365 = vector.multi_reduction <maximumf>, %364, %cst_145 [1] : vector<16x16xf32> to vector<16xf32>
    %366 = vector.shape_cast %365 : vector<16xf32> to vector<16x1xf32>
    %367 = vector.broadcast %366 : vector<16x1xf32> to vector<16x16xf32>
    %368 = arith.subf %364, %367 : vector<16x16xf32>
    %369 = math.exp %368 : vector<16x16xf32>
    %cst_146 = arith.constant dense<0.000000e+00> : vector<16xf32>
    %370 = vector.multi_reduction <add>, %369, %cst_146 [1] : vector<16x16xf32> to vector<16xf32>
    %371 = vector.shape_cast %370 : vector<16xf32> to vector<16x1xf32>
    %372 = tpu.reciprocal %371 {approx = true} : vector<16x1xf32> -> vector<16x1xf32>
    %373 = vector.broadcast %372 : vector<16x1xf32> to vector<16x16xf32>
    %374 = arith.mulf %369, %373 : vector<16x16xf32>
    %375 = arith.truncf %374 : vector<16x16xf32> to vector<16x16xbf16>
    %cst_147 = arith.constant dense<0.000000e+00> : vector<16x128xf32>
    %376 = tpu.matmul %375, %359, %cst_147 {dimension_numbers = #tpu.dot_dimension_numbers<[1], [0], [0], [1], [0, 0, 1, 1], [], []>} : vector<16x16xbf16>, vector<16x128xbf16>, vector<16x128xf32> -> vector<16x128xf32>
    %377 = arith.truncf %376 : vector<16x128xf32> to vector<16x128xbf16>
    %378 = vector.extract_strided_slice %298 {offsets = [256, 0], sizes = [128, 32], strides = [1, 1]} : vector<512x32xbf16> to vector<128x32xbf16>
    %cst_148 = arith.constant dense<0.000000e+00> : vector<16x32xf32>
    %379 = tpu.matmul %377, %378, %cst_148 {dimension_numbers = #tpu.dot_dimension_numbers<[1], [0], [0], [1], [0, 0, 1, 1], [], []>} : vector<16x128xbf16>, vector<128x32xbf16>, vector<16x32xf32> -> vector<16x32xf32>
    %380 = arith.addf %353, %379 : vector<16x32xf32>
    %381 = vector.extract_strided_slice %296 {offsets = [0, 384], sizes = [16, 128], strides = [1, 1]} : vector<16x1536xf32> to vector<16x128xf32>
    %382 = arith.truncf %381 : vector<16x128xf32> to vector<16x128xbf16>
    %383 = vector.extract_strided_slice %296 {offsets = [0, 896], sizes = [16, 128], strides = [1, 1]} : vector<16x1536xf32> to vector<16x128xf32>
    %384 = arith.truncf %383 : vector<16x128xf32> to vector<16x128xbf16>
    %385 = vector.extract_strided_slice %296 {offsets = [0, 1408], sizes = [16, 128], strides = [1, 1]} : vector<16x1536xf32> to vector<16x128xf32>
    %386 = arith.truncf %385 : vector<16x128xf32> to vector<16x128xbf16>
    %cst_149 = arith.constant dense<0.000000e+00> : vector<16x16xf32>
    %387 = tpu.matmul %382, %384, %cst_149 {dimension_numbers = #tpu.dot_dimension_numbers<[1], [1], [0], [0], [0, 0, 1, 0], [], []>} : vector<16x128xbf16>, vector<16x128xbf16>, vector<16x16xf32> -> vector<16x16xf32>
    %cst_150 = arith.constant 1.250000e-01 : f32
    %388 = vector.broadcast %cst_150 : f32 to vector<16x16xf32>
    %389 = arith.mulf %387, %388 : vector<16x16xf32>
    %cst_151 = arith.constant -1.000000e+30 : f32
    %390 = vector.broadcast %cst_151 : f32 to vector<16x16xf32>
    %391 = arith.select %64, %389, %390 : vector<16x16xi1>, vector<16x16xf32>
    %cst_152 = arith.constant dense<0xFF800000> : vector<16xf32>
    %392 = vector.multi_reduction <maximumf>, %391, %cst_152 [1] : vector<16x16xf32> to vector<16xf32>
    %393 = vector.shape_cast %392 : vector<16xf32> to vector<16x1xf32>
    %394 = vector.broadcast %393 : vector<16x1xf32> to vector<16x16xf32>
    %395 = arith.subf %391, %394 : vector<16x16xf32>
    %396 = math.exp %395 : vector<16x16xf32>
    %cst_153 = arith.constant dense<0.000000e+00> : vector<16xf32>
    %397 = vector.multi_reduction <add>, %396, %cst_153 [1] : vector<16x16xf32> to vector<16xf32>
    %398 = vector.shape_cast %397 : vector<16xf32> to vector<16x1xf32>
    %399 = tpu.reciprocal %398 {approx = true} : vector<16x1xf32> -> vector<16x1xf32>
    %400 = vector.broadcast %399 : vector<16x1xf32> to vector<16x16xf32>
    %401 = arith.mulf %396, %400 : vector<16x16xf32>
    %402 = arith.truncf %401 : vector<16x16xf32> to vector<16x16xbf16>
    %cst_154 = arith.constant dense<0.000000e+00> : vector<16x128xf32>
    %403 = tpu.matmul %402, %386, %cst_154 {dimension_numbers = #tpu.dot_dimension_numbers<[1], [0], [0], [1], [0, 0, 1, 1], [], []>} : vector<16x16xbf16>, vector<16x128xbf16>, vector<16x128xf32> -> vector<16x128xf32>
    %404 = arith.truncf %403 : vector<16x128xf32> to vector<16x128xbf16>
    %405 = vector.extract_strided_slice %298 {offsets = [384, 0], sizes = [128, 32], strides = [1, 1]} : vector<512x32xbf16> to vector<128x32xbf16>
    %cst_155 = arith.constant dense<0.000000e+00> : vector<16x32xf32>
    %406 = tpu.matmul %404, %405, %cst_155 {dimension_numbers = #tpu.dot_dimension_numbers<[1], [0], [0], [1], [0, 0, 1, 1], [], []>} : vector<16x128xbf16>, vector<128x32xbf16>, vector<16x32xf32> -> vector<16x32xf32>
    %407 = arith.addf %380, %406 : vector<16x32xf32>
    %408 = arith.addf %266, %407 : vector<16x32xf32>
    %c1_156 = arith.constant 1 : index
    %c0_157 = arith.constant 0 : index
    %c0_158 = arith.constant 0 : index
    %409 = vector.load %arg10[%c1_156, %c0_157, %c0_158] : memref<2x1x32xf32, #tpu.memory_space<vmem>>, vector<1x1x32xf32>
    %410 = vector.shape_cast %409 : vector<1x1x32xf32> to vector<1x32xf32>
    %411 = vector.broadcast %410 : vector<1x32xf32> to vector<16x32xf32>
    %412 = arith.addf %408, %411 : vector<16x32xf32>
    %c1_159 = arith.constant 1 : index
    %c0_160 = arith.constant 0 : index
    %c0_161 = arith.constant 0 : index
    %413 = vector.load %arg11[%c1_159, %c0_160, %c0_161] : memref<2x1x32xf32, #tpu.memory_space<vmem>>, vector<1x1x32xf32>
    %414 = vector.shape_cast %413 : vector<1x1x32xf32> to vector<1x32xf32>
    %c1_162 = arith.constant 1 : index
    %c0_163 = arith.constant 0 : index
    %c0_164 = arith.constant 0 : index
    %415 = vector.load %arg12[%c1_162, %c0_163, %c0_164] : memref<2x1x32xf32, #tpu.memory_space<vmem>>, vector<1x1x32xf32>
    %416 = vector.shape_cast %415 : vector<1x1x32xf32> to vector<1x32xf32>
    %cst_165 = arith.constant dense<0.000000e+00> : vector<16xf32>
    %417 = vector.multi_reduction <add>, %412, %cst_165 [1] : vector<16x32xf32> to vector<16xf32>
    %418 = vector.shape_cast %417 : vector<16xf32> to vector<16x1xf32>
    %cst_166 = arith.constant 3.200000e+01 : f32
    %419 = vector.broadcast %cst_166 : f32 to vector<16x1xf32>
    %420 = arith.divf %418, %419 : vector<16x1xf32>
    %421 = vector.broadcast %420 : vector<16x1xf32> to vector<16x32xf32>
    %422 = arith.subf %412, %421 : vector<16x32xf32>
    %423 = arith.mulf %422, %422 : vector<16x32xf32>
    %cst_167 = arith.constant dense<0.000000e+00> : vector<16xf32>
    %424 = vector.multi_reduction <add>, %423, %cst_167 [1] : vector<16x32xf32> to vector<16xf32>
    %425 = vector.shape_cast %424 : vector<16xf32> to vector<16x1xf32>
    %cst_168 = arith.constant 3.200000e+01 : f32
    %426 = vector.broadcast %cst_168 : f32 to vector<16x1xf32>
    %427 = arith.divf %425, %426 : vector<16x1xf32>
    %428 = vector.broadcast %420 : vector<16x1xf32> to vector<16x32xf32>
    %429 = arith.subf %412, %428 : vector<16x32xf32>
    %cst_169 = arith.constant 9.99999974E-6 : f32
    %430 = vector.broadcast %cst_169 : f32 to vector<16x1xf32>
    %431 = arith.addf %427, %430 : vector<16x1xf32>
    %432 = math.rsqrt %431 : vector<16x1xf32>
    %433 = vector.broadcast %432 : vector<16x1xf32> to vector<16x32xf32>
    %434 = arith.mulf %429, %433 : vector<16x32xf32>
    %435 = vector.broadcast %414 : vector<1x32xf32> to vector<16x32xf32>
    %436 = arith.mulf %434, %435 : vector<16x32xf32>
    %437 = vector.broadcast %416 : vector<1x32xf32> to vector<16x32xf32>
    %438 = arith.addf %436, %437 : vector<16x32xf32>
    %439 = arith.truncf %438 : vector<16x32xf32> to vector<16x32xbf16>
    %c1_170 = arith.constant 1 : index
    %c0_171 = arith.constant 0 : index
    %c0_172 = arith.constant 0 : index
    %440 = vector.load %arg13[%c1_170, %c0_171, %c0_172] : memref<2x32x128xbf16, #tpu.memory_space<vmem>>, vector<1x32x128xbf16>
    %441 = vector.shape_cast %440 : vector<1x32x128xbf16> to vector<32x128xbf16>
    %cst_173 = arith.constant dense<0.000000e+00> : vector<16x128xf32>
    %442 = tpu.matmul %439, %441, %cst_173 {dimension_numbers = #tpu.dot_dimension_numbers<[1], [0], [0], [1], [0, 0, 1, 1], [], []>} : vector<16x32xbf16>, vector<32x128xbf16>, vector<16x128xf32> -> vector<16x128xf32>
    %c1_174 = arith.constant 1 : index
    %c0_175 = arith.constant 0 : index
    %c0_176 = arith.constant 0 : index
    %443 = vector.load %arg14[%c1_174, %c0_175, %c0_176] : memref<2x1x128xf32, #tpu.memory_space<vmem>>, vector<1x1x128xf32>
    %444 = vector.shape_cast %443 : vector<1x1x128xf32> to vector<1x128xf32>
    %445 = vector.broadcast %444 : vector<1x128xf32> to vector<16x128xf32>
    %446 = arith.addf %442, %445 : vector<16x128xf32>
    %447 = arith.mulf %446, %446 : vector<16x128xf32>
    %448 = arith.mulf %446, %447 : vector<16x128xf32>
    %cst_177 = arith.constant 4.471500e-02 : f32
    %449 = vector.broadcast %cst_177 : f32 to vector<16x128xf32>
    %450 = arith.mulf %449, %448 : vector<16x128xf32>
    %451 = arith.addf %446, %450 : vector<16x128xf32>
    %cst_178 = arith.constant 0.797884583 : f32
    %452 = vector.broadcast %cst_178 : f32 to vector<16x128xf32>
    %453 = arith.mulf %452, %451 : vector<16x128xf32>
    %454 = math.tanh %453 : vector<16x128xf32>
    %cst_179 = arith.constant 1.000000e+00 : f32
    %455 = vector.broadcast %cst_179 : f32 to vector<16x128xf32>
    %456 = arith.addf %455, %454 : vector<16x128xf32>
    %cst_180 = arith.constant 5.000000e-01 : f32
    %457 = vector.broadcast %cst_180 : f32 to vector<16x128xf32>
    %458 = arith.mulf %457, %456 : vector<16x128xf32>
    %459 = arith.mulf %446, %458 : vector<16x128xf32>
    %460 = arith.truncf %459 : vector<16x128xf32> to vector<16x128xbf16>
    %c1_181 = arith.constant 1 : index
    %c0_182 = arith.constant 0 : index
    %c0_183 = arith.constant 0 : index
    %461 = vector.load %arg15[%c1_181, %c0_182, %c0_183] : memref<2x128x32xbf16, #tpu.memory_space<vmem>>, vector<1x128x32xbf16>
    %462 = vector.shape_cast %461 : vector<1x128x32xbf16> to vector<128x32xbf16>
    %cst_184 = arith.constant dense<0.000000e+00> : vector<16x32xf32>
    %463 = tpu.matmul %460, %462, %cst_184 {dimension_numbers = #tpu.dot_dimension_numbers<[1], [0], [0], [1], [0, 0, 1, 1], [], []>} : vector<16x128xbf16>, vector<128x32xbf16>, vector<16x32xf32> -> vector<16x32xf32>
    %464 = arith.addf %412, %463 : vector<16x32xf32>
    %c1_185 = arith.constant 1 : index
    %c0_186 = arith.constant 0 : index
    %c0_187 = arith.constant 0 : index
    %465 = vector.load %arg16[%c1_185, %c0_186, %c0_187] : memref<2x1x32xf32, #tpu.memory_space<vmem>>, vector<1x1x32xf32>
    %466 = vector.shape_cast %465 : vector<1x1x32xf32> to vector<1x32xf32>
    %467 = vector.broadcast %466 : vector<1x32xf32> to vector<16x32xf32>
    %468 = arith.addf %464, %467 : vector<16x32xf32>
    %c0_188 = arith.constant 0 : index
    %c0_189 = arith.constant 0 : index
    %469 = vector.load %arg17[%c0_188, %c0_189] : memref<1x32xf32, #tpu.memory_space<vmem>>, vector<1x32xf32>
    %c0_190 = arith.constant 0 : index
    %c0_191 = arith.constant 0 : index
    %470 = vector.load %arg18[%c0_190, %c0_191] : memref<1x32xf32, #tpu.memory_space<vmem>>, vector<1x32xf32>
    %cst_192 = arith.constant dense<0.000000e+00> : vector<16xf32>
    %471 = vector.multi_reduction <add>, %468, %cst_192 [1] : vector<16x32xf32> to vector<16xf32>
    %472 = vector.shape_cast %471 : vector<16xf32> to vector<16x1xf32>
    %cst_193 = arith.constant 3.200000e+01 : f32
    %473 = vector.broadcast %cst_193 : f32 to vector<16x1xf32>
    %474 = arith.divf %472, %473 : vector<16x1xf32>
    %475 = vector.broadcast %474 : vector<16x1xf32> to vector<16x32xf32>
    %476 = arith.subf %468, %475 : vector<16x32xf32>
    %477 = arith.mulf %476, %476 : vector<16x32xf32>
    %cst_194 = arith.constant dense<0.000000e+00> : vector<16xf32>
    %478 = vector.multi_reduction <add>, %477, %cst_194 [1] : vector<16x32xf32> to vector<16xf32>
    %479 = vector.shape_cast %478 : vector<16xf32> to vector<16x1xf32>
    %cst_195 = arith.constant 3.200000e+01 : f32
    %480 = vector.broadcast %cst_195 : f32 to vector<16x1xf32>
    %481 = arith.divf %479, %480 : vector<16x1xf32>
    %482 = vector.broadcast %474 : vector<16x1xf32> to vector<16x32xf32>
    %483 = arith.subf %468, %482 : vector<16x32xf32>
    %cst_196 = arith.constant 9.99999974E-6 : f32
    %484 = vector.broadcast %cst_196 : f32 to vector<16x1xf32>
    %485 = arith.addf %481, %484 : vector<16x1xf32>
    %486 = math.rsqrt %485 : vector<16x1xf32>
    %487 = vector.broadcast %486 : vector<16x1xf32> to vector<16x32xf32>
    %488 = arith.mulf %483, %487 : vector<16x32xf32>
    %489 = vector.broadcast %469 : vector<1x32xf32> to vector<16x32xf32>
    %490 = arith.mulf %488, %489 : vector<16x32xf32>
    %491 = vector.broadcast %470 : vector<1x32xf32> to vector<16x32xf32>
    %492 = arith.addf %490, %491 : vector<16x32xf32>
    %493 = arith.truncf %492 : vector<16x32xf32> to vector<16x32xbf16>
    %c0_197 = arith.constant 0 : index
    %c0_198 = arith.constant 0 : index
    %494 = vector.load %arg19[%c0_197, %c0_198] : memref<32x128xbf16, #tpu.memory_space<vmem>>, vector<32x128xbf16>
    %cst_199 = arith.constant dense<0.000000e+00> : vector<16x128xf32>
    %495 = tpu.matmul %493, %494, %cst_199 {dimension_numbers = #tpu.dot_dimension_numbers<[1], [0], [0], [1], [0, 0, 1, 1], [], []>} : vector<16x32xbf16>, vector<32x128xbf16>, vector<16x128xf32> -> vector<16x128xf32>
    %c0_200 = arith.constant 0 : index
    %c0_201 = arith.constant 0 : index
    %496 = vector.load %arg20[%c0_200, %c0_201] : memref<1x128xf32, #tpu.memory_space<vmem>>, vector<1x128xf32>
    %497 = vector.broadcast %496 : vector<1x128xf32> to vector<16x128xf32>
    %498 = arith.addf %495, %497 : vector<16x128xf32>
    %c0_202 = arith.constant 0 : index
    %c0_203 = arith.constant 0 : index
    %c0_204 = arith.constant 0 : index
    %499 = vector.load %arg21[%c0_202, %c0_203, %c0_204] : memref<1x16x128xf32, #tpu.memory_space<vmem>>, vector<1x16x128xf32>
    %500 = vector.shape_cast %499 : vector<1x16x128xf32> to vector<16x128xf32>
    %501 = vector.shape_cast %498 : vector<16x128xf32> to vector<1x16x128xf32>
    tpu.vector_store %arg21[%c0_202, %c0_203, %c0_204], %501 {strides = array<i32>} : memref<1x16x128xf32, #tpu.memory_space<vmem>>, vector<1x16x128xf32>,
    return
  }
  func.func @transform_0(%arg0: i32) -> (i32, i32) {
    %c0_i32 = arith.constant 0 : i32
    %c0_i32_0 = arith.constant 0 : i32
    %c0_i32_1 = arith.constant 0 : i32
    return %c0_i32, %c0_i32_0 : i32, i32
  }
  func.func @transform_1(%arg0: i32) -> (i32, i32, i32) {
    %c0_i32 = arith.constant 0 : i32
    %c0_i32_0 = arith.constant 0 : i32
    %c0_i32_1 = arith.constant 0 : i32
    %c0_i32_2 = arith.constant 0 : i32
    return %c0_i32, %c0_i32_0, %c0_i32_1 : i32, i32, i32
  }
  func.func @transform_2(%arg0: i32) -> (i32, i32) {
    %c0_i32 = arith.constant 0 : i32
    %c0_i32_0 = arith.constant 0 : i32
    %c0_i32_1 = arith.constant 0 : i32
    return %c0_i32, %c0_i32_0 : i32, i32
  }
  func.func @transform_3(%arg0: i32) -> (i32, i32) {
    %c0_i32 = arith.constant 0 : i32
    %c0_i32_0 = arith.constant 0 : i32
    %c0_i32_1 = arith.constant 0 : i32
    return %c0_i32, %c0_i32_0 : i32, i32
  }
  func.func @transform_4(%arg0: i32) -> (i32, i32) {
    %c0_i32 = arith.constant 0 : i32
    %c0_i32_0 = arith.constant 0 : i32
    %c0_i32_1 = arith.constant 0 : i32
    return %c0_i32, %c0_i32_0 : i32, i32
  }
  func.func @transform_5(%arg0: i32) -> (i32, i32, i32) {
    %c0_i32 = arith.constant 0 : i32
    %c0_i32_0 = arith.constant 0 : i32
    %c0_i32_1 = arith.constant 0 : i32
    %c0_i32_2 = arith.constant 0 : i32
    return %c0_i32, %c0_i32_0, %c0_i32_1 : i32, i32, i32
  }
  func.func @transform_6(%arg0: i32) -> (i32, i32, i32) {
    %c0_i32 = arith.constant 0 : i32
    %c0_i32_0 = arith.constant 0 : i32
    %c0_i32_1 = arith.constant 0 : i32
    %c0_i32_2 = arith.constant 0 : i32
    return %c0_i32, %c0_i32_0, %c0_i32_1 : i32, i32, i32
  }
  func.func @transform_7(%arg0: i32) -> (i32, i32, i32) {
    %c0_i32 = arith.constant 0 : i32
    %c0_i32_0 = arith.constant 0 : i32
    %c0_i32_1 = arith.constant 0 : i32
    %c0_i32_2 = arith.constant 0 : i32
    return %c0_i32, %c0_i32_0, %c0_i32_1 : i32, i32, i32
  }
  func.func @transform_8(%arg0: i32) -> (i32, i32, i32) {
    %c0_i32 = arith.constant 0 : i32
    %c0_i32_0 = arith.constant 0 : i32
    %c0_i32_1 = arith.constant 0 : i32
    %c0_i32_2 = arith.constant 0 : i32
    return %c0_i32, %c0_i32_0, %c0_i32_1 : i32, i32, i32
  }
  func.func @transform_9(%arg0: i32) -> (i32, i32, i32) {
    %c0_i32 = arith.constant 0 : i32
    %c0_i32_0 = arith.constant 0 : i32
    %c0_i32_1 = arith.constant 0 : i32
    %c0_i32_2 = arith.constant 0 : i32
    return %c0_i32, %c0_i32_0, %c0_i32_1 : i32, i32, i32
  }
  func.func @transform_10(%arg0: i32) -> (i32, i32, i32) {
    %c0_i32 = arith.constant 0 : i32
    %c0_i32_0 = arith.constant 0 : i32
    %c0_i32_1 = arith.constant 0 : i32
    %c0_i32_2 = arith.constant 0 : i32
    return %c0_i32, %c0_i32_0, %c0_i32_1 : i32, i32, i32
  }
  func.func @transform_11(%arg0: i32) -> (i32, i32, i32) {
    %c0_i32 = arith.constant 0 : i32
    %c0_i32_0 = arith.constant 0 : i32
    %c0_i32_1 = arith.constant 0 : i32
    %c0_i32_2 = arith.constant 0 : i32
    return %c0_i32, %c0_i32_0, %c0_i32_1 : i32, i32, i32
  }
  func.func @transform_12(%arg0: i32) -> (i32, i32, i32) {
    %c0_i32 = arith.constant 0 : i32
    %c0_i32_0 = arith.constant 0 : i32
    %c0_i32_1 = arith.constant 0 : i32
    %c0_i32_2 = arith.constant 0 : i32
    return %c0_i32, %c0_i32_0, %c0_i32_1 : i32, i32, i32
  }
  func.func @transform_13(%arg0: i32) -> (i32, i32, i32) {
    %c0_i32 = arith.constant 0 : i32
    %c0_i32_0 = arith.constant 0 : i32
    %c0_i32_1 = arith.constant 0 : i32
    %c0_i32_2 = arith.constant 0 : i32
    return %c0_i32, %c0_i32_0, %c0_i32_1 : i32, i32, i32
  }
  func.func @transform_14(%arg0: i32) -> (i32, i32, i32) {
    %c0_i32 = arith.constant 0 : i32
    %c0_i32_0 = arith.constant 0 : i32
    %c0_i32_1 = arith.constant 0 : i32
    %c0_i32_2 = arith.constant 0 : i32
    return %c0_i32, %c0_i32_0, %c0_i32_1 : i32, i32, i32
  }
  func.func @transform_15(%arg0: i32) -> (i32, i32, i32) {
    %c0_i32 = arith.constant 0 : i32
    %c0_i32_0 = arith.constant 0 : i32
    %c0_i32_1 = arith.constant 0 : i32
    %c0_i32_2 = arith.constant 0 : i32
    return %c0_i32, %c0_i32_0, %c0_i32_1 : i32, i32, i32
  }
  func.func @transform_16(%arg0: i32) -> (i32, i32) {
    %c0_i32 = arith.constant 0 : i32
    %c0_i32_0 = arith.constant 0 : i32
    %c0_i32_1 = arith.constant 0 : i32
    return %c0_i32, %c0_i32_0 : i32, i32
  }
  func.func @transform_17(%arg0: i32) -> (i32, i32) {
    %c0_i32 = arith.constant 0 : i32
    %c0_i32_0 = arith.constant 0 : i32
    %c0_i32_1 = arith.constant 0 : i32
    return %c0_i32, %c0_i32_0 : i32, i32
  }
  func.func @transform_18(%arg0: i32) -> (i32, i32) {
    %c0_i32 = arith.constant 0 : i32
    %c0_i32_0 = arith.constant 0 : i32
    %c0_i32_1 = arith.constant 0 : i32
    return %c0_i32, %c0_i32_0 : i32, i32
  }
  func.func @transform_19(%arg0: i32) -> (i32, i32) {
    %c0_i32 = arith.constant 0 : i32
    %c0_i32_0 = arith.constant 0 : i32
    %c0_i32_1 = arith.constant 0 : i32
    return %c0_i32, %c0_i32_0 : i32, i32
  }
  func.func @transform_20(%arg0: i32) -> (i32, i32, i32) {
    %c0_i32 = arith.constant 0 : i32
    %c0_i32_0 = arith.constant 0 : i32
    %c0_i32_1 = arith.constant 0 : i32
    return %arg0, %c0_i32, %c0_i32_0 : i32, i32, i32
  }
}

</mosaic_0001>

<llo_original>
// kernel: xtransformer_forward.1
$region0: #{xtransformer_forward.1}
  #allocation0 [shape = 'u32[]', space=smem, size = 0x4, offset = 0x4, fixed_abs, tag = 'smem constant byte address 0x4 - core index']
  #allocation1 [shape = 'u32[144,128]{1,0:T(1,128)}', space=vmem, size = 0x12000, scoped, tag = 'internal scratch']
  %s0 = inlined_call_operand.vmem [shape: f32[2,8], index: 0, kind: input, shape index: {}]
  %s1 = inlined_call_operand.vmem [shape: f32[8,16,32], index: 1, kind: input, shape index: {}]
  %s2 = inlined_call_operand.vmem [shape: f32[16,32], index: 2, kind: input, shape index: {}]
  %s3 = inlined_call_operand.vmem [shape: bf16[32,32], index: 3, kind: input, shape index: {}]
  %s4 = inlined_call_operand.vmem [shape: f32[16,32], index: 4, kind: input, shape index: {}]
  %s5 = inlined_call_operand.vmem [shape: f32[2,1,32], index: 5, kind: input, shape index: {}]
  %s6 = inlined_call_operand.vmem [shape: f32[2,1,32], index: 6, kind: input, shape index: {}]
  %s7 = inlined_call_operand.vmem [shape: bf16[2,32,1536], index: 7, kind: input, shape index: {}]
  %s8 = inlined_call_operand.vmem [shape: bf16[2,512,32], index: 8, kind: input, shape index: {}]
  %s9 = inlined_call_operand.vmem [shape: f32[2,1,32], index: 9, kind: input, shape index: {}]
  %s10 = inlined_call_operand.vmem [shape: f32[2,1,32], index: 10, kind: input, shape index: {}]
  %s11 = inlined_call_operand.vmem [shape: f32[2,1,32], index: 11, kind: input, shape index: {}]
  %s12 = inlined_call_operand.vmem [shape: bf16[2,32,128], index: 12, kind: input, shape index: {}]
  %s13 = inlined_call_operand.vmem [shape: f32[2,1,128], index: 13, kind: input, shape index: {}]
  %s14 = inlined_call_operand.vmem [shape: bf16[2,128,32], index: 14, kind: input, shape index: {}]
  %s15 = inlined_call_operand.vmem [shape: f32[2,1,32], index: 15, kind: input, shape index: {}]
  %s16 = inlined_call_operand.vmem [shape: f32[1,32], index: 16, kind: input, shape index: {}]
  %s17 = inlined_call_operand.vmem [shape: f32[1,32], index: 17, kind: input, shape index: {}]
  %s18 = inlined_call_operand.vmem [shape: bf16[32,128], index: 18, kind: input, shape index: {}]
  %s19 = inlined_call_operand.vmem [shape: f32[1,128], index: 19, kind: input, shape index: {}]
  %s20 = inlined_call_operand.vmem [shape: f32[2,16,128], index: 20, kind: output, shape index: {}]
  %s21 = sld [smem:[#allocation0]]
  $region117: #{xtransformer_forward.1} parent=0
    _
  %s23 = ssub.s32 1, %s21
  %s24 = scalar_select 0, %s23, %s21
  $region1: #{xtransformer_forward.1} parent=0
    #allocation2 [shape = 'u8[1024]{0}', space=smem, size = 0x400, scoped, tag = 'input window, operand 0, single buffered']
    #allocation3 [shape = 's32[2]{0}', space=sflag, size = 0x8, scoped, tag = 'scoped memory for xtransformer_forward.1']
    %25 = vsyncpa [#allocation3], 0
    loop: start=0, step=1, limit=4
    $region2: #{xtransformer_forward.1} parent=1 // loop_pre_header
      _
    $region3: #{xtransformer_forward.1} parent=1 // loop_header
      %s27 = sphi 0, %s31
      %p28 = scmp.ge.s32.totalorder %s27, 4
      %s35 = sphi 0, %s35
      %s37 = sphi 0, %s35
      %s38 = sphi 0, %s37
      %s52 = sphi 0, %s38
      %s56 = sphi 0, %s56
      %s58 = sphi 0, %s56
      %s59 = sphi 0, %s58
      %s73 = sphi 0, %s59
      %s77 = sphi 0, %s77
      %s79 = sphi 0, %s77
      %s80 = sphi 0, %s79
      %s94 = sphi 0, %s80
      %s98 = sphi 0, %s98
      %s100 = sphi 0, %s98
      %s101 = sphi 0, %s100
      %s115 = sphi 0, %s101
      %s119 = sphi 0, %s119
      %s121 = sphi 0, %s119
      %s122 = sphi 0, %s121
      %s136 = sphi 0, %s122
      %s140 = sphi 0, %s140
      %s142 = sphi 0, %s140
      %s143 = sphi 0, %s142
      %s157 = sphi 0, %s143
      %s161 = sphi 0, %s161
      %s163 = sphi 0, %s161
      %s164 = sphi 0, %s163
      %s178 = sphi 0, %s164
      %s182 = sphi 0, %s182
      %s184 = sphi 0, %s182
      %s185 = sphi 0, %s184
      %s199 = sphi 0, %s185
      %s203 = sphi 0, %s203
      %s205 = sphi 0, %s203
      %s206 = sphi 0, %s205
      %s220 = sphi 0, %s206
      %s224 = sphi 0, %s224
      %s226 = sphi 0, %s224
      %s227 = sphi 0, %s226
      %s241 = sphi 0, %s227
      %s245 = sphi 0, %s245
      %s247 = sphi 0, %s245
      %s248 = sphi 0, %s247
      %s262 = sphi 0, %s248
      %s266 = sphi 0, %s266
      %s268 = sphi 0, %s266
      %s269 = sphi 0, %s268
      %s283 = sphi 0, %s269
      %s287 = sphi 0, %s287
      %s289 = sphi 0, %s287
      %s290 = sphi 0, %s289
      %s304 = sphi 0, %s290
      %s308 = sphi 0, %s308
      %s310 = sphi 0, %s308
      %s311 = sphi 0, %s310
      %s325 = sphi 0, %s311
      %s329 = sphi 0, %s329
      %s331 = sphi 0, %s329
      %s332 = sphi 0, %s331
      %s346 = sphi 0, %s332
      %s350 = sphi 0, %s350
      %s352 = sphi 0, %s350
      %s353 = sphi 0, %s352
      %s367 = sphi 0, %s353
      %s371 = sphi 0, %s371
      %s373 = sphi 0, %s371
      %s374 = sphi 0, %s373
      %s388 = sphi 0, %s374
      %s392 = sphi 0, %s392
      %s394 = sphi 0, %s392
      %s395 = sphi 0, %s394
      %s409 = sphi 0, %s395
      %s413 = sphi 0, %s413
      %s415 = sphi 0, %s413
      %s416 = sphi 0, %s415
      %s430 = sphi 0, %s416
      %s434 = sphi 0, %s434
      %s436 = sphi 0, %s434
      %s437 = sphi 0, %s436
      %s451 = sphi 0, %s437
      %s457 = sphi 0, %s459
      %s460 = sphi 0, %s457
      %s461 = sphi 0, %s460
      %s477 = sphi 0, %s461
    $region4: #{xtransformer_forward.1} parent=1 // loop_header_branch
      %30 = sbr.rel (%p28) target = $region8
    $region5: #{xtransformer_forward.1} parent=1 // loop_body
      %s32 = ssub.s32 %s27, 1
      %s33 = ssub.s32 %s27, 2
      %s34 = sadd.s32 %s27, 1
      %s36 = sadd.s32 %s35, 1
      %p39 = scmp.eq.s32.totalorder %s27, 1
      %p40 = scmp.ne.s32.totalorder %s35, %s37
      %p41 = scmp.eq.s32.totalorder %s27, 0
      %p42 = por %p40, %p41
      %p43 = scmp.ne.s32.totalorder %s35, %s37
      %p44 = scmp.eq.s32.totalorder %s32, 1
      %p45 = por %p43, %p44
      %p46 = scmp.ne.s32.totalorder %s37, %s38
      %p47 = scmp.eq.s32.totalorder %s32, 0
      %p48 = por %p46, %p47
      %p49 = scmp.ne.s32.totalorder %s37, %s38
      %p50 = scmp.eq.s32.totalorder %s33, 1
      %p51 = por %p49, %p50
      %p53 = scmp.ne.s32.totalorder %s38, %s52
      %p54 = scmp.eq.s32.totalorder %s33, 0
      %p55 = por %p53, %p54
      %s57 = sadd.s32 %s56, 1
      %p60 = scmp.eq.s32.totalorder %s27, 1
      %p61 = scmp.ne.s32.totalorder %s56, %s58
      %p62 = scmp.eq.s32.totalorder %s27, 0
      %p63 = por %p61, %p62
      %p64 = scmp.ne.s32.totalorder %s56, %s58
      %p65 = scmp.eq.s32.totalorder %s32, 1
      %p66 = por %p64, %p65
      %p67 = scmp.ne.s32.totalorder %s58, %s59
      %p68 = scmp.eq.s32.totalorder %s32, 0
      %p69 = por %p67, %p68
      %p70 = scmp.ne.s32.totalorder %s58, %s59
      %p71 = scmp.eq.s32.totalorder %s33, 1
      %p72 = por %p70, %p71
      %p74 = scmp.ne.s32.totalorder %s59, %s73
      %p75 = scmp.eq.s32.totalorder %s33, 0
      %p76 = por %p74, %p75
      %s78 = sadd.s32 %s77, 1
      %p81 = scmp.eq.s32.totalorder %s27, 1
      %p82 = scmp.ne.s32.totalorder %s77, %s79
      %p83 = scmp.eq.s32.totalorder %s27, 0
      %p84 = por %p82, %p83
      %p85 = scmp.ne.s32.totalorder %s77, %s79
      %p86 = scmp.eq.s32.totalorder %s32, 1
      %p87 = por %p85, %p86
      %p88 = scmp.ne.s32.totalorder %s79, %s80
      %p89 = scmp.eq.s32.totalorder %s32, 0
      %p90 = por %p88, %p89
      %p91 = scmp.ne.s32.totalorder %s79, %s80
      %p92 = scmp.eq.s32.totalorder %s33, 1
      %p93 = por %p91, %p92
      %p95 = scmp.ne.s32.totalorder %s80, %s94
      %p96 = scmp.eq.s32.totalorder %s33, 0
      %p97 = por %p95, %p96
      %s99 = sadd.s32 %s98, 1
      %p102 = scmp.eq.s32.totalorder %s27, 1
      %p103 = scmp.ne.s32.totalorder %s98, %s100
      %p104 = scmp.eq.s32.totalorder %s27, 0
      %p105 = por %p103, %p104
      %p106 = scmp.ne.s32.totalorder %s98, %s100
      %p107 = scmp.eq.s32.totalorder %s32, 1
      %p108 = por %p106, %p107
      %p109 = scmp.ne.s32.totalorder %s100, %s101
      %p110 = scmp.eq.s32.totalorder %s32, 0
      %p111 = por %p109, %p110
      %p112 = scmp.ne.s32.totalorder %s100, %s101
      %p113 = scmp.eq.s32.totalorder %s33, 1
      %p114 = por %p112, %p113
      %p116 = scmp.ne.s32.totalorder %s101, %s115
      %p117 = scmp.eq.s32.totalorder %s33, 0
      %p118 = por %p116, %p117
      %s120 = sadd.s32 %s119, 1
      %p123 = scmp.eq.s32.totalorder %s27, 1
      %p124 = scmp.ne.s32.totalorder %s119, %s121
      %p125 = scmp.eq.s32.totalorder %s27, 0
      %p126 = por %p124, %p125
      %p127 = scmp.ne.s32.totalorder %s119, %s121
      %p128 = scmp.eq.s32.totalorder %s32, 1
      %p129 = por %p127, %p128
      %p130 = scmp.ne.s32.totalorder %s121, %s122
      %p131 = scmp.eq.s32.totalorder %s32, 0
      %p132 = por %p130, %p131
      %p133 = scmp.ne.s32.totalorder %s121, %s122
      %p134 = scmp.eq.s32.totalorder %s33, 1
      %p135 = por %p133, %p134
      %p137 = scmp.ne.s32.totalorder %s122, %s136
      %p138 = scmp.eq.s32.totalorder %s33, 0
      %p139 = por %p137, %p138
      %s141 = sadd.s32 %s140, 1
      %p144 = scmp.eq.s32.totalorder %s27, 1
      %p145 = scmp.ne.s32.totalorder %s140, %s142
      %p146 = scmp.eq.s32.totalorder %s27, 0
      %p147 = por %p145, %p146
      %p148 = scmp.ne.s32.totalorder %s140, %s142
      %p149 = scmp.eq.s32.totalorder %s32, 1
      %p150 = por %p148, %p149
      %p151 = scmp.ne.s32.totalorder %s142, %s143
      %p152 = scmp.eq.s32.totalorder %s32, 0
      %p153 = por %p151, %p152
      %p154 = scmp.ne.s32.totalorder %s142, %s143
      %p155 = scmp.eq.s32.totalorder %s33, 1
      %p156 = por %p154, %p155
      %p158 = scmp.ne.s32.totalorder %s143, %s157
      %p159 = scmp.eq.s32.totalorder %s33, 0
      %p160 = por %p158, %p159
      %s162 = sadd.s32 %s161, 1
      %p165 = scmp.eq.s32.totalorder %s27, 1
      %p166 = scmp.ne.s32.totalorder %s161, %s163
      %p167 = scmp.eq.s32.totalorder %s27, 0
      %p168 = por %p166, %p167
      %p169 = scmp.ne.s32.totalorder %s161, %s163
      %p170 = scmp.eq.s32.totalorder %s32, 1
      %p171 = por %p169, %p170
      %p172 = scmp.ne.s32.totalorder %s163, %s164
      %p173 = scmp.eq.s32.totalorder %s32, 0
      %p174 = por %p172, %p173
      %p175 = scmp.ne.s32.totalorder %s163, %s164
      %p176 = scmp.eq.s32.totalorder %s33, 1
      %p177 = por %p175, %p176
      %p179 = scmp.ne.s32.totalorder %s164, %s178
      %p180 = scmp.eq.s32.totalorder %s33, 0
      %p181 = por %p179, %p180
      %s183 = sadd.s32 %s182, 1
      %p186 = scmp.eq.s32.totalorder %s27, 1
      %p187 = scmp.ne.s32.totalorder %s182, %s184
      %p188 = scmp.eq.s32.totalorder %s27, 0
      %p189 = por %p187, %p188
      %p190 = scmp.ne.s32.totalorder %s182, %s184
      %p191 = scmp.eq.s32.totalorder %s32, 1
      %p192 = por %p190, %p191
      %p193 = scmp.ne.s32.totalorder %s184, %s185
      %p194 = scmp.eq.s32.totalorder %s32, 0
      %p195 = por %p193, %p194
      %p196 = scmp.ne.s32.totalorder %s184, %s185
      %p197 = scmp.eq.s32.totalorder %s33, 1
      %p198 = por %p196, %p197
      %p200 = scmp.ne.s32.totalorder %s185, %s199
      %p201 = scmp.eq.s32.totalorder %s33, 0
      %p202 = por %p200, %p201
      %s204 = sadd.s32 %s203, 1
      %p207 = scmp.eq.s32.totalorder %s27, 1
      %p208 = scmp.ne.s32.totalorder %s203, %s205
      %p209 = scmp.eq.s32.totalorder %s27, 0
      %p210 = por %p208, %p209
      %p211 = scmp.ne.s32.totalorder %s203, %s205
      %p212 = scmp.eq.s32.totalorder %s32, 1
      %p213 = por %p211, %p212
      %p214 = scmp.ne.s32.totalorder %s205, %s206
      %p215 = scmp.eq.s32.totalorder %s32, 0
      %p216 = por %p214, %p215
      %p217 = scmp.ne.s32.totalorder %s205, %s206
      %p218 = scmp.eq.s32.totalorder %s33, 1
      %p219 = por %p217, %p218
      %p221 = scmp.ne.s32.totalorder %s206, %s220
      %p222 = scmp.eq.s32.totalorder %s33, 0
      %p223 = por %p221, %p222
      %s225 = sadd.s32 %s224, 1
      %p228 = scmp.eq.s32.totalorder %s27, 1
      %p229 = scmp.ne.s32.totalorder %s224, %s226
      %p230 = scmp.eq.s32.totalorder %s27, 0
      %p231 = por %p229, %p230
      %p232 = scmp.ne.s32.totalorder %s224, %s226
      %p233 = scmp.eq.s32.totalorder %s32, 1
      %p234 = por %p232, %p233
      %p235 = scmp.ne.s32.totalorder %s226, %s227
      %p236 = scmp.eq.s32.totalorder %s32, 0
      %p237 = por %p235, %p236
      %p238 = scmp.ne.s32.totalorder %s226, %s227
      %p239 = scmp.eq.s32.totalorder %s33, 1
      %p240 = por %p238, %p239
      %p242 = scmp.ne.s32.totalorder %s227, %s241
      %p243 = scmp.eq.s32.totalorder %s33, 0
      %p244 = por %p242, %p243
      %s246 = sadd.s32 %s245, 1
      %p249 = scmp.eq.s32.totalorder %s27, 1
      %p250 = scmp.ne.s32.totalorder %s245, %s247
      %p251 = scmp.eq.s32.totalorder %s27, 0
      %p252 = por %p250, %p251
      %p253 = scmp.ne.s32.totalorder %s245, %s247
      %p254 = scmp.eq.s32.totalorder %s32, 1
      %p255 = por %p253, %p254
      %p256 = scmp.ne.s32.totalorder %s247, %s248
      %p257 = scmp.eq.s32.totalorder %s32, 0
      %p258 = por %p256, %p257
      %p259 = scmp.ne.s32.totalorder %s247, %s248
      %p260 = scmp.eq.s32.totalorder %s33, 1
      %p261 = por %p259, %p260
      %p263 = scmp.ne.s32.totalorder %s248, %s262
      %p264 = scmp.eq.s32.totalorder %s33, 0
      %p265 = por %p263, %p264
      %s267 = sadd.s32 %s266, 1
      %p270 = scmp.eq.s32.totalorder %s27, 1
      %p271 = scmp.ne.s32.totalorder %s266, %s268
      %p272 = scmp.eq.s32.totalorder %s27, 0
      %p273 = por %p271, %p272
      %p274 = scmp.ne.s32.totalorder %s266, %s268
      %p275 = scmp.eq.s32.totalorder %s32, 1
      %p276 = por %p274, %p275
      %p277 = scmp.ne.s32.totalorder %s268, %s269
      %p278 = scmp.eq.s32.totalorder %s32, 0
      %p279 = por %p277, %p278
      %p280 = scmp.ne.s32.totalorder %s268, %s269
      %p281 = scmp.eq.s32.totalorder %s33, 1
      %p282 = por %p280, %p281
      %p284 = scmp.ne.s32.totalorder %s269, %s283
      %p285 = scmp.eq.s32.totalorder %s33, 0
      %p286 = por %p284, %p285
      %s288 = sadd.s32 %s287, 1
      %p291 = scmp.eq.s32.totalorder %s27, 1
      %p292 = scmp.ne.s32.totalorder %s287, %s289
      %p293 = scmp.eq.s32.totalorder %s27, 0
      %p294 = por %p292, %p293
      %p295 = scmp.ne.s32.totalorder %s287, %s289
      %p296 = scmp.eq.s32.totalorder %s32, 1
      %p297 = por %p295, %p296
      %p298 = scmp.ne.s32.totalorder %s289, %s290
      %p299 = scmp.eq.s32.totalorder %s32, 0
      %p300 = por %p298, %p299
      %p301 = scmp.ne.s32.totalorder %s289, %s290
      %p302 = scmp.eq.s32.totalorder %s33, 1
      %p303 = por %p301, %p302
      %p305 = scmp.ne.s32.totalorder %s290, %s304
      %p306 = scmp.eq.s32.totalorder %s33, 0
      %p307 = por %p305, %p306
      %s309 = sadd.s32 %s308, 1
      %p312 = scmp.eq.s32.totalorder %s27, 1
      %p313 = scmp.ne.s32.totalorder %s308, %s310
      %p314 = scmp.eq.s32.totalorder %s27, 0
      %p315 = por %p313, %p314
      %p316 = scmp.ne.s32.totalorder %s308, %s310
      %p317 = scmp.eq.s32.totalorder %s32, 1
      %p318 = por %p316, %p317
      %p319 = scmp.ne.s32.totalorder %s310, %s311
      %p320 = scmp.eq.s32.totalorder %s32, 0
      %p321 = por %p319, %p320
      %p322 = scmp.ne.s32.totalorder %s310, %s311
      %p323 = scmp.eq.s32.totalorder %s33, 1
      %p324 = por %p322, %p323
      %p326 = scmp.ne.s32.totalorder %s311, %s325
      %p327 = scmp.eq.s32.totalorder %s33, 0
      %p328 = por %p326, %p327
      %s330 = sadd.s32 %s329, 1
      %p333 = scmp.eq.s32.totalorder %s27, 1
      %p334 = scmp.ne.s32.totalorder %s329, %s331
      %p335 = scmp.eq.s32.totalorder %s27, 0
      %p336 = por %p334, %p335
      %p337 = scmp.ne.s32.totalorder %s329, %s331
      %p338 = scmp.eq.s32.totalorder %s32, 1
      %p339 = por %p337, %p338
      %p340 = scmp.ne.s32.totalorder %s331, %s332
      %p341 = scmp.eq.s32.totalorder %s32, 0
      %p342 = por %p340, %p341
      %p343 = scmp.ne.s32.totalorder %s331, %s332
      %p344 = scmp.eq.s32.totalorder %s33, 1
      %p345 = por %p343, %p344
      %p347 = scmp.ne.s32.totalorder %s332, %s346
      %p348 = scmp.eq.s32.totalorder %s33, 0
      %p349 = por %p347, %p348
      %s351 = sadd.s32 %s350, 1
      %p354 = scmp.eq.s32.totalorder %s27, 1
      %p355 = scmp.ne.s32.totalorder %s350, %s352
      %p356 = scmp.eq.s32.totalorder %s27, 0
      %p357 = por %p355, %p356
      %p358 = scmp.ne.s32.totalorder %s350, %s352
      %p359 = scmp.eq.s32.totalorder %s32, 1
      %p360 = por %p358, %p359
      %p361 = scmp.ne.s32.totalorder %s352, %s353
      %p362 = scmp.eq.s32.totalorder %s32, 0
      %p363 = por %p361, %p362
      %p364 = scmp.ne.s32.totalorder %s352, %s353
      %p365 = scmp.eq.s32.totalorder %s33, 1
      %p366 = por %p364, %p365
      %p368 = scmp.ne.s32.totalorder %s353, %s367
      %p369 = scmp.eq.s32.totalorder %s33, 0
      %p370 = por %p368, %p369
      %s372 = sadd.s32 %s371, 1
      %p375 = scmp.eq.s32.totalorder %s27, 1
      %p376 = scmp.ne.s32.totalorder %s371, %s373
      %p377 = scmp.eq.s32.totalorder %s27, 0
      %p378 = por %p376, %p377
      %p379 = scmp.ne.s32.totalorder %s371, %s373
      %p380 = scmp.eq.s32.totalorder %s32, 1
      %p381 = por %p379, %p380
      %p382 = scmp.ne.s32.totalorder %s373, %s374
      %p383 = scmp.eq.s32.totalorder %s32, 0
      %p384 = por %p382, %p383
      %p385 = scmp.ne.s32.totalorder %s373, %s374
      %p386 = scmp.eq.s32.totalorder %s33, 1
      %p387 = por %p385, %p386
      %p389 = scmp.ne.s32.totalorder %s374, %s388
      %p390 = scmp.eq.s32.totalorder %s33, 0
      %p391 = por %p389, %p390
      %s393 = sadd.s32 %s392, 1
      %p396 = scmp.eq.s32.totalorder %s27, 1
      %p397 = scmp.ne.s32.totalorder %s392, %s394
      %p398 = scmp.eq.s32.totalorder %s27, 0
      %p399 = por %p397, %p398
      %p400 = scmp.ne.s32.totalorder %s392, %s394
      %p401 = scmp.eq.s32.totalorder %s32, 1
      %p402 = por %p400, %p401
      %p403 = scmp.ne.s32.totalorder %s394, %s395
      %p404 = scmp.eq.s32.totalorder %s32, 0
      %p405 = por %p403, %p404
      %p406 = scmp.ne.s32.totalorder %s394, %s395
      %p407 = scmp.eq.s32.totalorder %s33, 1
      %p408 = por %p406, %p407
      %p410 = scmp.ne.s32.totalorder %s395, %s409
      %p411 = scmp.eq.s32.totalorder %s33, 0
      %p412 = por %p410, %p411
      %s414 = sadd.s32 %s413, 1
      %p417 = scmp.eq.s32.totalorder %s27, 1
      %p418 = scmp.ne.s32.totalorder %s413, %s415
      %p419 = scmp.eq.s32.totalorder %s27, 0
      %p420 = por %p418, %p419
      %p421 = scmp.ne.s32.totalorder %s413, %s415
      %p422 = scmp.eq.s32.totalorder %s32, 1
      %p423 = por %p421, %p422
      %p424 = scmp.ne.s32.totalorder %s415, %s416
      %p425 = scmp.eq.s32.totalorder %s32, 0
      %p426 = por %p424, %p425
      %p427 = scmp.ne.s32.totalorder %s415, %s416
      %p428 = scmp.eq.s32.totalorder %s33, 1
      %p429 = por %p427, %p428
      %p431 = scmp.ne.s32.totalorder %s416, %s430
      %p432 = scmp.eq.s32.totalorder %s33, 0
      %p433 = por %p431, %p432
      %s435 = sadd.s32 %s434, 1
      %p438 = scmp.eq.s32.totalorder %s27, 1
      %p439 = scmp.ne.s32.totalorder %s434, %s436
      %p440 = scmp.eq.s32.totalorder %s27, 0
      %p441 = por %p439, %p440
      %p442 = scmp.ne.s32.totalorder %s434, %s436
      %p443 = scmp.eq.s32.totalorder %s32, 1
      %p444 = por %p442, %p443
      %p445 = scmp.ne.s32.totalorder %s436, %s437
      %p446 = scmp.eq.s32.totalorder %s32, 0
      %p447 = por %p445, %p446
      %p448 = scmp.ne.s32.totalorder %s436, %s437
      %p449 = scmp.eq.s32.totalorder %s33, 1
      %p450 = por %p448, %p449
      %p452 = scmp.ne.s32.totalorder %s437, %s451
      %p453 = scmp.eq.s32.totalorder %s33, 0
      %p454 = por %p452, %p453
      %s455 = ssub.s32 %s27, %s34
      %p456 = scmp.eq.s32.totalorder %s455, 0
      %s458 = sadd.s32 %s457, 1
      %s459 = scalar_select %p456, %s457, %s458
      %p462 = pneg %p456
      %p463 = scmp.eq.s32.totalorder %s27, 1
      %p464 = por %p462, %p463
      %p465 = scmp.ne.s32.totalorder %s457, %s460
      %p466 = scmp.eq.s32.totalorder %s27, 0
      %p467 = por %p465, %p466
      %p468 = scmp.ne.s32.totalorder %s457, %s460
      %p469 = scmp.eq.s32.totalorder %s32, 1
      %p470 = por %p468, %p469
      %p471 = scmp.ne.s32.totalorder %s460, %s461
      %p472 = scmp.eq.s32.totalorder %s32, 0
      %p473 = por %p471, %p472
      %p474 = scmp.ne.s32.totalorder %s460, %s461
      %p475 = scmp.eq.s32.totalorder %s33, 1
      %p476 = por %p474, %p475
      %p478 = scmp.ne.s32.totalorder %s461, %s477
      %p479 = scmp.eq.s32.totalorder %s33, 0
      %p480 = por %p478, %p479
      %p481 = scmp.le.s32.totalorder 1, %s27
      %p482 = scmp.lt.s32.totalorder %s27, 3
      %p483 = pnand %p481, %p482
      %p484 = pneg %p483
      // Predicated region
      $region9: #{xtransformer_forward.1} parent=5 // pred_check
        _
      $region10: #{xtransformer_forward.1} parent=5 // pred_check_branch
        %486 = sbr.rel (%p483) target = $region12
      $region11: #{xtransformer_forward.1} parent=5 // pred_region
        %s487 = ssub.s32 %s27, 1
        // Predicated region
        $region13: #{xtransformer_forward.1} parent=11 // pred_check
          %p488 = pneg %p48
        $region14: #{xtransformer_forward.1} parent=11 // pred_check_branch
          %490 = sbr.rel (%p488) target = $region16
        $region15: #{xtransformer_forward.1} parent=11 // pred_region
          %s492 = ssub.s32 32, 32
          %493 = vsyncadd [#allocation3], %s492
          %s495 = sshll.u32 %s0, 4
          %s496 = int_to_ptr.vmem [resolvable:$true] %s495
          %498 = dma.vmem_to_smem %s496, 32, [#allocation2], [#allocation3]
        $region16: #{xtransformer_forward.1} parent=11 // pred_fallthru
          _
        // Predicated region
        $region17: #{xtransformer_forward.1} parent=11 // pred_check
          %p499 = pneg %p69
        $region18: #{xtransformer_forward.1} parent=11 // pred_check_branch
          %501 = sbr.rel (%p499) target = $region20
        $region19: #{xtransformer_forward.1} parent=11 // pred_region
          _
        $region20: #{xtransformer_forward.1} parent=11 // pred_fallthru
          _
        // Predicated region
        $region21: #{xtransformer_forward.1} parent=11 // pred_check
          %p502 = pneg %p90
        $region22: #{xtransformer_forward.1} parent=11 // pred_check_branch
          %504 = sbr.rel (%p502) target = $region24
        $region23: #{xtransformer_forward.1} parent=11 // pred_region
          _
        $region24: #{xtransformer_forward.1} parent=11 // pred_fallthru
          _
        // Predicated region
        $region25: #{xtransformer_forward.1} parent=11 // pred_check
          %p505 = pneg %p111
        $region26: #{xtransformer_forward.1} parent=11 // pred_check_branch
          %507 = sbr.rel (%p505) target = $region28
        $region27: #{xtransformer_forward.1} parent=11 // pred_region
          _
        $region28: #{xtransformer_forward.1} parent=11 // pred_fallthru
          _
        // Predicated region
        $region29: #{xtransformer_forward.1} parent=11 // pred_check
          %p508 = pneg %p132
        $region30: #{xtransformer_forward.1} parent=11 // pred_check_branch
          %510 = sbr.rel (%p508) target = $region32
        $region31: #{xtransformer_forward.1} parent=11 // pred_region
          _
        $region32: #{xtransformer_forward.1} parent=11 // pred_fallthru
          _
        // Predicated region
        $region33: #{xtransformer_forward.1} parent=11 // pred_check
          %p511 = pneg %p153
        $region34: #{xtransformer_forward.1} parent=11 // pred_check_branch
          %513 = sbr.rel (%p511) target = $region36
        $region35: #{xtransformer_forward.1} parent=11 // pred_region
          _
        $region36: #{xtransformer_forward.1} parent=11 // pred_fallthru
          _
        // Predicated region
        $region37: #{xtransformer_forward.1} parent=11 // pred_check
          %p514 = pneg %p174
        $region38: #{xtransformer_forward.1} parent=11 // pred_check_branch
          %516 = sbr.rel (%p514) target = $region40
        $region39: #{xtransformer_forward.1} parent=11 // pred_region
          _
        $region40: #{xtransformer_forward.1} parent=11 // pred_fallthru
          _
        // Predicated region
        $region41: #{xtransformer_forward.1} parent=11 // pred_check
          %p517 = pneg %p195
        $region42: #{xtransformer_forward.1} parent=11 // pred_check_branch
          %519 = sbr.rel (%p517) target = $region44
        $region43: #{xtransformer_forward.1} parent=11 // pred_region
          _
        $region44: #{xtransformer_forward.1} parent=11 // pred_fallthru
          _
        // Predicated region
        $region45: #{xtransformer_forward.1} parent=11 // pred_check
          %p520 = pneg %p216
        $region46: #{xtransformer_forward.1} parent=11 // pred_check_branch
          %522 = sbr.rel (%p520) target = $region48
        $region47: #{xtransformer_forward.1} parent=11 // pred_region
          _
        $region48: #{xtransformer_forward.1} parent=11 // pred_fallthru
          _
        // Predicated region
        $region49: #{xtransformer_forward.1} parent=11 // pred_check
          %p523 = pneg %p237
        $region50: #{xtransformer_forward.1} parent=11 // pred_check_branch
          %525 = sbr.rel (%p523) target = $region52
        $region51: #{xtransformer_forward.1} parent=11 // pred_region
          _
        $region52: #{xtransformer_forward.1} parent=11 // pred_fallthru
          _
        // Predicated region
        $region53: #{xtransformer_forward.1} parent=11 // pred_check
          %p526 = pneg %p258
        $region54: #{xtransformer_forward.1} parent=11 // pred_check_branch
          %528 = sbr.rel (%p526) target = $region56
        $region55: #{xtransformer_forward.1} parent=11 // pred_region
          _
        $region56: #{xtransformer_forward.1} parent=11 // pred_fallthru
          _
        // Predicated region
        $region57: #{xtransformer_forward.1} parent=11 // pred_check
          %p529 = pneg %p279
        $region58: #{xtransformer_forward.1} parent=11 // pred_check_branch
          %531 = sbr.rel (%p529) target = $region60
        $region59: #{xtransformer_forward.1} parent=11 // pred_region
          _
        $region60: #{xtransformer_forward.1} parent=11 // pred_fallthru
          _
        // Predicated region
        $region61: #{xtransformer_forward.1} parent=11 // pred_check
          %p532 = pneg %p300
        $region62: #{xtransformer_forward.1} parent=11 // pred_check_branch
          %534 = sbr.rel (%p532) target = $region64
        $region63: #{xtransformer_forward.1} parent=11 // pred_region
          _
        $region64: #{xtransformer_forward.1} parent=11 // pred_fallthru
          _
        // Predicated region
        $region65: #{xtransformer_forward.1} parent=11 // pred_check
          %p535 = pneg %p321
        $region66: #{xtransformer_forward.1} parent=11 // pred_check_branch
          %537 = sbr.rel (%p535) target = $region68
        $region67: #{xtransformer_forward.1} parent=11 // pred_region
          _
        $region68: #{xtransformer_forward.1} parent=11 // pred_fallthru
          _
        // Predicated region
        $region69: #{xtransformer_forward.1} parent=11 // pred_check
          %p538 = pneg %p342
        $region70: #{xtransformer_forward.1} parent=11 // pred_check_branch
          %540 = sbr.rel (%p538) target = $region72
        $region71: #{xtransformer_forward.1} parent=11 // pred_region
          _
        $region72: #{xtransformer_forward.1} parent=11 // pred_fallthru
          _
        // Predicated region
        $region73: #{xtransformer_forward.1} parent=11 // pred_check
          %p541 = pneg %p363
        $region74: #{xtransformer_forward.1} parent=11 // pred_check_branch
          %543 = sbr.rel (%p541) target = $region76
        $region75: #{xtransformer_forward.1} parent=11 // pred_region
          _
        $region76: #{xtransformer_forward.1} parent=11 // pred_fallthru
          _
        // Predicated region
        $region77: #{xtransformer_forward.1} parent=11 // pred_check
          %p544 = pneg %p384
        $region78: #{xtransformer_forward.1} parent=11 // pred_check_branch
          %546 = sbr.rel (%p544) target = $region80
        $region79: #{xtransformer_forward.1} parent=11 // pred_region
          _
        $region80: #{xtransformer_forward.1} parent=11 // pred_fallthru
          _
        // Predicated region
        $region81: #{xtransformer_forward.1} parent=11 // pred_check
          %p547 = pneg %p405
        $region82: #{xtransformer_forward.1} parent=11 // pred_check_branch
          %549 = sbr.rel (%p547) target = $region84
        $region83: #{xtransformer_forward.1} parent=11 // pred_region
          _
        $region84: #{xtransformer_forward.1} parent=11 // pred_fallthru
          _
        // Predicated region
        $region85: #{xtransformer_forward.1} parent=11 // pred_check
          %p550 = pneg %p426
        $region86: #{xtransformer_forward.1} parent=11 // pred_check_branch
          %552 = sbr.rel (%p550) target = $region88
        $region87: #{xtransformer_forward.1} parent=11 // pred_region
          _
        $region88: #{xtransformer_forward.1} parent=11 // pred_fallthru
          _
        // Predicated region
        $region89: #{xtransformer_forward.1} parent=11 // pred_check
          %p553 = pneg %p447
        $region90: #{xtransformer_forward.1} parent=11 // pred_check_branch
          %555 = sbr.rel (%p553) target = $region92
        $region91: #{xtransformer_forward.1} parent=11 // pred_region
          _
        $region92: #{xtransformer_forward.1} parent=11 // pred_fallthru
          _
      $region12: #{xtransformer_forward.1} parent=5 // pred_fallthru
        _
      %p556 = scmp.lt.s32.totalorder %s27, 2
      // Predicated region
      $region93: #{xtransformer_forward.1} parent=5 // pred_check
        %p557 = pneg %p556
      $region94: #{xtransformer_forward.1} parent=5 // pred_check_branch
        %559 = sbr.rel (%p557) target = $region96
      $region95: #{xtransformer_forward.1} parent=5 // pred_region
        _
      $region96: #{xtransformer_forward.1} parent=5 // pred_fallthru
        _
      %p560 = scmp.le.s32.totalorder 1, %s27
      %p561 = scmp.lt.s32.totalorder %s27, 3
      %p562 = pnand %p560, %p561
      %p563 = pneg %p562
      // Predicated region
      $region97: #{xtransformer_forward.1} parent=5 // pred_check
        _
      $region98: #{xtransformer_forward.1} parent=5 // pred_check_branch
        %565 = sbr.rel (%p562) target = $region100
      $region99: #{xtransformer_forward.1} parent=5 // pred_region
        %s566 = ssub.s32 %s27, 1
        // Predicated region
        $region101: #{xtransformer_forward.1} parent=99 // pred_check
          %p567 = pneg %p48
        $region102: #{xtransformer_forward.1} parent=99 // pred_check_branch
          %569 = sbr.rel (%p567) target = $region104
        $region103: #{xtransformer_forward.1} parent=99 // pred_region
          %570 = dma.done [#allocation3], 32
        $region104: #{xtransformer_forward.1} parent=99 // pred_fallthru
          _
        %571 = sfence
        %p572 = pneg %p48
        %p573 = pneg %p45
        %p574 = pneg %p69
        %p575 = pneg %p66
        %p576 = pneg %p90
        %p577 = pneg %p87
        %p578 = pneg %p111
        %p579 = pneg %p108
        %p580 = pneg %p132
        %p581 = pneg %p129
        %p582 = pneg %p153
        %p583 = pneg %p150
        %p584 = pneg %p174
        %p585 = pneg %p171
        %p586 = pneg %p195
        %p587 = pneg %p192
        %p588 = pneg %p216
        %p589 = pneg %p213
        %p590 = pneg %p237
        %p591 = pneg %p234
        %p592 = pneg %p258
        %p593 = pneg %p255
        %p594 = pneg %p279
        %p595 = pneg %p276
        %p596 = pneg %p300
        %p597 = pneg %p297
        %p598 = pneg %p321
        %p599 = pneg %p318
        %p600 = pneg %p342
        %p601 = pneg %p339
        %p602 = pneg %p363
        %p603 = pneg %p360
        %p604 = pneg %p384
        %p605 = pneg %p381
        %p606 = pneg %p405
        %p607 = pneg %p402
        %p608 = pneg %p426
        %p609 = pneg %p423
        %p610 = pneg %p447
        %p611 = pneg %p444
        %p612 = pneg %p473
        %p613 = pneg %p470
        %p614 = scmp.lt.s32.totalorder %s32, 1
        %s615 = scalar_select %p614, %s32, 1
        %s616 = smul.addr %s615, 2
        %s617 = smul.addr %s616, 8
        %s618 = scalar_lea.vmem %s20, %s617
        %p619 = scmp.lt.s32.totalorder %s32, 1
        %s620 = scalar_select %p619, %s32, 1
        %s621 = smul.addr %s620, 2
        %s622 = smul.addr %s621, 8
        %s623 = scalar_lea.vmem %s20, %s622
        %v625 = vld [vmem:[%s2] sm:$0xff]
        %v626 = vld [vmem:[%s2 + $0x8] sm:$0xff]
        %s627 = smul.u32 %s32, 128
        %s628 = sld [smem:[#allocation2 + %s627]]
        %v629 = vld [vmem:[%s1] sm:$0xff]
        %v630 = vld [vmem:[%s1 + $0x8] sm:$0xff]
        %v631 = vstv %s628
        %v632 = vmul.f32 %v631, %v629
        %v633 = vmul.f32 %v631, %v630
        %v634 = vadd.f32 %v625, %v632
        %v635 = vadd.f32 %v626, %v633
        %s636 = sadd.s32 %s627, 1
        %s637 = sld [smem:[#allocation2 + %s636]]
        %s638 = scalar_lea.vmem %s1, 16
        %v639 = vld [vmem:[%s638] sm:$0xff]
        %v640 = vld [vmem:[%s638 + $0x8] sm:$0xff]
        %v641 = vstv %s637
        %v642 = vmul.f32 %v641, %v639
        %v643 = vmul.f32 %v641, %v640
        %v644 = vadd.f32 %v634, %v642
        %v645 = vadd.f32 %v635, %v643
        %s646 = sadd.s32 %s627, 2
        %s647 = sld [smem:[#allocation2 + %s646]]
        %s648 = scalar_lea.vmem %s1, 32
        %v649 = vld [vmem:[%s648] sm:$0xff]
        %v650 = vld [vmem:[%s648 + $0x8] sm:$0xff]
        %v651 = vstv %s647
        %v652 = vmul.f32 %v651, %v649
        %v653 = vmul.f32 %v651, %v650
        %v654 = vadd.f32 %v644, %v652
        %v655 = vadd.f32 %v645, %v653
        %s656 = sadd.s32 %s627, 3
        %s657 = sld [smem:[#allocation2 + %s656]]
        %s658 = scalar_lea.vmem %s1, 48
        %v659 = vld [vmem:[%s658] sm:$0xff]
        %v660 = vld [vmem:[%s658 + $0x8] sm:$0xff]
        %v661 = vstv %s657
        %v662 = vmul.f32 %v661, %v659
        %v663 = vmul.f32 %v661, %v660
        %v664 = vadd.f32 %v654, %v662
        %v665 = vadd.f32 %v655, %v663
        %s666 = sadd.s32 %s627, 4
        %s667 = sld [smem:[#allocation2 + %s666]]
        %s668 = scalar_lea.vmem %s1, 64
        %v669 = vld [vmem:[%s668] sm:$0xff]
        %v670 = vld [vmem:[%s668 + $0x8] sm:$0xff]
        %v671 = vstv %s667
        %v672 = vmul.f32 %v671, %v669
        %v673 = vmul.f32 %v671, %v670
        %v674 = vadd.f32 %v664, %v672
        %v675 = vadd.f32 %v665, %v673
        %s676 = sadd.s32 %s627, 5
        %s677 = sld [smem:[#allocation2 + %s676]]
        %s678 = scalar_lea.vmem %s1, 80
        %v679 = vld [vmem:[%s678] sm:$0xff]
        %v680 = vld [vmem:[%s678 + $0x8] sm:$0xff]
        %v681 = vstv %s677
        %v682 = vmul.f32 %v681, %v679
        %v683 = vmul.f32 %v681, %v680
        %v684 = vadd.f32 %v674, %v682
        %v685 = vadd.f32 %v675, %v683
        %s686 = sadd.s32 %s627, 6
        %s687 = sld [smem:[#allocation2 + %s686]]
        %s688 = scalar_lea.vmem %s1, 96
        %v689 = vld [vmem:[%s688] sm:$0xff]
        %v690 = vld [vmem:[%s688 + $0x8] sm:$0xff]
        %v691 = vstv %s687
        %v692 = vmul.f32 %v691, %v689
        %v693 = vmul.f32 %v691, %v690
        %v694 = vadd.f32 %v684, %v692
        %v695 = vadd.f32 %v685, %v693
        %s696 = sadd.s32 %s627, 7
        %s697 = sld [smem:[#allocation2 + %s696]]
        %s698 = scalar_lea.vmem %s1, 112
        %v699 = vld [vmem:[%s698] sm:$0xff]
        %v700 = vld [vmem:[%s698 + $0x8] sm:$0xff]
        %v701 = vstv %s697
        %v702 = vmul.f32 %v701, %v699
        %v703 = vmul.f32 %v701, %v700
        %v704 = vadd.f32 %v694, %v702
        %v705 = vadd.f32 %v695, %v703
        %v706 = vpack.c.bf16 %v705, %v704
        %v707 = vld [vmem:[%s3] sm:$0xf]
        %v708 = vld [vmem:[%s3 + $0x4] sm:$0xf]
        %v709 = vld [vmem:[%s3 + $0x8] sm:$0xf]
        %v710 = vld [vmem:[%s3 + $0xc] sm:$0xf]
        %v711 = vld [vmem:[%s4] sm:$0xff]
        %v712 = vld [vmem:[%s4 + $0x8] sm:$0xff]
        %v717 = vunpack.c.l.b16 %v707
        %v718 = vunpack.c.l.b16 %v708
        %v719 = vunpack.c.l.b16 %v709
        %v720 = vunpack.c.l.b16 %v710
        %v721 = vpack.c.b16 %v718, %v717
        %v722 = vpack.c.b16 %v720, %v719
        %vm725 = vcmask 261120
        %v727 = vsel %vm725, %v706, 0
        %729 = vmatprep.subr.bf16.mxu0 0
        %730 = vmatpush1.bf16.msra.mxu0 %v721
        %731 = vmatprep.subr.bf16.mxu0 0
        %732 = vmatpush1.bf16.msra.mxu0 %v722
        %733 = vmatprep.subr.bf16.mxu0 0
        %734 = vmatpush1.bf16.msra.mxu0 0
        %735 = vmatprep.subr.bf16.mxu0 0
        %736 = vmatpush1.bf16.msra.mxu0 0
        %737 = vmatprep.subr.bf16.mxu0 0
        %738 = vmatpush1.bf16.msra.mxu0 0
        %739 = vmatprep.subr.bf16.mxu0 0
        %740 = vmatpush1.bf16.msra.mxu0 0
        %741 = vmatprep.subr.bf16.mxu0 0
        %742 = vmatpush1.bf16.msra.mxu0 0
        %743 = vmatprep.subr.bf16.mxu0 0
        %744 = vmatpush1.bf16.msra.mxu0 0
        %745 = vmatprep.subr.bf16.mxu0 0
        %746 = vmatpush1.bf16.msra.mxu0 0
        %747 = vmatprep.subr.bf16.mxu0 0
        %748 = vmatpush1.bf16.msra.mxu0 0
        %749 = vmatprep.subr.bf16.mxu0 0
        %750 = vmatpush1.bf16.msra.mxu0 0
        %751 = vmatprep.subr.bf16.mxu0 0
        %752 = vmatpush1.bf16.msra.mxu0 0
        %753 = vmatprep.subr.bf16.mxu0 0
        %754 = vmatpush1.bf16.msra.mxu0 0
        %755 = vmatprep.subr.bf16.mxu0 0
        %756 = vmatpush1.bf16.msra.mxu0 0
        %757 = vmatprep.subr.bf16.mxu0 0
        %758 = vmatpush1.bf16.msra.mxu0 0
        %759 = vmatprep.subr.bf16.mxu0 0
        %760 = vmatpush1.bf16.msra.mxu0 0
        %761 = vmatprep.mubr.bf16.mxu0 0
        %762 = vmatmul.mubr.bf16.gmra.mrb[0].mxu0 %v727
        %v763 = vpop.f32.mrb[0].mxu0
        %v764 = vadd.f32 %v711, %v763
        %v765 = vpop.f32.mrb[0].mxu0
        %v766 = vpop.f32.mrb[0].mxu0
        %v767 = vadd.f32 %v712, %v766
        %v768 = vpop.f32.mrb[0].mxu0
        %769 = vdwg.mxu0
        %v770 = vlaneseq
        %v771 = vshrl.u32 %v770, 7
        %v772 = vadd.s32 %v771, 8
        %v773 = vlaneseq
        %v774 = vand.u32 %v773, 127
        %vm775 = vcmp.le.s32.totalorder %v774, %v771
        %vm776 = vcmp.le.s32.totalorder %v774, %v772
        %v777 = vld [vmem:[%s5] sm:$0x1]
        %v778 = vld [vmem:[%s6] sm:$0x1]
        %v779 = vsel %vm725, %v764, 0.0
        %780 = vadd.xlane.f32.xlu0 %v779
        %v781 = vpop.xlane.xlu0 %780
        %v782 = vsel %vm725, %v767, 0.0
        %783 = vadd.xlane.f32.xlu0 %v782
        %v784 = vpop.xlane.xlu0 %783
        %v785 = vrcp.pop 32.0
        %v786 = vmul.f32 %v781, %v785
        %v787 = vmul.f32 %v784, %v785
        %v788 = vsub.f32 %v764, %v786
        %v789 = vsub.f32 %v767, %v787
        %v790 = vmul.f32 %v788, %v788
        %v791 = vmul.f32 %v789, %v789
        %v792 = vsel %vm725, %v790, 0.0
        %793 = vadd.xlane.f32.xlu0 %v792
        %v794 = vpop.xlane.xlu0 %793
        %v795 = vsel %vm725, %v791, 0.0
        %796 = vadd.xlane.f32.xlu0 %v795
        %v797 = vpop.xlane.xlu0 %796
        %v798 = vmul.f32 %v794, %v785
        %v799 = vmul.f32 %v797, %v785
        %v800 = vadd.f32 %v798, 1e-05
        %v801 = vadd.f32 %v799, 1e-05
        %v802 = vrsqrt.pop %v800
        %v803 = vrsqrt.pop %v801
        %v804 = vmul.f32 %v788, %v802
        %v805 = vmul.f32 %v789, %v803
        %v807 = vlaneseq
        %v808 = vshrl.u32 %v807, 7
        %v809 = vsub.s32 0, %v808
        %v810 = vrot.slane %v777, %v809
        %v812 = vmul.f32 %v804, %v810
        %v813 = vmul.f32 %v805, %v810
        %v815 = vlaneseq
        %v816 = vshrl.u32 %v815, 7
        %v817 = vsub.s32 0, %v816
        %v818 = vrot.slane %v778, %v817
        %v820 = vadd.f32 %v812, %v818
        %v821 = vadd.f32 %v813, %v818
        %v822 = vpack.c.bf16 %v821, %v820
        %v823 = vld [vmem:[%s7] sm:$0xff]
        %v824 = vld [vmem:[%s7 + $0x8] sm:$0xff]
        %v825 = vld [vmem:[%s7 + $0x10] sm:$0xff]
        %v826 = vld [vmem:[%s7 + $0x18] sm:$0xff]
        %v827 = vld [vmem:[%s7 + $0x20] sm:$0xff]
        %v828 = vld [vmem:[%s7 + $0x28] sm:$0xff]
        %v829 = vld [vmem:[%s7 + $0x30] sm:$0xff]
        %v830 = vld [vmem:[%s7 + $0x38] sm:$0xff]
        %v831 = vld [vmem:[%s7 + $0x40] sm:$0xff]
        %v832 = vld [vmem:[%s7 + $0x48] sm:$0xff]
        %v833 = vld [vmem:[%s7 + $0x50] sm:$0xff]
        %v834 = vld [vmem:[%s7 + $0x58] sm:$0xff]
        %v835 = vld [vmem:[%s7 + $0x60] sm:$0xff]
        %v836 = vld [vmem:[%s7 + $0x68] sm:$0xff]
        %v837 = vld [vmem:[%s7 + $0x70] sm:$0xff]
        %v838 = vld [vmem:[%s7 + $0x78] sm:$0xff]
        %v839 = vld [vmem:[%s7 + $0x80] sm:$0xff]
        %v840 = vld [vmem:[%s7 + $0x88] sm:$0xff]
        %v841 = vld [vmem:[%s7 + $0x90] sm:$0xff]
        %v842 = vld [vmem:[%s7 + $0x98] sm:$0xff]
        %v843 = vld [vmem:[%s7 + $0xa0] sm:$0xff]
        %v844 = vld [vmem:[%s7 + $0xa8] sm:$0xff]
        %v845 = vld [vmem:[%s7 + $0xb0] sm:$0xff]
        %v846 = vld [vmem:[%s7 + $0xb8] sm:$0xff]
        %v871 = vunpack.c.l.b16 %v823
        %v872 = vunpack.c.h.b16 %v823
        %v873 = vunpack.c.l.b16 %v824
        %v874 = vunpack.c.h.b16 %v824
        %v875 = vunpack.c.l.b16 %v825
        %v876 = vunpack.c.h.b16 %v825
        %v877 = vunpack.c.l.b16 %v826
        %v878 = vunpack.c.h.b16 %v826
        %v879 = vunpack.c.l.b16 %v827
        %v880 = vunpack.c.h.b16 %v827
        %v881 = vunpack.c.l.b16 %v828
        %v882 = vunpack.c.h.b16 %v828
        %v883 = vunpack.c.l.b16 %v829
        %v884 = vunpack.c.h.b16 %v829
        %v885 = vunpack.c.l.b16 %v830
        %v886 = vunpack.c.h.b16 %v830
        %v887 = vunpack.c.l.b16 %v831
        %v888 = vunpack.c.h.b16 %v831
        %v889 = vunpack.c.l.b16 %v832
        %v890 = vunpack.c.h.b16 %v832
        %v891 = vunpack.c.l.b16 %v833
        %v892 = vunpack.c.h.b16 %v833
        %v893 = vunpack.c.l.b16 %v834
        %v894 = vunpack.c.h.b16 %v834
        %v895 = vunpack.c.l.b16 %v835
        %v896 = vunpack.c.h.b16 %v835
        %v897 = vunpack.c.l.b16 %v836
        %v898 = vunpack.c.h.b16 %v836
        %v899 = vunpack.c.l.b16 %v837
        %v900 = vunpack.c.h.b16 %v837
        %v901 = vunpack.c.l.b16 %v838
        %v902 = vunpack.c.h.b16 %v838
        %v903 = vunpack.c.l.b16 %v839
        %v904 = vunpack.c.h.b16 %v839
        %v905 = vunpack.c.l.b16 %v840
        %v906 = vunpack.c.h.b16 %v840
        %v907 = vunpack.c.l.b16 %v841
        %v908 = vunpack.c.h.b16 %v841
        %v909 = vunpack.c.l.b16 %v842
        %v910 = vunpack.c.h.b16 %v842
        %v911 = vunpack.c.l.b16 %v843
        %v912 = vunpack.c.h.b16 %v843
        %v913 = vunpack.c.l.b16 %v844
        %v914 = vunpack.c.h.b16 %v844
        %v915 = vunpack.c.l.b16 %v845
        %v916 = vunpack.c.h.b16 %v845
        %v917 = vunpack.c.l.b16 %v846
        %v918 = vunpack.c.h.b16 %v846
        %v919 = vpack.c.b16 %v883, %v871
        %v920 = vpack.c.b16 %v884, %v872
        %v921 = vpack.c.b16 %v885, %v873
        %v922 = vpack.c.b16 %v886, %v874
        %v923 = vpack.c.b16 %v887, %v875
        %v924 = vpack.c.b16 %v888, %v876
        %v925 = vpack.c.b16 %v889, %v877
        %v926 = vpack.c.b16 %v890, %v878
        %v927 = vpack.c.b16 %v891, %v879
        %v928 = vpack.c.b16 %v892, %v880
        %v929 = vpack.c.b16 %v893, %v881
        %v930 = vpack.c.b16 %v894, %v882
        %v931 = vpack.c.b16 %v907, %v895
        %v932 = vpack.c.b16 %v908, %v896
        %v933 = vpack.c.b16 %v909, %v897
        %v934 = vpack.c.b16 %v910, %v898
        %v935 = vpack.c.b16 %v911, %v899
        %v936 = vpack.c.b16 %v912, %v900
        %v937 = vpack.c.b16 %v913, %v901
        %v938 = vpack.c.b16 %v914, %v902
        %v939 = vpack.c.b16 %v915, %v903
        %v940 = vpack.c.b16 %v916, %v904
        %v941 = vpack.c.b16 %v917, %v905
        %v942 = vpack.c.b16 %v918, %v906
        %v968 = vsel %vm725, %v822, 0
        %970 = vmatprep.subr.bf16.mxu0 %v920
        %971 = vmatpush1.bf16.msra.mxu0 %v919
        %972 = vmatprep.subr.bf16.mxu0 %v932
        %973 = vmatpush1.bf16.msra.mxu0 %v931
        %974 = vmatprep.subr.bf16.mxu0 0
        %975 = vmatpush1.bf16.msra.mxu0 0
        %976 = vmatprep.subr.bf16.mxu0 0
        %977 = vmatpush1.bf16.msra.mxu0 0
        %978 = vmatprep.subr.bf16.mxu0 0
        %979 = vmatpush1.bf16.msra.mxu0 0
        %980 = vmatprep.subr.bf16.mxu0 0
        %981 = vmatpush1.bf16.msra.mxu0 0
        %982 = vmatprep.subr.bf16.mxu0 0
        %983 = vmatpush1.bf16.msra.mxu0 0
        %984 = vmatprep.subr.bf16.mxu0 0
        %985 = vmatpush1.bf16.msra.mxu0 0
        %986 = vmatprep.subr.bf16.mxu0 0
        %987 = vmatpush1.bf16.msra.mxu0 0
        %988 = vmatprep.subr.bf16.mxu0 0
        %989 = vmatpush1.bf16.msra.mxu0 0
        %990 = vmatprep.subr.bf16.mxu0 0
        %991 = vmatpush1.bf16.msra.mxu0 0
        %992 = vmatprep.subr.bf16.mxu0 0
        %993 = vmatpush1.bf16.msra.mxu0 0
        %994 = vmatprep.subr.bf16.mxu0 0
        %995 = vmatpush1.bf16.msra.mxu0 0
        %996 = vmatprep.subr.bf16.mxu0 0
        %997 = vmatpush1.bf16.msra.mxu0 0
        %998 = vmatprep.subr.bf16.mxu0 0
        %999 = vmatpush1.bf16.msra.mxu0 0
        %1000 = vmatprep.subr.bf16.mxu0 0
        %1001 = vmatpush1.bf16.msra.mxu0 0
        %1002 = vmatprep.mubr.bf16.mxu0 0
        %1003 = vmatmul.mubr.bf16.gmra.mrb[0].mxu0 %v968
        %v1004 = vpop.f32.mrb[0].mxu0
        %v1005 = vadd.f32 0.0, %v1004
        %v1006 = vpop.f32.mrb[0].mxu0
        %v1007 = vadd.f32 0.0, %v1006
        %v1008 = vpop.f32.mrb[0].mxu0
        %v1009 = vadd.f32 0.0, %v1008
        %v1010 = vpop.f32.mrb[0].mxu0
        %v1011 = vadd.f32 0.0, %v1010
        %1012 = vdwg.mxu0
        %1013 = vmatprep.subr.bf16.mxu0 %v922
        %1014 = vmatpush1.bf16.msra.mxu0 %v921
        %1015 = vmatprep.subr.bf16.mxu0 %v934
        %1016 = vmatpush1.bf16.msra.mxu0 %v933
        %1017 = vmatprep.subr.bf16.mxu0 0
        %1018 = vmatpush1.bf16.msra.mxu0 0
        %1019 = vmatprep.subr.bf16.mxu0 0
        %1020 = vmatpush1.bf16.msra.mxu0 0
        %1021 = vmatprep.subr.bf16.mxu0 0
        %1022 = vmatpush1.bf16.msra.mxu0 0
        %1023 = vmatprep.subr.bf16.mxu0 0
        %1024 = vmatpush1.bf16.msra.mxu0 0
        %1025 = vmatprep.subr.bf16.mxu0 0
        %1026 = vmatpush1.bf16.msra.mxu0 0
        %1027 = vmatprep.subr.bf16.mxu0 0
        %1028 = vmatpush1.bf16.msra.mxu0 0
        %1029 = vmatprep.subr.bf16.mxu0 0
        %1030 = vmatpush1.bf16.msra.mxu0 0
        %1031 = vmatprep.subr.bf16.mxu0 0
        %1032 = vmatpush1.bf16.msra.mxu0 0
        %1033 = vmatprep.subr.bf16.mxu0 0
        %1034 = vmatpush1.bf16.msra.mxu0 0
        %1035 = vmatprep.subr.bf16.mxu0 0
        %1036 = vmatpush1.bf16.msra.mxu0 0
        %1037 = vmatprep.subr.bf16.mxu0 0
        %1038 = vmatpush1.bf16.msra.mxu0 0
        %1039 = vmatprep.subr.bf16.mxu0 0
        %1040 = vmatpush1.bf16.msra.mxu0 0
        %1041 = vmatprep.subr.bf16.mxu0 0
        %1042 = vmatpush1.bf16.msra.mxu0 0
        %1043 = vmatprep.subr.bf16.mxu0 0
        %1044 = vmatpush1.bf16.msra.mxu0 0
        %1045 = vmatprep.mubr.bf16.mxu0 0
        %1046 = vmatmul.mubr.bf16.gmra.mrb[0].mxu0 %v968
        %v1047 = vpop.f32.mrb[0].mxu0
        %v1048 = vadd.f32 0.0, %v1047
        %v1049 = vpop.f32.mrb[0].mxu0
        %v1050 = vadd.f32 0.0, %v1049
        %v1051 = vpop.f32.mrb[0].mxu0
        %v1052 = vadd.f32 0.0, %v1051
        %v1053 = vpop.f32.mrb[0].mxu0
        %v1054 = vadd.f32 0.0, %v1053
        %1055 = vdwg.mxu0
        %1056 = vmatprep.subr.bf16.mxu0 %v924
        %1057 = vmatpush1.bf16.msra.mxu0 %v923
        %1058 = vmatprep.subr.bf16.mxu0 %v936
        %1059 = vmatpush1.bf16.msra.mxu0 %v935
        %1060 = vmatprep.subr.bf16.mxu0 0
        %1061 = vmatpush1.bf16.msra.mxu0 0
        %1062 = vmatprep.subr.bf16.mxu0 0
        %1063 = vmatpush1.bf16.msra.mxu0 0
        %1064 = vmatprep.subr.bf16.mxu0 0
        %1065 = vmatpush1.bf16.msra.mxu0 0
        %1066 = vmatprep.subr.bf16.mxu0 0
        %1067 = vmatpush1.bf16.msra.mxu0 0
        %1068 = vmatprep.subr.bf16.mxu0 0
        %1069 = vmatpush1.bf16.msra.mxu0 0
        %1070 = vmatprep.subr.bf16.mxu0 0
        %1071 = vmatpush1.bf16.msra.mxu0 0
        %1072 = vmatprep.subr.bf16.mxu0 0
        %1073 = vmatpush1.bf16.msra.mxu0 0
        %1074 = vmatprep.subr.bf16.mxu0 0
        %1075 = vmatpush1.bf16.msra.mxu0 0
        %1076 = vmatprep.subr.bf16.mxu0 0
        %1077 = vmatpush1.bf16.msra.mxu0 0
        %1078 = vmatprep.subr.bf16.mxu0 0
        %1079 = vmatpush1.bf16.msra.mxu0 0
        %1080 = vmatprep.subr.bf16.mxu0 0
        %1081 = vmatpush1.bf16.msra.mxu0 0
        %1082 = vmatprep.subr.bf16.mxu0 0
        %1083 = vmatpush1.bf16.msra.mxu0 0
        %1084 = vmatprep.subr.bf16.mxu0 0
        %1085 = vmatpush1.bf16.msra.mxu0 0
        %1086 = vmatprep.subr.bf16.mxu0 0
        %1087 = vmatpush1.bf16.msra.mxu0 0
        %1088 = vmatprep.mubr.bf16.mxu0 0
        %1089 = vmatmul.mubr.bf16.gmra.mrb[0].mxu0 %v968
        %v1090 = vpop.f32.mrb[0].mxu0
        %v1091 = vadd.f32 0.0, %v1090
        %v1092 = vpop.f32.mrb[0].mxu0
        %v1093 = vadd.f32 0.0, %v1092
        %v1094 = vpop.f32.mrb[0].mxu0
        %v1095 = vadd.f32 0.0, %v1094
        %v1096 = vpop.f32.mrb[0].mxu0
        %v1097 = vadd.f32 0.0, %v1096
        %1098 = vdwg.mxu0
        %1099 = vmatprep.subr.bf16.mxu0 %v926
        %1100 = vmatpush1.bf16.msra.mxu0 %v925
        %1101 = vmatprep.subr.bf16.mxu0 %v938
        %1102 = vmatpush1.bf16.msra.mxu0 %v937
        %1103 = vmatprep.subr.bf16.mxu0 0
        %1104 = vmatpush1.bf16.msra.mxu0 0
        %1105 = vmatprep.subr.bf16.mxu0 0
        %1106 = vmatpush1.bf16.msra.mxu0 0
        %1107 = vmatprep.subr.bf16.mxu0 0
        %1108 = vmatpush1.bf16.msra.mxu0 0
        %1109 = vmatprep.subr.bf16.mxu0 0
        %1110 = vmatpush1.bf16.msra.mxu0 0
        %1111 = vmatprep.subr.bf16.mxu0 0
        %1112 = vmatpush1.bf16.msra.mxu0 0
        %1113 = vmatprep.subr.bf16.mxu0 0
        %1114 = vmatpush1.bf16.msra.mxu0 0
        %1115 = vmatprep.subr.bf16.mxu0 0
        %1116 = vmatpush1.bf16.msra.mxu0 0
        %1117 = vmatprep.subr.bf16.mxu0 0
        %1118 = vmatpush1.bf16.msra.mxu0 0
        %1119 = vmatprep.subr.bf16.mxu0 0
        %1120 = vmatpush1.bf16.msra.mxu0 0
        %1121 = vmatprep.subr.bf16.mxu0 0
        %1122 = vmatpush1.bf16.msra.mxu0 0
        %1123 = vmatprep.subr.bf16.mxu0 0
        %1124 = vmatpush1.bf16.msra.mxu0 0
        %1125 = vmatprep.subr.bf16.mxu0 0
        %1126 = vmatpush1.bf16.msra.mxu0 0
        %1127 = vmatprep.subr.bf16.mxu0 0
        %1128 = vmatpush1.bf16.msra.mxu0 0
        %1129 = vmatprep.subr.bf16.mxu0 0
        %1130 = vmatpush1.bf16.msra.mxu0 0
        %1131 = vmatprep.mubr.bf16.mxu0 0
        %1132 = vmatmul.mubr.bf16.gmra.mrb[0].mxu0 %v968
        %v1133 = vpop.f32.mrb[0].mxu0
        %v1134 = vadd.f32 0.0, %v1133
        %v1135 = vpop.f32.mrb[0].mxu0
        %v1136 = vadd.f32 0.0, %v1135
        %v1137 = vpop.f32.mrb[0].mxu0
        %v1138 = vadd.f32 0.0, %v1137
        %v1139 = vpop.f32.mrb[0].mxu0
        %v1140 = vadd.f32 0.0, %v1139
        %1141 = vdwg.mxu0
        %1142 = vmatprep.subr.bf16.mxu0 %v928
        %1143 = vmatpush1.bf16.msra.mxu0 %v927
        %1144 = vmatprep.subr.bf16.mxu0 %v940
        %1145 = vmatpush1.bf16.msra.mxu0 %v939
        %1146 = vmatprep.subr.bf16.mxu0 0
        %1147 = vmatpush1.bf16.msra.mxu0 0
        %1148 = vmatprep.subr.bf16.mxu0 0
        %1149 = vmatpush1.bf16.msra.mxu0 0
        %1150 = vmatprep.subr.bf16.mxu0 0
        %1151 = vmatpush1.bf16.msra.mxu0 0
        %1152 = vmatprep.subr.bf16.mxu0 0
        %1153 = vmatpush1.bf16.msra.mxu0 0
        %1154 = vmatprep.subr.bf16.mxu0 0
        %1155 = vmatpush1.bf16.msra.mxu0 0
        %1156 = vmatprep.subr.bf16.mxu0 0
        %1157 = vmatpush1.bf16.msra.mxu0 0
        %1158 = vmatprep.subr.bf16.mxu0 0
        %1159 = vmatpush1.bf16.msra.mxu0 0
        %1160 = vmatprep.subr.bf16.mxu0 0
        %1161 = vmatpush1.bf16.msra.mxu0 0
        %1162 = vmatprep.subr.bf16.mxu0 0
        %1163 = vmatpush1.bf16.msra.mxu0 0
        %1164 = vmatprep.subr.bf16.mxu0 0
        %1165 = vmatpush1.bf16.msra.mxu0 0
        %1166 = vmatprep.subr.bf16.mxu0 0
        %1167 = vmatpush1.bf16.msra.mxu0 0
        %1168 = vmatprep.subr.bf16.mxu0 0
        %1169 = vmatpush1.bf16.msra.mxu0 0
        %1170 = vmatprep.subr.bf16.mxu0 0
        %1171 = vmatpush1.bf16.msra.mxu0 0
        %1172 = vmatprep.subr.bf16.mxu0 0
        %1173 = vmatpush1.bf16.msra.mxu0 0
        %1174 = vmatprep.mubr.bf16.mxu0 0
        %1175 = vmatmul.mubr.bf16.gmra.mrb[0].mxu0 %v968
        %v1176 = vpop.f32.mrb[0].mxu0
        %v1177 = vadd.f32 0.0, %v1176
        %v1178 = vpop.f32.mrb[0].mxu0
        %v1179 = vadd.f32 0.0, %v1178
        %v1180 = vpop.f32.mrb[0].mxu0
        %v1181 = vadd.f32 0.0, %v1180
        %v1182 = vpop.f32.mrb[0].mxu0
        %v1183 = vadd.f32 0.0, %v1182
        %1184 = vdwg.mxu0
        %1185 = vmatprep.subr.bf16.mxu0 %v930
        %1186 = vmatpush1.bf16.msra.mxu0 %v929
        %1187 = vmatprep.subr.bf16.mxu0 %v942
        %1188 = vmatpush1.bf16.msra.mxu0 %v941
        %1189 = vmatprep.subr.bf16.mxu0 0
        %1190 = vmatpush1.bf16.msra.mxu0 0
        %1191 = vmatprep.subr.bf16.mxu0 0
        %1192 = vmatpush1.bf16.msra.mxu0 0
        %1193 = vmatprep.subr.bf16.mxu0 0
        %1194 = vmatpush1.bf16.msra.mxu0 0
        %1195 = vmatprep.subr.bf16.mxu0 0
        %1196 = vmatpush1.bf16.msra.mxu0 0
        %1197 = vmatprep.subr.bf16.mxu0 0
        %1198 = vmatpush1.bf16.msra.mxu0 0
        %1199 = vmatprep.subr.bf16.mxu0 0
        %1200 = vmatpush1.bf16.msra.mxu0 0
        %1201 = vmatprep.subr.bf16.mxu0 0
        %1202 = vmatpush1.bf16.msra.mxu0 0
        %1203 = vmatprep.subr.bf16.mxu0 0
        %1204 = vmatpush1.bf16.msra.mxu0 0
        %1205 = vmatprep.subr.bf16.mxu0 0
        %1206 = vmatpush1.bf16.msra.mxu0 0
        %1207 = vmatprep.subr.bf16.mxu0 0
        %1208 = vmatpush1.bf16.msra.mxu0 0
        %1209 = vmatprep.subr.bf16.mxu0 0
        %1210 = vmatpush1.bf16.msra.mxu0 0
        %1211 = vmatprep.subr.bf16.mxu0 0
        %1212 = vmatpush1.bf16.msra.mxu0 0
        %1213 = vmatprep.subr.bf16.mxu0 0
        %1214 = vmatpush1.bf16.msra.mxu0 0
        %1215 = vmatprep.subr.bf16.mxu0 0
        %1216 = vmatpush1.bf16.msra.mxu0 0
        %1217 = vmatprep.mubr.bf16.mxu0 0
        %1218 = vmatmul.mubr.bf16.gmra.mrb[0].mxu0 %v968
        %v1219 = vpop.f32.mrb[0].mxu0
        %v1220 = vadd.f32 0.0, %v1219
        %v1221 = vpop.f32.mrb[0].mxu0
        %v1222 = vadd.f32 0.0, %v1221
        %v1223 = vpop.f32.mrb[0].mxu0
        %v1224 = vadd.f32 0.0, %v1223
        %v1225 = vpop.f32.mrb[0].mxu0
        %v1226 = vadd.f32 0.0, %v1225
        %1227 = vdwg.mxu0
        %v1228 = vld [vmem:[%s8] sm:$0xf]
        %v1229 = vld [vmem:[%s8 + $0x4] sm:$0xf]
        %v1230 = vld [vmem:[%s8 + $0x8] sm:$0xf]
        %v1231 = vld [vmem:[%s8 + $0xc] sm:$0xf]
        %v1232 = vld [vmem:[%s8 + $0x10] sm:$0xf]
        %v1233 = vld [vmem:[%s8 + $0x14] sm:$0xf]
        %v1234 = vld [vmem:[%s8 + $0x18] sm:$0xf]
        %v1235 = vld [vmem:[%s8 + $0x1c] sm:$0xf]
        %v1236 = vld [vmem:[%s8 + $0x20] sm:$0xf]
        %v1237 = vld [vmem:[%s8 + $0x24] sm:$0xf]
        %v1238 = vld [vmem:[%s8 + $0x28] sm:$0xf]
        %v1239 = vld [vmem:[%s8 + $0x2c] sm:$0xf]
        %v1240 = vld [vmem:[%s8 + $0x30] sm:$0xf]
        %v1241 = vld [vmem:[%s8 + $0x34] sm:$0xf]
        %v1242 = vld [vmem:[%s8 + $0x38] sm:$0xf]
        %v1243 = vld [vmem:[%s8 + $0x3c] sm:$0xf]
        %v1244 = vld [vmem:[%s8 + $0x40] sm:$0xf]
        %v1245 = vld [vmem:[%s8 + $0x44] sm:$0xf]
        %v1246 = vld [vmem:[%s8 + $0x48] sm:$0xf]
        %v1247 = vld [vmem:[%s8 + $0x4c] sm:$0xf]
        %v1248 = vld [vmem:[%s8 + $0x50] sm:$0xf]
        %v1249 = vld [vmem:[%s8 + $0x54] sm:$0xf]
        %v1250 = vld [vmem:[%s8 + $0x58] sm:$0xf]
        %v1251 = vld [vmem:[%s8 + $0x5c] sm:$0xf]
        %v1252 = vld [vmem:[%s8 + $0x60] sm:$0xf]
        %v1253 = vld [vmem:[%s8 + $0x64] sm:$0xf]
        %v1254 = vld [vmem:[%s8 + $0x68] sm:$0xf]
        %v1255 = vld [vmem:[%s8 + $0x6c] sm:$0xf]
        %v1256 = vld [vmem:[%s8 + $0x70] sm:$0xf]
        %v1257 = vld [vmem:[%s8 + $0x74] sm:$0xf]
        %v1258 = vld [vmem:[%s8 + $0x78] sm:$0xf]
        %v1259 = vld [vmem:[%s8 + $0x7c] sm:$0xf]
        %v1260 = vld [vmem:[%s8 + $0x80] sm:$0xf]
        %v1261 = vld [vmem:[%s8 + $0x84] sm:$0xf]
        %v1262 = vld [vmem:[%s8 + $0x88] sm:$0xf]
        %v1263 = vld [vmem:[%s8 + $0x8c] sm:$0xf]
        %v1264 = vld [vmem:[%s8 + $0x90] sm:$0xf]
        %v1265 = vld [vmem:[%s8 + $0x94] sm:$0xf]
        %v1266 = vld [vmem:[%s8 + $0x98] sm:$0xf]
        %v1267 = vld [vmem:[%s8 + $0x9c] sm:$0xf]
        %v1268 = vld [vmem:[%s8 + $0xa0] sm:$0xf]
        %v1269 = vld [vmem:[%s8 + $0xa4] sm:$0xf]
        %v1270 = vld [vmem:[%s8 + $0xa8] sm:$0xf]
        %v1271 = vld [vmem:[%s8 + $0xac] sm:$0xf]
        %v1272 = vld [vmem:[%s8 + $0xb0] sm:$0xf]
        %v1273 = vld [vmem:[%s8 + $0xb4] sm:$0xf]
        %v1274 = vld [vmem:[%s8 + $0xb8] sm:$0xf]
        %v1275 = vld [vmem:[%s8 + $0xbc] sm:$0xf]
        %v1276 = vld [vmem:[%s8 + $0xc0] sm:$0xf]
        %v1277 = vld [vmem:[%s8 + $0xc4] sm:$0xf]
        %v1278 = vld [vmem:[%s8 + $0xc8] sm:$0xf]
        %v1279 = vld [vmem:[%s8 + $0xcc] sm:$0xf]
        %v1280 = vld [vmem:[%s8 + $0xd0] sm:$0xf]
        %v1281 = vld [vmem:[%s8 + $0xd4] sm:$0xf]
        %v1282 = vld [vmem:[%s8 + $0xd8] sm:$0xf]
        %v1283 = vld [vmem:[%s8 + $0xdc] sm:$0xf]
        %v1284 = vld [vmem:[%s8 + $0xe0] sm:$0xf]
        %v1285 = vld [vmem:[%s8 + $0xe4] sm:$0xf]
        %v1286 = vld [vmem:[%s8 + $0xe8] sm:$0xf]
        %v1287 = vld [vmem:[%s8 + $0xec] sm:$0xf]
        %v1288 = vld [vmem:[%s8 + $0xf0] sm:$0xf]
        %v1289 = vld [vmem:[%s8 + $0xf4] sm:$0xf]
        %v1290 = vld [vmem:[%s8 + $0xf8] sm:$0xf]
        %v1291 = vld [vmem:[%s8 + $0xfc] sm:$0xf]
        %v1292 = vpack.c.bf16 %v1009, %v1005
        %v1293 = vpack.c.bf16 %v1095, %v1091
        %v1294 = vpack.c.bf16 %v1181, %v1177
        %1295 = vmatprep.subr.bf16.mxu0 0
        %1296 = vmatpush1.bf16.xpose.msra.mxu0 %v1293
        %1297 = vmatprep.subr.bf16.mxu0 0
        %1298 = vmatpush1.bf16.xpose.msra.mxu0 0
        %1299 = vmatprep.subr.bf16.mxu0 0
        %1300 = vmatpush1.bf16.xpose.msra.mxu0 0
        %1301 = vmatprep.subr.bf16.mxu0 0
        %1302 = vmatpush1.bf16.xpose.msra.mxu0 0
        %1303 = vmatprep.subr.bf16.mxu0 0
        %1304 = vmatpush1.bf16.xpose.msra.mxu0 0
        %1305 = vmatprep.subr.bf16.mxu0 0
        %1306 = vmatpush1.bf16.xpose.msra.mxu0 0
        %1307 = vmatprep.subr.bf16.mxu0 0
        %1308 = vmatpush1.bf16.xpose.msra.mxu0 0
        %1309 = vmatprep.subr.bf16.mxu0 0
        %1310 = vmatpush1.bf16.xpose.msra.mxu0 0
        %1311 = vmatprep.subr.bf16.mxu0 0
        %1312 = vmatpush1.bf16.xpose.msra.mxu0 0
        %1313 = vmatprep.subr.bf16.mxu0 0
        %1314 = vmatpush1.bf16.xpose.msra.mxu0 0
        %1315 = vmatprep.subr.bf16.mxu0 0
        %1316 = vmatpush1.bf16.xpose.msra.mxu0 0
        %1317 = vmatprep.subr.bf16.mxu0 0
        %1318 = vmatpush1.bf16.xpose.msra.mxu0 0
        %1319 = vmatprep.subr.bf16.mxu0 0
        %1320 = vmatpush1.bf16.xpose.msra.mxu0 0
        %1321 = vmatprep.subr.bf16.mxu0 0
        %1322 = vmatpush1.bf16.xpose.msra.mxu0 0
        %1323 = vmatprep.subr.bf16.mxu0 0
        %1324 = vmatpush1.bf16.xpose.msra.mxu0 0
        %1325 = vmatprep.subr.bf16.mxu0 0
        %1326 = vmatpush1.bf16.xpose.msra.mxu0 0
        %1327 = vmatprep.mubr.bf16.mxu0 0
        %1328 = vmatmul.mubr.bf16.gmra.mrb[0].mxu0 %v1292
        %v1329 = vpop.f32.mrb[0].mxu0
        %v1330 = vadd.f32 0.0, %v1329
        %v1331 = vpop.f32.mrb[0].mxu0
        %v1332 = vpop.f32.mrb[0].mxu0
        %v1333 = vadd.f32 0.0, %v1332
        %v1334 = vpop.f32.mrb[0].mxu0
        %1335 = vdwg.mxu0
        %v1336 = vmul.f32 %v1330, 0.125
        %v1337 = vmul.f32 %v1333, 0.125
        %v1338 = vsel %vm775, %v1336, -1e+30
        %v1339 = vsel %vm776, %v1337, -1e+30
        %vm1340 = vcmask 130048
        %v1341 = vsel %vm1340, %v1338, -inf
        %1342 = vmax.xlane.f32.xlu0 %v1341
        %v1343 = vpop.xlane.xlu0 %1342
        %v1344 = vsel %vm1340, %v1339, -inf
        %1345 = vmax.xlane.f32.xlu0 %v1344
        %v1346 = vpop.xlane.xlu0 %1345
        %v1347 = vsub.f32 %v1338, %v1343
        %v1348 = vsub.f32 %v1339, %v1346
        %v1349 = vmul.f32 %v1347, 1.442695
        %v1350 = vpow.pop %v1349
        %v1351 = vmul.f32 %v1348, 1.442695
        %v1352 = vpow.pop %v1351
        %v1353 = vsel %vm1340, %v1350, 0.0
        %1354 = vadd.xlane.f32.xlu0 %v1353
        %v1355 = vpop.xlane.xlu0 %1354
        %v1356 = vsel %vm1340, %v1352, 0.0
        %1357 = vadd.xlane.f32.xlu0 %v1356
        %v1358 = vpop.xlane.xlu0 %1357
        %v1359 = vrcp.pop %v1355
        %v1360 = vrcp.pop %v1358
        %v1361 = vmul.f32 %v1350, %v1359
        %v1362 = vmul.f32 %v1352, %v1360
        %v1363 = vpack.c.bf16 %v1362, %v1361
        %v1365 = vsel %vm1340, %v1363, 0
        %1367 = vmatprep.subr.bf16.mxu0 0
        %1368 = vmatpush1.bf16.msra.mxu0 %v1294
        %1369 = vmatprep.subr.bf16.mxu0 0
        %1370 = vmatpush1.bf16.msra.mxu0 0
        %1371 = vmatprep.subr.bf16.mxu0 0
        %1372 = vmatpush1.bf16.msra.mxu0 0
        %1373 = vmatprep.subr.bf16.mxu0 0
        %1374 = vmatpush1.bf16.msra.mxu0 0
        %1375 = vmatprep.subr.bf16.mxu0 0
        %1376 = vmatpush1.bf16.msra.mxu0 0
        %1377 = vmatprep.subr.bf16.mxu0 0
        %1378 = vmatpush1.bf16.msra.mxu0 0
        %1379 = vmatprep.subr.bf16.mxu0 0
        %1380 = vmatpush1.bf16.msra.mxu0 0
        %1381 = vmatprep.subr.bf16.mxu0 0
        %1382 = vmatpush1.bf16.msra.mxu0 0
        %1383 = vmatprep.subr.bf16.mxu0 0
        %1384 = vmatpush1.bf16.msra.mxu0 0
        %1385 = vmatprep.subr.bf16.mxu0 0
        %1386 = vmatpush1.bf16.msra.mxu0 0
        %1387 = vmatprep.subr.bf16.mxu0 0
        %1388 = vmatpush1.bf16.msra.mxu0 0
        %1389 = vmatprep.subr.bf16.mxu0 0
        %1390 = vmatpush1.bf16.msra.mxu0 0
        %1391 = vmatprep.subr.bf16.mxu0 0
        %1392 = vmatpush1.bf16.msra.mxu0 0
        %1393 = vmatprep.subr.bf16.mxu0 0
        %1394 = vmatpush1.bf16.msra.mxu0 0
        %1395 = vmatprep.subr.bf16.mxu0 0
        %1396 = vmatpush1.bf16.msra.mxu0 0
        %1397 = vmatprep.subr.bf16.mxu0 0
        %1398 = vmatpush1.bf16.msra.mxu0 0
        %1399 = vmatprep.mubr.bf16.mxu0 0
        %1400 = vmatmul.mubr.bf16.gmra.mrb[0].mxu0 %v1365
        %v1401 = vpop.f32.mrb[0].mxu0
        %v1402 = vadd.f32 0.0, %v1401
        %v1403 = vpop.f32.mrb[0].mxu0
        %v1404 = vpop.f32.mrb[0].mxu0
        %v1405 = vadd.f32 0.0, %v1404
        %v1406 = vpop.f32.mrb[0].mxu0
        %1407 = vdwg.mxu0
        %v1408 = vpack.c.bf16 %v1405, %v1402
        %v1409 = vpack.c.bf16 %v1011, %v1007
        %v1410 = vpack.c.bf16 %v1097, %v1093
        %v1411 = vpack.c.bf16 %v1183, %v1179
        %1412 = vmatprep.subr.bf16.mxu0 0
        %1413 = vmatpush1.bf16.xpose.msra.mxu0 %v1410
        %1414 = vmatprep.subr.bf16.mxu0 0
        %1415 = vmatpush1.bf16.xpose.msra.mxu0 0
        %1416 = vmatprep.subr.bf16.mxu0 0
        %1417 = vmatpush1.bf16.xpose.msra.mxu0 0
        %1418 = vmatprep.subr.bf16.mxu0 0
        %1419 = vmatpush1.bf16.xpose.msra.mxu0 0
        %1420 = vmatprep.subr.bf16.mxu0 0
        %1421 = vmatpush1.bf16.xpose.msra.mxu0 0
        %1422 = vmatprep.subr.bf16.mxu0 0
        %1423 = vmatpush1.bf16.xpose.msra.mxu0 0
        %1424 = vmatprep.subr.bf16.mxu0 0
        %1425 = vmatpush1.bf16.xpose.msra.mxu0 0
        %1426 = vmatprep.subr.bf16.mxu0 0
        %1427 = vmatpush1.bf16.xpose.msra.mxu0 0
        %1428 = vmatprep.subr.bf16.mxu0 0
        %1429 = vmatpush1.bf16.xpose.msra.mxu0 0
        %1430 = vmatprep.subr.bf16.mxu0 0
        %1431 = vmatpush1.bf16.xpose.msra.mxu0 0
        %1432 = vmatprep.subr.bf16.mxu0 0
        %1433 = vmatpush1.bf16.xpose.msra.mxu0 0
        %1434 = vmatprep.subr.bf16.mxu0 0
        %1435 = vmatpush1.bf16.xpose.msra.mxu0 0
        %1436 = vmatprep.subr.bf16.mxu0 0
        %1437 = vmatpush1.bf16.xpose.msra.mxu0 0
        %1438 = vmatprep.subr.bf16.mxu0 0
        %1439 = vmatpush1.bf16.xpose.msra.mxu0 0
        %1440 = vmatprep.subr.bf16.mxu0 0
        %1441 = vmatpush1.bf16.xpose.msra.mxu0 0
        %1442 = vmatprep.subr.bf16.mxu0 0
        %1443 = vmatpush1.bf16.xpose.msra.mxu0 0
        %1444 = vmatprep.mubr.bf16.mxu0 0
        %1445 = vmatmul.mubr.bf16.gmra.mrb[0].mxu0 %v1409
        %v1446 = vpop.f32.mrb[0].mxu0
        %v1447 = vadd.f32 0.0, %v1446
        %v1448 = vpop.f32.mrb[0].mxu0
        %v1449 = vpop.f32.mrb[0].mxu0
        %v1450 = vadd.f32 0.0, %v1449
        %v1451 = vpop.f32.mrb[0].mxu0
        %1452 = vdwg.mxu0
        %v1453 = vmul.f32 %v1447, 0.125
        %v1454 = vmul.f32 %v1450, 0.125
        %v1455 = vsel %vm775, %v1453, -1e+30
        %v1456 = vsel %vm776, %v1454, -1e+30
        %v1457 = vsel %vm1340, %v1455, -inf
        %1458 = vmax.xlane.f32.xlu0 %v1457
        %v1459 = vpop.xlane.xlu0 %1458
        %v1460 = vsel %vm1340, %v1456, -inf
        %1461 = vmax.xlane.f32.xlu0 %v1460
        %v1462 = vpop.xlane.xlu0 %1461
        %v1463 = vsub.f32 %v1455, %v1459
        %v1464 = vsub.f32 %v1456, %v1462
        %v1465 = vmul.f32 %v1463, 1.442695
        %v1466 = vpow.pop %v1465
        %v1467 = vmul.f32 %v1464, 1.442695
        %v1468 = vpow.pop %v1467
        %v1469 = vsel %vm1340, %v1466, 0.0
        %1470 = vadd.xlane.f32.xlu0 %v1469
        %v1471 = vpop.xlane.xlu0 %1470
        %v1472 = vsel %vm1340, %v1468, 0.0
        %1473 = vadd.xlane.f32.xlu0 %v1472
        %v1474 = vpop.xlane.xlu0 %1473
        %v1475 = vrcp.pop %v1471
        %v1476 = vrcp.pop %v1474
        %v1477 = vmul.f32 %v1466, %v1475
        %v1478 = vmul.f32 %v1468, %v1476
        %v1479 = vpack.c.bf16 %v1478, %v1477
        %v1481 = vsel %vm1340, %v1479, 0
        %1483 = vmatprep.subr.bf16.mxu0 0
        %1484 = vmatpush1.bf16.msra.mxu0 %v1411
        %1485 = vmatprep.subr.bf16.mxu0 0
        %1486 = vmatpush1.bf16.msra.mxu0 0
        %1487 = vmatprep.subr.bf16.mxu0 0
        %1488 = vmatpush1.bf16.msra.mxu0 0
        %1489 = vmatprep.subr.bf16.mxu0 0
        %1490 = vmatpush1.bf16.msra.mxu0 0
        %1491 = vmatprep.subr.bf16.mxu0 0
        %1492 = vmatpush1.bf16.msra.mxu0 0
        %1493 = vmatprep.subr.bf16.mxu0 0
        %1494 = vmatpush1.bf16.msra.mxu0 0
        %1495 = vmatprep.subr.bf16.mxu0 0
        %1496 = vmatpush1.bf16.msra.mxu0 0
        %1497 = vmatprep.subr.bf16.mxu0 0
        %1498 = vmatpush1.bf16.msra.mxu0 0
        %1499 = vmatprep.subr.bf16.mxu0 0
        %1500 = vmatpush1.bf16.msra.mxu0 0
        %1501 = vmatprep.subr.bf16.mxu0 0
        %1502 = vmatpush1.bf16.msra.mxu0 0
        %1503 = vmatprep.subr.bf16.mxu0 0
        %1504 = vmatpush1.bf16.msra.mxu0 0
        %1505 = vmatprep.subr.bf16.mxu0 0
        %1506 = vmatpush1.bf16.msra.mxu0 0
        %1507 = vmatprep.subr.bf16.mxu0 0
        %1508 = vmatpush1.bf16.msra.mxu0 0
        %1509 = vmatprep.subr.bf16.mxu0 0
        %1510 = vmatpush1.bf16.msra.mxu0 0
        %1511 = vmatprep.subr.bf16.mxu0 0
        %1512 = vmatpush1.bf16.msra.mxu0 0
        %1513 = vmatprep.subr.bf16.mxu0 0
        %1514 = vmatpush1.bf16.msra.mxu0 0
        %1515 = vmatprep.mubr.bf16.mxu0 0
        %1516 = vmatmul.mubr.bf16.gmra.mrb[0].mxu0 %v1481
        %v1517 = vpop.f32.mrb[0].mxu0
        %v1518 = vadd.f32 0.0, %v1517
        %v1519 = vpop.f32.mrb[0].mxu0
        %v1520 = vpop.f32.mrb[0].mxu0
        %v1521 = vadd.f32 0.0, %v1520
        %v1522 = vpop.f32.mrb[0].mxu0
        %1523 = vdwg.mxu0
        %v1524 = vpack.c.bf16 %v1521, %v1518
        %v1541 = vunpack.c.l.b16 %v1244
        %v1542 = vunpack.c.l.b16 %v1245
        %v1543 = vunpack.c.l.b16 %v1246
        %v1544 = vunpack.c.l.b16 %v1247
        %v1545 = vunpack.c.l.b16 %v1248
        %v1546 = vunpack.c.l.b16 %v1249
        %v1547 = vunpack.c.l.b16 %v1250
        %v1548 = vunpack.c.l.b16 %v1251
        %v1549 = vunpack.c.l.b16 %v1252
        %v1550 = vunpack.c.l.b16 %v1253
        %v1551 = vunpack.c.l.b16 %v1254
        %v1552 = vunpack.c.l.b16 %v1255
        %v1553 = vunpack.c.l.b16 %v1256
        %v1554 = vunpack.c.l.b16 %v1257
        %v1555 = vunpack.c.l.b16 %v1258
        %v1556 = vunpack.c.l.b16 %v1259
        %v1557 = vpack.c.b16 %v1542, %v1541
        %v1558 = vpack.c.b16 %v1544, %v1543
        %v1559 = vpack.c.b16 %v1546, %v1545
        %v1560 = vpack.c.b16 %v1548, %v1547
        %v1561 = vpack.c.b16 %v1550, %v1549
        %v1562 = vpack.c.b16 %v1552, %v1551
        %v1563 = vpack.c.b16 %v1554, %v1553
        %v1564 = vpack.c.b16 %v1556, %v1555
        %1573 = vmatprep.subr.bf16.mxu0 0
        %1574 = vmatpush1.bf16.msra.mxu0 %v1557
        %1575 = vmatprep.subr.bf16.mxu0 0
        %1576 = vmatpush1.bf16.msra.mxu0 %v1558
        %1577 = vmatprep.subr.bf16.mxu0 0
        %1578 = vmatpush1.bf16.msra.mxu0 %v1559
        %1579 = vmatprep.subr.bf16.mxu0 0
        %1580 = vmatpush1.bf16.msra.mxu0 %v1560
        %1581 = vmatprep.subr.bf16.mxu0 0
        %1582 = vmatpush1.bf16.msra.mxu0 %v1561
        %1583 = vmatprep.subr.bf16.mxu0 0
        %1584 = vmatpush1.bf16.msra.mxu0 %v1562
        %1585 = vmatprep.subr.bf16.mxu0 0
        %1586 = vmatpush1.bf16.msra.mxu0 %v1563
        %1587 = vmatprep.subr.bf16.mxu0 0
        %1588 = vmatpush1.bf16.msra.mxu0 %v1564
        %1589 = vmatprep.subr.bf16.mxu0 0
        %1590 = vmatpush1.bf16.msra.mxu0 0
        %1591 = vmatprep.subr.bf16.mxu0 0
        %1592 = vmatpush1.bf16.msra.mxu0 0
        %1593 = vmatprep.subr.bf16.mxu0 0
        %1594 = vmatpush1.bf16.msra.mxu0 0
        %1595 = vmatprep.subr.bf16.mxu0 0
        %1596 = vmatpush1.bf16.msra.mxu0 0
        %1597 = vmatprep.subr.bf16.mxu0 0
        %1598 = vmatpush1.bf16.msra.mxu0 0
        %1599 = vmatprep.subr.bf16.mxu0 0
        %1600 = vmatpush1.bf16.msra.mxu0 0
        %1601 = vmatprep.subr.bf16.mxu0 0
        %1602 = vmatpush1.bf16.msra.mxu0 0
        %1603 = vmatprep.subr.bf16.mxu0 0
        %1604 = vmatpush1.bf16.msra.mxu0 0
        %1605 = vmatprep.mubr.bf16.mxu0 0
        %1606 = vmatmul.mubr.bf16.gmra.mrb[0].mxu0 %v1524
        %v1607 = vpop.f32.mrb[0].mxu0
        %v1608 = vadd.f32 0.0, %v1607
        %v1609 = vpop.f32.mrb[0].mxu0
        %v1610 = vpop.f32.mrb[0].mxu0
        %v1611 = vadd.f32 0.0, %v1610
        %v1612 = vpop.f32.mrb[0].mxu0
        %1613 = vdwg.mxu0
        %v1630 = vunpack.c.l.b16 %v1228
        %v1631 = vunpack.c.l.b16 %v1229
        %v1632 = vunpack.c.l.b16 %v1230
        %v1633 = vunpack.c.l.b16 %v1231
        %v1634 = vunpack.c.l.b16 %v1232
        %v1635 = vunpack.c.l.b16 %v1233
        %v1636 = vunpack.c.l.b16 %v1234
        %v1637 = vunpack.c.l.b16 %v1235
        %v1638 = vunpack.c.l.b16 %v1236
        %v1639 = vunpack.c.l.b16 %v1237
        %v1640 = vunpack.c.l.b16 %v1238
        %v1641 = vunpack.c.l.b16 %v1239
        %v1642 = vunpack.c.l.b16 %v1240
        %v1643 = vunpack.c.l.b16 %v1241
        %v1644 = vunpack.c.l.b16 %v1242
        %v1645 = vunpack.c.l.b16 %v1243
        %v1646 = vpack.c.b16 %v1631, %v1630
        %v1647 = vpack.c.b16 %v1633, %v1632
        %v1648 = vpack.c.b16 %v1635, %v1634
        %v1649 = vpack.c.b16 %v1637, %v1636
        %v1650 = vpack.c.b16 %v1639, %v1638
        %v1651 = vpack.c.b16 %v1641, %v1640
        %v1652 = vpack.c.b16 %v1643, %v1642
        %v1653 = vpack.c.b16 %v1645, %v1644
        %1662 = vmatprep.subr.bf16.mxu0 0
        %1663 = vmatpush1.bf16.msra.mxu0 %v1646
        %1664 = vmatprep.subr.bf16.mxu0 0
        %1665 = vmatpush1.bf16.msra.mxu0 %v1647
        %1666 = vmatprep.subr.bf16.mxu0 0
        %1667 = vmatpush1.bf16.msra.mxu0 %v1648
        %1668 = vmatprep.subr.bf16.mxu0 0
        %1669 = vmatpush1.bf16.msra.mxu0 %v1649
        %1670 = vmatprep.subr.bf16.mxu0 0
        %1671 = vmatpush1.bf16.msra.mxu0 %v1650
        %1672 = vmatprep.subr.bf16.mxu0 0
        %1673 = vmatpush1.bf16.msra.mxu0 %v1651
        %1674 = vmatprep.subr.bf16.mxu0 0
        %1675 = vmatpush1.bf16.msra.mxu0 %v1652
        %1676 = vmatprep.subr.bf16.mxu0 0
        %1677 = vmatpush1.bf16.msra.mxu0 %v1653
        %1678 = vmatprep.subr.bf16.mxu0 0
        %1679 = vmatpush1.bf16.msra.mxu0 0
        %1680 = vmatprep.subr.bf16.mxu0 0
        %1681 = vmatpush1.bf16.msra.mxu0 0
        %1682 = vmatprep.subr.bf16.mxu0 0
        %1683 = vmatpush1.bf16.msra.mxu0 0
        %1684 = vmatprep.subr.bf16.mxu0 0
        %1685 = vmatpush1.bf16.msra.mxu0 0
        %1686 = vmatprep.subr.bf16.mxu0 0
        %1687 = vmatpush1.bf16.msra.mxu0 0
        %1688 = vmatprep.subr.bf16.mxu0 0
        %1689 = vmatpush1.bf16.msra.mxu0 0
        %1690 = vmatprep.subr.bf16.mxu0 0
        %1691 = vmatpush1.bf16.msra.mxu0 0
        %1692 = vmatprep.subr.bf16.mxu0 0
        %1693 = vmatpush1.bf16.msra.mxu0 0
        %1694 = vmatprep.mubr.bf16.mxu0 0
        %1695 = vmatmul.mubr.bf16.gmra.mrb[0].mxu0 %v1408
        %v1696 = vpop.f32.mrb[0].mxu0
        %v1697 = vadd.f32 %v1608, %v1696
        %v1698 = vpop.f32.mrb[0].mxu0
        %v1699 = vpop.f32.mrb[0].mxu0
        %v1700 = vadd.f32 %v1611, %v1699
        %v1701 = vpop.f32.mrb[0].mxu0
        %1702 = vdwg.mxu0
        %v1703 = vpack.c.bf16 %v1052, %v1048
        %v1704 = vpack.c.bf16 %v1138, %v1134
        %v1705 = vpack.c.bf16 %v1224, %v1220
        %1706 = vmatprep.subr.bf16.mxu0 0
        %1707 = vmatpush1.bf16.xpose.msra.mxu0 %v1704
        %1708 = vmatprep.subr.bf16.mxu0 0
        %1709 = vmatpush1.bf16.xpose.msra.mxu0 0
        %1710 = vmatprep.subr.bf16.mxu0 0
        %1711 = vmatpush1.bf16.xpose.msra.mxu0 0
        %1712 = vmatprep.subr.bf16.mxu0 0
        %1713 = vmatpush1.bf16.xpose.msra.mxu0 0
        %1714 = vmatprep.subr.bf16.mxu0 0
        %1715 = vmatpush1.bf16.xpose.msra.mxu0 0
        %1716 = vmatprep.subr.bf16.mxu0 0
        %1717 = vmatpush1.bf16.xpose.msra.mxu0 0
        %1718 = vmatprep.subr.bf16.mxu0 0
        %1719 = vmatpush1.bf16.xpose.msra.mxu0 0
        %1720 = vmatprep.subr.bf16.mxu0 0
        %1721 = vmatpush1.bf16.xpose.msra.mxu0 0
        %1722 = vmatprep.subr.bf16.mxu0 0
        %1723 = vmatpush1.bf16.xpose.msra.mxu0 0
        %1724 = vmatprep.subr.bf16.mxu0 0
        %1725 = vmatpush1.bf16.xpose.msra.mxu0 0
        %1726 = vmatprep.subr.bf16.mxu0 0
        %1727 = vmatpush1.bf16.xpose.msra.mxu0 0
        %1728 = vmatprep.subr.bf16.mxu0 0
        %1729 = vmatpush1.bf16.xpose.msra.mxu0 0
        %1730 = vmatprep.subr.bf16.mxu0 0
        %1731 = vmatpush1.bf16.xpose.msra.mxu0 0
        %1732 = vmatprep.subr.bf16.mxu0 0
        %1733 = vmatpush1.bf16.xpose.msra.mxu0 0
        %1734 = vmatprep.subr.bf16.mxu0 0
        %1735 = vmatpush1.bf16.xpose.msra.mxu0 0
        %1736 = vmatprep.subr.bf16.mxu0 0
        %1737 = vmatpush1.bf16.xpose.msra.mxu0 0
        %1738 = vmatprep.mubr.bf16.mxu0 0
        %1739 = vmatmul.mubr.bf16.gmra.mrb[0].mxu0 %v1703
        %v1740 = vpop.f32.mrb[0].mxu0
        %v1741 = vadd.f32 0.0, %v1740
        %v1742 = vpop.f32.mrb[0].mxu0
        %v1743 = vpop.f32.mrb[0].mxu0
        %v1744 = vadd.f32 0.0, %v1743
        %v1745 = vpop.f32.mrb[0].mxu0
        %1746 = vdwg.mxu0
        %v1747 = vmul.f32 %v1741, 0.125
        %v1748 = vmul.f32 %v1744, 0.125
        %v1749 = vsel %vm775, %v1747, -1e+30
        %v1750 = vsel %vm776, %v1748, -1e+30
        %v1751 = vsel %vm1340, %v1749, -inf
        %1752 = vmax.xlane.f32.xlu0 %v1751
        %v1753 = vpop.xlane.xlu0 %1752
        %v1754 = vsel %vm1340, %v1750, -inf
        %1755 = vmax.xlane.f32.xlu0 %v1754
        %v1756 = vpop.xlane.xlu0 %1755
        %v1757 = vsub.f32 %v1749, %v1753
        %v1758 = vsub.f32 %v1750, %v1756
        %v1759 = vmul.f32 %v1757, 1.442695
        %v1760 = vpow.pop %v1759
        %v1761 = vmul.f32 %v1758, 1.442695
        %v1762 = vpow.pop %v1761
        %v1763 = vsel %vm1340, %v1760, 0.0
        %1764 = vadd.xlane.f32.xlu0 %v1763
        %v1765 = vpop.xlane.xlu0 %1764
        %v1766 = vsel %vm1340, %v1762, 0.0
        %1767 = vadd.xlane.f32.xlu0 %v1766
        %v1768 = vpop.xlane.xlu0 %1767
        %v1769 = vrcp.pop %v1765
        %v1770 = vrcp.pop %v1768
        %v1771 = vmul.f32 %v1760, %v1769
        %v1772 = vmul.f32 %v1762, %v1770
        %v1773 = vpack.c.bf16 %v1772, %v1771
        %v1775 = vsel %vm1340, %v1773, 0
        %1777 = vmatprep.subr.bf16.mxu0 0
        %1778 = vmatpush1.bf16.msra.mxu0 %v1705
        %1779 = vmatprep.subr.bf16.mxu0 0
        %1780 = vmatpush1.bf16.msra.mxu0 0
        %1781 = vmatprep.subr.bf16.mxu0 0
        %1782 = vmatpush1.bf16.msra.mxu0 0
        %1783 = vmatprep.subr.bf16.mxu0 0
        %1784 = vmatpush1.bf16.msra.mxu0 0
        %1785 = vmatprep.subr.bf16.mxu0 0
        %1786 = vmatpush1.bf16.msra.mxu0 0
        %1787 = vmatprep.subr.bf16.mxu0 0
        %1788 = vmatpush1.bf16.msra.mxu0 0
        %1789 = vmatprep.subr.bf16.mxu0 0
        %1790 = vmatpush1.bf16.msra.mxu0 0
        %1791 = vmatprep.subr.bf16.mxu0 0
        %1792 = vmatpush1.bf16.msra.mxu0 0
        %1793 = vmatprep.subr.bf16.mxu0 0
        %1794 = vmatpush1.bf16.msra.mxu0 0
        %1795 = vmatprep.subr.bf16.mxu0 0
        %1796 = vmatpush1.bf16.msra.mxu0 0
        %1797 = vmatprep.subr.bf16.mxu0 0
        %1798 = vmatpush1.bf16.msra.mxu0 0
        %1799 = vmatprep.subr.bf16.mxu0 0
        %1800 = vmatpush1.bf16.msra.mxu0 0
        %1801 = vmatprep.subr.bf16.mxu0 0
        %1802 = vmatpush1.bf16.msra.mxu0 0
        %1803 = vmatprep.subr.bf16.mxu0 0
        %1804 = vmatpush1.bf16.msra.mxu0 0
        %1805 = vmatprep.subr.bf16.mxu0 0
        %1806 = vmatpush1.bf16.msra.mxu0 0
        %1807 = vmatprep.subr.bf16.mxu0 0
        %1808 = vmatpush1.bf16.msra.mxu0 0
        %1809 = vmatprep.mubr.bf16.mxu0 0
        %1810 = vmatmul.mubr.bf16.gmra.mrb[0].mxu0 %v1775
        %v1811 = vpop.f32.mrb[0].mxu0
        %v1812 = vadd.f32 0.0, %v1811
        %v1813 = vpop.f32.mrb[0].mxu0
        %v1814 = vpop.f32.mrb[0].mxu0
        %v1815 = vadd.f32 0.0, %v1814
        %v1816 = vpop.f32.mrb[0].mxu0
        %1817 = vdwg.mxu0
        %v1818 = vpack.c.bf16 %v1815, %v1812
        %v1835 = vunpack.c.l.b16 %v1260
        %v1836 = vunpack.c.l.b16 %v1261
        %v1837 = vunpack.c.l.b16 %v1262
        %v1838 = vunpack.c.l.b16 %v1263
        %v1839 = vunpack.c.l.b16 %v1264
        %v1840 = vunpack.c.l.b16 %v1265
        %v1841 = vunpack.c.l.b16 %v1266
        %v1842 = vunpack.c.l.b16 %v1267
        %v1843 = vunpack.c.l.b16 %v1268
        %v1844 = vunpack.c.l.b16 %v1269
        %v1845 = vunpack.c.l.b16 %v1270
        %v1846 = vunpack.c.l.b16 %v1271
        %v1847 = vunpack.c.l.b16 %v1272
        %v1848 = vunpack.c.l.b16 %v1273
        %v1849 = vunpack.c.l.b16 %v1274
        %v1850 = vunpack.c.l.b16 %v1275
        %v1851 = vpack.c.b16 %v1836, %v1835
        %v1852 = vpack.c.b16 %v1838, %v1837
        %v1853 = vpack.c.b16 %v1840, %v1839
        %v1854 = vpack.c.b16 %v1842, %v1841
        %v1855 = vpack.c.b16 %v1844, %v1843
        %v1856 = vpack.c.b16 %v1846, %v1845
        %v1857 = vpack.c.b16 %v1848, %v1847
        %v1858 = vpack.c.b16 %v1850, %v1849
        %1867 = vmatprep.subr.bf16.mxu0 0
        %1868 = vmatpush1.bf16.msra.mxu0 %v1851
        %1869 = vmatprep.subr.bf16.mxu0 0
        %1870 = vmatpush1.bf16.msra.mxu0 %v1852
        %1871 = vmatprep.subr.bf16.mxu0 0
        %1872 = vmatpush1.bf16.msra.mxu0 %v1853
        %1873 = vmatprep.subr.bf16.mxu0 0
        %1874 = vmatpush1.bf16.msra.mxu0 %v1854
        %1875 = vmatprep.subr.bf16.mxu0 0
        %1876 = vmatpush1.bf16.msra.mxu0 %v1855
        %1877 = vmatprep.subr.bf16.mxu0 0
        %1878 = vmatpush1.bf16.msra.mxu0 %v1856
        %1879 = vmatprep.subr.bf16.mxu0 0
        %1880 = vmatpush1.bf16.msra.mxu0 %v1857
        %1881 = vmatprep.subr.bf16.mxu0 0
        %1882 = vmatpush1.bf16.msra.mxu0 %v1858
        %1883 = vmatprep.subr.bf16.mxu0 0
        %1884 = vmatpush1.bf16.msra.mxu0 0
        %1885 = vmatprep.subr.bf16.mxu0 0
        %1886 = vmatpush1.bf16.msra.mxu0 0
        %1887 = vmatprep.subr.bf16.mxu0 0
        %1888 = vmatpush1.bf16.msra.mxu0 0
        %1889 = vmatprep.subr.bf16.mxu0 0
        %1890 = vmatpush1.bf16.msra.mxu0 0
        %1891 = vmatprep.subr.bf16.mxu0 0
        %1892 = vmatpush1.bf16.msra.mxu0 0
        %1893 = vmatprep.subr.bf16.mxu0 0
        %1894 = vmatpush1.bf16.msra.mxu0 0
        %1895 = vmatprep.subr.bf16.mxu0 0
        %1896 = vmatpush1.bf16.msra.mxu0 0
        %1897 = vmatprep.subr.bf16.mxu0 0
        %1898 = vmatpush1.bf16.msra.mxu0 0
        %1899 = vmatprep.mubr.bf16.mxu0 0
        %1900 = vmatmul.mubr.bf16.gmra.mrb[0].mxu0 %v1818
        %v1901 = vpop.f32.mrb[0].mxu0
        %v1902 = vadd.f32 0.0, %v1901
        %v1903 = vpop.f32.mrb[0].mxu0
        %v1904 = vpop.f32.mrb[0].mxu0
        %v1905 = vadd.f32 0.0, %v1904
        %v1906 = vpop.f32.mrb[0].mxu0
        %1907 = vdwg.mxu0
        %v1908 = vadd.f32 %v1697, %v1902
        %v1909 = vadd.f32 %v1700, %v1905
        %v1910 = vpack.c.bf16 %v1054, %v1050
        %v1911 = vpack.c.bf16 %v1140, %v1136
        %v1912 = vpack.c.bf16 %v1226, %v1222
        %1913 = vmatprep.subr.bf16.mxu0 0
        %1914 = vmatpush1.bf16.xpose.msra.mxu0 %v1911
        %1915 = vmatprep.subr.bf16.mxu0 0
        %1916 = vmatpush1.bf16.xpose.msra.mxu0 0
        %1917 = vmatprep.subr.bf16.mxu0 0
        %1918 = vmatpush1.bf16.xpose.msra.mxu0 0
        %1919 = vmatprep.subr.bf16.mxu0 0
        %1920 = vmatpush1.bf16.xpose.msra.mxu0 0
        %1921 = vmatprep.subr.bf16.mxu0 0
        %1922 = vmatpush1.bf16.xpose.msra.mxu0 0
        %1923 = vmatprep.subr.bf16.mxu0 0
        %1924 = vmatpush1.bf16.xpose.msra.mxu0 0
        %1925 = vmatprep.subr.bf16.mxu0 0
        %1926 = vmatpush1.bf16.xpose.msra.mxu0 0
        %1927 = vmatprep.subr.bf16.mxu0 0
        %1928 = vmatpush1.bf16.xpose.msra.mxu0 0
        %1929 = vmatprep.subr.bf16.mxu0 0
        %1930 = vmatpush1.bf16.xpose.msra.mxu0 0
        %1931 = vmatprep.subr.bf16.mxu0 0
        %1932 = vmatpush1.bf16.xpose.msra.mxu0 0
        %1933 = vmatprep.subr.bf16.mxu0 0
        %1934 = vmatpush1.bf16.xpose.msra.mxu0 0
        %1935 = vmatprep.subr.bf16.mxu0 0
        %1936 = vmatpush1.bf16.xpose.msra.mxu0 0
        %1937 = vmatprep.subr.bf16.mxu0 0
        %1938 = vmatpush1.bf16.xpose.msra.mxu0 0
        %1939 = vmatprep.subr.bf16.mxu0 0
        %1940 = vmatpush1.bf16.xpose.msra.mxu0 0
        %1941 = vmatprep.subr.bf16.mxu0 0
        %1942 = vmatpush1.bf16.xpose.msra.mxu0 0
        %1943 = vmatprep.subr.bf16.mxu0 0
        %1944 = vmatpush1.bf16.xpose.msra.mxu0 0
        %1945 = vmatprep.mubr.bf16.mxu0 0
        %1946 = vmatmul.mubr.bf16.gmra.mrb[0].mxu0 %v1910
        %v1947 = vpop.f32.mrb[0].mxu0
        %v1948 = vadd.f32 0.0, %v1947
        %v1949 = vpop.f32.mrb[0].mxu0
        %v1950 = vpop.f32.mrb[0].mxu0
        %v1951 = vadd.f32 0.0, %v1950
        %v1952 = vpop.f32.mrb[0].mxu0
        %1953 = vdwg.mxu0
        %v1954 = vmul.f32 %v1948, 0.125
        %v1955 = vmul.f32 %v1951, 0.125
        %v1956 = vsel %vm775, %v1954, -1e+30
        %v1957 = vsel %vm776, %v1955, -1e+30
        %v1958 = vsel %vm1340, %v1956, -inf
        %1959 = vmax.xlane.f32.xlu0 %v1958
        %v1960 = vpop.xlane.xlu0 %1959
        %v1961 = vsel %vm1340, %v1957, -inf
        %1962 = vmax.xlane.f32.xlu0 %v1961
        %v1963 = vpop.xlane.xlu0 %1962
        %v1964 = vsub.f32 %v1956, %v1960
        %v1965 = vsub.f32 %v1957, %v1963
        %v1966 = vmul.f32 %v1964, 1.442695
        %v1967 = vpow.pop %v1966
        %v1968 = vmul.f32 %v1965, 1.442695
        %v1969 = vpow.pop %v1968
        %v1970 = vsel %vm1340, %v1967, 0.0
        %1971 = vadd.xlane.f32.xlu0 %v1970
        %v1972 = vpop.xlane.xlu0 %1971
        %v1973 = vsel %vm1340, %v1969, 0.0
        %1974 = vadd.xlane.f32.xlu0 %v1973
        %v1975 = vpop.xlane.xlu0 %1974
        %v1976 = vrcp.pop %v1972
        %v1977 = vrcp.pop %v1975
        %v1978 = vmul.f32 %v1967, %v1976
        %v1979 = vmul.f32 %v1969, %v1977
        %v1980 = vpack.c.bf16 %v1979, %v1978
        %v1982 = vsel %vm1340, %v1980, 0
        %1984 = vmatprep.subr.bf16.mxu0 0
        %1985 = vmatpush1.bf16.msra.mxu0 %v1912
        %1986 = vmatprep.subr.bf16.mxu0 0
        %1987 = vmatpush1.bf16.msra.mxu0 0
        %1988 = vmatprep.subr.bf16.mxu0 0
        %1989 = vmatpush1.bf16.msra.mxu0 0
        %1990 = vmatprep.subr.bf16.mxu0 0
        %1991 = vmatpush1.bf16.msra.mxu0 0
        %1992 = vmatprep.subr.bf16.mxu0 0
        %1993 = vmatpush1.bf16.msra.mxu0 0
        %1994 = vmatprep.subr.bf16.mxu0 0
        %1995 = vmatpush1.bf16.msra.mxu0 0
        %1996 = vmatprep.subr.bf16.mxu0 0
        %1997 = vmatpush1.bf16.msra.mxu0 0
        %1998 = vmatprep.subr.bf16.mxu0 0
        %1999 = vmatpush1.bf16.msra.mxu0 0
        %2000 = vmatprep.subr.bf16.mxu0 0
        %2001 = vmatpush1.bf16.msra.mxu0 0
        %2002 = vmatprep.subr.bf16.mxu0 0
        %2003 = vmatpush1.bf16.msra.mxu0 0
        %2004 = vmatprep.subr.bf16.mxu0 0
        %2005 = vmatpush1.bf16.msra.mxu0 0
        %2006 = vmatprep.subr.bf16.mxu0 0
        %2007 = vmatpush1.bf16.msra.mxu0 0
        %2008 = vmatprep.subr.bf16.mxu0 0
        %2009 = vmatpush1.bf16.msra.mxu0 0
        %2010 = vmatprep.subr.bf16.mxu0 0
        %2011 = vmatpush1.bf16.msra.mxu0 0
        %2012 = vmatprep.subr.bf16.mxu0 0
        %2013 = vmatpush1.bf16.msra.mxu0 0
        %2014 = vmatprep.subr.bf16.mxu0 0
        %2015 = vmatpush1.bf16.msra.mxu0 0
        %2016 = vmatprep.mubr.bf16.mxu0 0
        %2017 = vmatmul.mubr.bf16.gmra.mrb[0].mxu0 %v1982
        %v2018 = vpop.f32.mrb[0].mxu0
        %v2019 = vadd.f32 0.0, %v2018
        %v2020 = vpop.f32.mrb[0].mxu0
        %v2021 = vpop.f32.mrb[0].mxu0
        %v2022 = vadd.f32 0.0, %v2021
        %v2023 = vpop.f32.mrb[0].mxu0
        %2024 = vdwg.mxu0
        %v2025 = vpack.c.bf16 %v2022, %v2019
        %v2042 = vunpack.c.l.b16 %v1276
        %v2043 = vunpack.c.l.b16 %v1277
        %v2044 = vunpack.c.l.b16 %v1278
        %v2045 = vunpack.c.l.b16 %v1279
        %v2046 = vunpack.c.l.b16 %v1280
        %v2047 = vunpack.c.l.b16 %v1281
        %v2048 = vunpack.c.l.b16 %v1282
        %v2049 = vunpack.c.l.b16 %v1283
        %v2050 = vunpack.c.l.b16 %v1284
        %v2051 = vunpack.c.l.b16 %v1285
        %v2052 = vunpack.c.l.b16 %v1286
        %v2053 = vunpack.c.l.b16 %v1287
        %v2054 = vunpack.c.l.b16 %v1288
        %v2055 = vunpack.c.l.b16 %v1289
        %v2056 = vunpack.c.l.b16 %v1290
        %v2057 = vunpack.c.l.b16 %v1291
        %v2058 = vpack.c.b16 %v2043, %v2042
        %v2059 = vpack.c.b16 %v2045, %v2044
        %v2060 = vpack.c.b16 %v2047, %v2046
        %v2061 = vpack.c.b16 %v2049, %v2048
        %v2062 = vpack.c.b16 %v2051, %v2050
        %v2063 = vpack.c.b16 %v2053, %v2052
        %v2064 = vpack.c.b16 %v2055, %v2054
        %v2065 = vpack.c.b16 %v2057, %v2056
        %2074 = vmatprep.subr.bf16.mxu0 0
        %2075 = vmatpush1.bf16.msra.mxu0 %v2058
        %2076 = vmatprep.subr.bf16.mxu0 0
        %2077 = vmatpush1.bf16.msra.mxu0 %v2059
        %2078 = vmatprep.subr.bf16.mxu0 0
        %2079 = vmatpush1.bf16.msra.mxu0 %v2060
        %2080 = vmatprep.subr.bf16.mxu0 0
        %2081 = vmatpush1.bf16.msra.mxu0 %v2061
        %2082 = vmatprep.subr.bf16.mxu0 0
        %2083 = vmatpush1.bf16.msra.mxu0 %v2062
        %2084 = vmatprep.subr.bf16.mxu0 0
        %2085 = vmatpush1.bf16.msra.mxu0 %v2063
        %2086 = vmatprep.subr.bf16.mxu0 0
        %2087 = vmatpush1.bf16.msra.mxu0 %v2064
        %2088 = vmatprep.subr.bf16.mxu0 0
        %2089 = vmatpush1.bf16.msra.mxu0 %v2065
        %2090 = vmatprep.subr.bf16.mxu0 0
        %2091 = vmatpush1.bf16.msra.mxu0 0
        %2092 = vmatprep.subr.bf16.mxu0 0
        %2093 = vmatpush1.bf16.msra.mxu0 0
        %2094 = vmatprep.subr.bf16.mxu0 0
        %2095 = vmatpush1.bf16.msra.mxu0 0
        %2096 = vmatprep.subr.bf16.mxu0 0
        %2097 = vmatpush1.bf16.msra.mxu0 0
        %2098 = vmatprep.subr.bf16.mxu0 0
        %2099 = vmatpush1.bf16.msra.mxu0 0
        %2100 = vmatprep.subr.bf16.mxu0 0
        %2101 = vmatpush1.bf16.msra.mxu0 0
        %2102 = vmatprep.subr.bf16.mxu0 0
        %2103 = vmatpush1.bf16.msra.mxu0 0
        %2104 = vmatprep.subr.bf16.mxu0 0
        %2105 = vmatpush1.bf16.msra.mxu0 0
        %2106 = vmatprep.mubr.bf16.mxu0 0
        %2107 = vmatmul.mubr.bf16.gmra.mrb[0].mxu0 %v2025
        %v2108 = vpop.f32.mrb[0].mxu0
        %v2109 = vadd.f32 0.0, %v2108
        %v2110 = vpop.f32.mrb[0].mxu0
        %v2111 = vpop.f32.mrb[0].mxu0
        %v2112 = vadd.f32 0.0, %v2111
        %v2113 = vpop.f32.mrb[0].mxu0
        %2114 = vdwg.mxu0
        %v2115 = vadd.f32 %v1908, %v2109
        %v2116 = vadd.f32 %v1909, %v2112
        %v2117 = vadd.f32 %v764, %v2115
        %v2118 = vadd.f32 %v767, %v2116
        %v2119 = vld [vmem:[%s9] sm:$0x1]
        %v2121 = vlaneseq
        %v2122 = vshrl.u32 %v2121, 7
        %v2123 = vsub.s32 0, %v2122
        %v2124 = vrot.slane %v2119, %v2123
        %v2126 = vadd.f32 %v2117, %v2124
        %v2127 = vadd.f32 %v2118, %v2124
        %v2128 = vld [vmem:[%s10] sm:$0x1]
        %v2129 = vld [vmem:[%s11] sm:$0x1]
        %v2130 = vsel %vm725, %v2126, 0.0
        %2131 = vadd.xlane.f32.xlu0 %v2130
        %v2132 = vpop.xlane.xlu0 %2131
        %v2133 = vsel %vm725, %v2127, 0.0
        %2134 = vadd.xlane.f32.xlu0 %v2133
        %v2135 = vpop.xlane.xlu0 %2134
        %v2136 = vmul.f32 %v2132, %v785
        %v2137 = vmul.f32 %v2135, %v785
        %v2138 = vsub.f32 %v2126, %v2136
        %v2139 = vsub.f32 %v2127, %v2137
        %v2140 = vmul.f32 %v2138, %v2138
        %v2141 = vmul.f32 %v2139, %v2139
        %v2142 = vsel %vm725, %v2140, 0.0
        %2143 = vadd.xlane.f32.xlu0 %v2142
        %v2144 = vpop.xlane.xlu0 %2143
        %v2145 = vsel %vm725, %v2141, 0.0
        %2146 = vadd.xlane.f32.xlu0 %v2145
        %v2147 = vpop.xlane.xlu0 %2146
        %v2148 = vmul.f32 %v2144, %v785
        %v2149 = vmul.f32 %v2147, %v785
        %v2150 = vadd.f32 %v2148, 1e-05
        %v2151 = vadd.f32 %v2149, 1e-05
        %v2152 = vrsqrt.pop %v2150
        %v2153 = vrsqrt.pop %v2151
        %v2154 = vmul.f32 %v2138, %v2152
        %v2155 = vmul.f32 %v2139, %v2153
        %v2157 = vlaneseq
        %v2158 = vshrl.u32 %v2157, 7
        %v2159 = vsub.s32 0, %v2158
        %v2160 = vrot.slane %v2128, %v2159
        %v2162 = vmul.f32 %v2154, %v2160
        %v2163 = vmul.f32 %v2155, %v2160
        %v2165 = vlaneseq
        %v2166 = vshrl.u32 %v2165, 7
        %v2167 = vsub.s32 0, %v2166
        %v2168 = vrot.slane %v2129, %v2167
        %v2170 = vadd.f32 %v2162, %v2168
        %v2171 = vadd.f32 %v2163, %v2168
        %v2172 = vpack.c.bf16 %v2171, %v2170
        %v2173 = vld [vmem:[%s12] sm:$0xf]
        %v2174 = vld [vmem:[%s12 + $0x4] sm:$0xf]
        %v2175 = vld [vmem:[%s12 + $0x8] sm:$0xf]
        %v2176 = vld [vmem:[%s12 + $0xc] sm:$0xf]
        %v2177 = vld [vmem:[%s13] sm:$0x1]
        %v2179 = vlaneseq
        %v2180 = vshrl.u32 %v2179, 7
        %v2181 = vsub.s32 0, %v2180
        %v2182 = vrot.slane %v2177, %v2181
        %v2188 = vunpack.c.l.b16 %v2173
        %v2189 = vunpack.c.l.b16 %v2174
        %v2190 = vunpack.c.l.b16 %v2175
        %v2191 = vunpack.c.l.b16 %v2176
        %v2192 = vpack.c.b16 %v2189, %v2188
        %v2193 = vpack.c.b16 %v2191, %v2190
        %v2197 = vsel %vm725, %v2172, 0
        %2199 = vmatprep.subr.bf16.mxu0 0
        %2200 = vmatpush1.bf16.msra.mxu0 %v2192
        %2201 = vmatprep.subr.bf16.mxu0 0
        %2202 = vmatpush1.bf16.msra.mxu0 %v2193
        %2203 = vmatprep.subr.bf16.mxu0 0
        %2204 = vmatpush1.bf16.msra.mxu0 0
        %2205 = vmatprep.subr.bf16.mxu0 0
        %2206 = vmatpush1.bf16.msra.mxu0 0
        %2207 = vmatprep.subr.bf16.mxu0 0
        %2208 = vmatpush1.bf16.msra.mxu0 0
        %2209 = vmatprep.subr.bf16.mxu0 0
        %2210 = vmatpush1.bf16.msra.mxu0 0
        %2211 = vmatprep.subr.bf16.mxu0 0
        %2212 = vmatpush1.bf16.msra.mxu0 0
        %2213 = vmatprep.subr.bf16.mxu0 0
        %2214 = vmatpush1.bf16.msra.mxu0 0
        %2215 = vmatprep.subr.bf16.mxu0 0
        %2216 = vmatpush1.bf16.msra.mxu0 0
        %2217 = vmatprep.subr.bf16.mxu0 0
        %2218 = vmatpush1.bf16.msra.mxu0 0
        %2219 = vmatprep.subr.bf16.mxu0 0
        %2220 = vmatpush1.bf16.msra.mxu0 0
        %2221 = vmatprep.subr.bf16.mxu0 0
        %2222 = vmatpush1.bf16.msra.mxu0 0
        %2223 = vmatprep.subr.bf16.mxu0 0
        %2224 = vmatpush1.bf16.msra.mxu0 0
        %2225 = vmatprep.subr.bf16.mxu0 0
        %2226 = vmatpush1.bf16.msra.mxu0 0
        %2227 = vmatprep.subr.bf16.mxu0 0
        %2228 = vmatpush1.bf16.msra.mxu0 0
        %2229 = vmatprep.subr.bf16.mxu0 0
        %2230 = vmatpush1.bf16.msra.mxu0 0
        %2231 = vmatprep.mubr.bf16.mxu0 0
        %2232 = vmatmul.mubr.bf16.gmra.mrb[0].mxu0 %v2197
        %v2233 = vpop.f32.mrb[0].mxu0
        %v2234 = vadd.f32 %v2182, %v2233
        %v2235 = vpop.f32.mrb[0].mxu0
        %v2236 = vpop.f32.mrb[0].mxu0
        %v2237 = vadd.f32 %v2182, %v2236
        %v2238 = vpop.f32.mrb[0].mxu0
        %2239 = vdwg.mxu0
        %v2240 = vmul.f32 %v2234, %v2234
        %v2241 = vmul.f32 %v2237, %v2237
        %v2242 = vmul.f32 %v2234, %v2240
        %v2243 = vmul.f32 %v2237, %v2241
        %v2244 = vmul.f32 %v2242, 0.044715
        %v2245 = vmul.f32 %v2243, 0.044715
        %v2246 = vadd.f32 %v2234, %v2244
        %v2247 = vadd.f32 %v2237, %v2245
        %v2248 = vmul.f32 %v2246, 0.7978846
        %v2249 = vmul.f32 %v2247, 0.7978846
        %v2250 = vtanh.pop %v2248
        %v2251 = vtanh.pop %v2249
        %v2252 = vadd.f32 %v2250, 1.0
        %v2253 = vadd.f32 %v2251, 1.0
        %v2254 = vmul.f32 %v2252, 0.5
        %v2255 = vmul.f32 %v2253, 0.5
        %v2256 = vmul.f32 %v2234, %v2254
        %v2257 = vmul.f32 %v2237, %v2255
        %v2258 = vpack.c.bf16 %v2257, %v2256
        %v2259 = vld [vmem:[%s14] sm:$0xf]
        %v2260 = vld [vmem:[%s14 + $0x4] sm:$0xf]
        %v2261 = vld [vmem:[%s14 + $0x8] sm:$0xf]
        %v2262 = vld [vmem:[%s14 + $0xc] sm:$0xf]
        %v2263 = vld [vmem:[%s14 + $0x10] sm:$0xf]
        %v2264 = vld [vmem:[%s14 + $0x14] sm:$0xf]
        %v2265 = vld [vmem:[%s14 + $0x18] sm:$0xf]
        %v2266 = vld [vmem:[%s14 + $0x1c] sm:$0xf]
        %v2267 = vld [vmem:[%s14 + $0x20] sm:$0xf]
        %v2268 = vld [vmem:[%s14 + $0x24] sm:$0xf]
        %v2269 = vld [vmem:[%s14 + $0x28] sm:$0xf]
        %v2270 = vld [vmem:[%s14 + $0x2c] sm:$0xf]
        %v2271 = vld [vmem:[%s14 + $0x30] sm:$0xf]
        %v2272 = vld [vmem:[%s14 + $0x34] sm:$0xf]
        %v2273 = vld [vmem:[%s14 + $0x38] sm:$0xf]
        %v2274 = vld [vmem:[%s14 + $0x3c] sm:$0xf]
        %v2291 = vunpack.c.l.b16 %v2259
        %v2292 = vunpack.c.l.b16 %v2260
        %v2293 = vunpack.c.l.b16 %v2261
        %v2294 = vunpack.c.l.b16 %v2262
        %v2295 = vunpack.c.l.b16 %v2263
        %v2296 = vunpack.c.l.b16 %v2264
        %v2297 = vunpack.c.l.b16 %v2265
        %v2298 = vunpack.c.l.b16 %v2266
        %v2299 = vunpack.c.l.b16 %v2267
        %v2300 = vunpack.c.l.b16 %v2268
        %v2301 = vunpack.c.l.b16 %v2269
        %v2302 = vunpack.c.l.b16 %v2270
        %v2303 = vunpack.c.l.b16 %v2271
        %v2304 = vunpack.c.l.b16 %v2272
        %v2305 = vunpack.c.l.b16 %v2273
        %v2306 = vunpack.c.l.b16 %v2274
        %v2307 = vpack.c.b16 %v2292, %v2291
        %v2308 = vpack.c.b16 %v2294, %v2293
        %v2309 = vpack.c.b16 %v2296, %v2295
        %v2310 = vpack.c.b16 %v2298, %v2297
        %v2311 = vpack.c.b16 %v2300, %v2299
        %v2312 = vpack.c.b16 %v2302, %v2301
        %v2313 = vpack.c.b16 %v2304, %v2303
        %v2314 = vpack.c.b16 %v2306, %v2305
        %2323 = vmatprep.subr.bf16.mxu0 0
        %2324 = vmatpush1.bf16.msra.mxu0 %v2307
        %2325 = vmatprep.subr.bf16.mxu0 0
        %2326 = vmatpush1.bf16.msra.mxu0 %v2308
        %2327 = vmatprep.subr.bf16.mxu0 0
        %2328 = vmatpush1.bf16.msra.mxu0 %v2309
        %2329 = vmatprep.subr.bf16.mxu0 0
        %2330 = vmatpush1.bf16.msra.mxu0 %v2310
        %2331 = vmatprep.subr.bf16.mxu0 0
        %2332 = vmatpush1.bf16.msra.mxu0 %v2311
        %2333 = vmatprep.subr.bf16.mxu0 0
        %2334 = vmatpush1.bf16.msra.mxu0 %v2312
        %2335 = vmatprep.subr.bf16.mxu0 0
        %2336 = vmatpush1.bf16.msra.mxu0 %v2313
        %2337 = vmatprep.subr.bf16.mxu0 0
        %2338 = vmatpush1.bf16.msra.mxu0 %v2314
        %2339 = vmatprep.subr.bf16.mxu0 0
        %2340 = vmatpush1.bf16.msra.mxu0 0
        %2341 = vmatprep.subr.bf16.mxu0 0
        %2342 = vmatpush1.bf16.msra.mxu0 0
        %2343 = vmatprep.subr.bf16.mxu0 0
        %2344 = vmatpush1.bf16.msra.mxu0 0
        %2345 = vmatprep.subr.bf16.mxu0 0
        %2346 = vmatpush1.bf16.msra.mxu0 0
        %2347 = vmatprep.subr.bf16.mxu0 0
        %2348 = vmatpush1.bf16.msra.mxu0 0
        %2349 = vmatprep.subr.bf16.mxu0 0
        %2350 = vmatpush1.bf16.msra.mxu0 0
        %2351 = vmatprep.subr.bf16.mxu0 0
        %2352 = vmatpush1.bf16.msra.mxu0 0
        %2353 = vmatprep.subr.bf16.mxu0 0
        %2354 = vmatpush1.bf16.msra.mxu0 0
        %2355 = vmatprep.mubr.bf16.mxu0 0
        %2356 = vmatmul.mubr.bf16.gmra.mrb[0].mxu0 %v2258
        %v2357 = vpop.f32.mrb[0].mxu0
        %v2358 = vadd.f32 0.0, %v2357
        %v2359 = vpop.f32.mrb[0].mxu0
        %v2360 = vpop.f32.mrb[0].mxu0
        %v2361 = vadd.f32 0.0, %v2360
        %v2362 = vpop.f32.mrb[0].mxu0
        %2363 = vdwg.mxu0
        %v2364 = vadd.f32 %v2126, %v2358
        %v2365 = vadd.f32 %v2127, %v2361
        %v2366 = vld [vmem:[%s15] sm:$0x1]
        %v2368 = vlaneseq
        %v2369 = vshrl.u32 %v2368, 7
        %v2370 = vsub.s32 0, %v2369
        %v2371 = vrot.slane %v2366, %v2370
        %v2373 = vadd.f32 %v2364, %v2371
        %v2374 = vadd.f32 %v2365, %v2371
        %s2375 = scalar_lea.vmem %s5, 1
        %v2376 = vld [vmem:[%s2375] sm:$0x1]
        %s2377 = scalar_lea.vmem %s6, 1
        %v2378 = vld [vmem:[%s2377] sm:$0x1]
        %v2379 = vsel %vm725, %v2373, 0.0
        %2380 = vadd.xlane.f32.xlu0 %v2379
        %v2381 = vpop.xlane.xlu0 %2380
        %v2382 = vsel %vm725, %v2374, 0.0
        %2383 = vadd.xlane.f32.xlu0 %v2382
        %v2384 = vpop.xlane.xlu0 %2383
        %v2385 = vmul.f32 %v2381, %v785
        %v2386 = vmul.f32 %v2384, %v785
        %v2387 = vsub.f32 %v2373, %v2385
        %v2388 = vsub.f32 %v2374, %v2386
        %v2389 = vmul.f32 %v2387, %v2387
        %v2390 = vmul.f32 %v2388, %v2388
        %v2391 = vsel %vm725, %v2389, 0.0
        %2392 = vadd.xlane.f32.xlu0 %v2391
        %v2393 = vpop.xlane.xlu0 %2392
        %v2394 = vsel %vm725, %v2390, 0.0
        %2395 = vadd.xlane.f32.xlu0 %v2394
        %v2396 = vpop.xlane.xlu0 %2395
        %v2397 = vmul.f32 %v2393, %v785
        %v2398 = vmul.f32 %v2396, %v785
        %v2399 = vadd.f32 %v2397, 1e-05
        %v2400 = vadd.f32 %v2398, 1e-05
        %v2401 = vrsqrt.pop %v2399
        %v2402 = vrsqrt.pop %v2400
        %v2403 = vmul.f32 %v2387, %v2401
        %v2404 = vmul.f32 %v2388, %v2402
        %v2406 = vlaneseq
        %v2407 = vshrl.u32 %v2406, 7
        %v2408 = vsub.s32 0, %v2407
        %v2409 = vrot.slane %v2376, %v2408
        %v2411 = vmul.f32 %v2403, %v2409
        %v2412 = vmul.f32 %v2404, %v2409
        %v2414 = vlaneseq
        %v2415 = vshrl.u32 %v2414, 7
        %v2416 = vsub.s32 0, %v2415
        %v2417 = vrot.slane %v2378, %v2416
        %v2419 = vadd.f32 %v2411, %v2417
        %v2420 = vadd.f32 %v2412, %v2417
        %v2421 = vpack.c.bf16 %v2420, %v2419
        %s2422 = scalar_lea.vmem %s7, 192
        %v2423 = vld [vmem:[%s2422] sm:$0xff]
        %v2424 = vld [vmem:[%s2422 + $0x8] sm:$0xff]
        %v2425 = vld [vmem:[%s2422 + $0x10] sm:$0xff]
        %v2426 = vld [vmem:[%s2422 + $0x18] sm:$0xff]
        %v2427 = vld [vmem:[%s2422 + $0x20] sm:$0xff]
        %v2428 = vld [vmem:[%s2422 + $0x28] sm:$0xff]
        %v2429 = vld [vmem:[%s2422 + $0x30] sm:$0xff]
        %v2430 = vld [vmem:[%s2422 + $0x38] sm:$0xff]
        %v2431 = vld [vmem:[%s2422 + $0x40] sm:$0xff]
        %v2432 = vld [vmem:[%s2422 + $0x48] sm:$0xff]
        %v2433 = vld [vmem:[%s2422 + $0x50] sm:$0xff]
        %v2434 = vld [vmem:[%s2422 + $0x58] sm:$0xff]
        %v2435 = vld [vmem:[%s2422 + $0x60] sm:$0xff]
        %v2436 = vld [vmem:[%s2422 + $0x68] sm:$0xff]
        %v2437 = vld [vmem:[%s2422 + $0x70] sm:$0xff]
        %v2438 = vld [vmem:[%s2422 + $0x78] sm:$0xff]
        %v2439 = vld [vmem:[%s2422 + $0x80] sm:$0xff]
        %v2440 = vld [vmem:[%s2422 + $0x88] sm:$0xff]
        %v2441 = vld [vmem:[%s2422 + $0x90] sm:$0xff]
        %v2442 = vld [vmem:[%s2422 + $0x98] sm:$0xff]
        %v2443 = vld [vmem:[%s2422 + $0xa0] sm:$0xff]
        %v2444 = vld [vmem:[%s2422 + $0xa8] sm:$0xff]
        %v2445 = vld [vmem:[%s2422 + $0xb0] sm:$0xff]
        %v2446 = vld [vmem:[%s2422 + $0xb8] sm:$0xff]
        %v2471 = vunpack.c.l.b16 %v2423
        %v2472 = vunpack.c.h.b16 %v2423
        %v2473 = vunpack.c.l.b16 %v2424
        %v2474 = vunpack.c.h.b16 %v2424
        %v2475 = vunpack.c.l.b16 %v2425
        %v2476 = vunpack.c.h.b16 %v2425
        %v2477 = vunpack.c.l.b16 %v2426
        %v2478 = vunpack.c.h.b16 %v2426
        %v2479 = vunpack.c.l.b16 %v2427
        %v2480 = vunpack.c.h.b16 %v2427
        %v2481 = vunpack.c.l.b16 %v2428
        %v2482 = vunpack.c.h.b16 %v2428
        %v2483 = vunpack.c.l.b16 %v2429
        %v2484 = vunpack.c.h.b16 %v2429
        %v2485 = vunpack.c.l.b16 %v2430
        %v2486 = vunpack.c.h.b16 %v2430
        %v2487 = vunpack.c.l.b16 %v2431
        %v2488 = vunpack.c.h.b16 %v2431
        %v2489 = vunpack.c.l.b16 %v2432
        %v2490 = vunpack.c.h.b16 %v2432
        %v2491 = vunpack.c.l.b16 %v2433
        %v2492 = vunpack.c.h.b16 %v2433
        %v2493 = vunpack.c.l.b16 %v2434
        %v2494 = vunpack.c.h.b16 %v2434
        %v2495 = vunpack.c.l.b16 %v2435
        %v2496 = vunpack.c.h.b16 %v2435
        %v2497 = vunpack.c.l.b16 %v2436
        %v2498 = vunpack.c.h.b16 %v2436
        %v2499 = vunpack.c.l.b16 %v2437
        %v2500 = vunpack.c.h.b16 %v2437
        %v2501 = vunpack.c.l.b16 %v2438
        %v2502 = vunpack.c.h.b16 %v2438
        %v2503 = vunpack.c.l.b16 %v2439
        %v2504 = vunpack.c.h.b16 %v2439
        %v2505 = vunpack.c.l.b16 %v2440
        %v2506 = vunpack.c.h.b16 %v2440
        %v2507 = vunpack.c.l.b16 %v2441
        %v2508 = vunpack.c.h.b16 %v2441
        %v2509 = vunpack.c.l.b16 %v2442
        %v2510 = vunpack.c.h.b16 %v2442
        %v2511 = vunpack.c.l.b16 %v2443
        %v2512 = vunpack.c.h.b16 %v2443
        %v2513 = vunpack.c.l.b16 %v2444
        %v2514 = vunpack.c.h.b16 %v2444
        %v2515 = vunpack.c.l.b16 %v2445
        %v2516 = vunpack.c.h.b16 %v2445
        %v2517 = vunpack.c.l.b16 %v2446
        %v2518 = vunpack.c.h.b16 %v2446
        %v2519 = vpack.c.b16 %v2483, %v2471
        %v2520 = vpack.c.b16 %v2484, %v2472
        %v2521 = vpack.c.b16 %v2485, %v2473
        %v2522 = vpack.c.b16 %v2486, %v2474
        %v2523 = vpack.c.b16 %v2487, %v2475
        %v2524 = vpack.c.b16 %v2488, %v2476
        %v2525 = vpack.c.b16 %v2489, %v2477
        %v2526 = vpack.c.b16 %v2490, %v2478
        %v2527 = vpack.c.b16 %v2491, %v2479
        %v2528 = vpack.c.b16 %v2492, %v2480
        %v2529 = vpack.c.b16 %v2493, %v2481
        %v2530 = vpack.c.b16 %v2494, %v2482
        %v2531 = vpack.c.b16 %v2507, %v2495
        %v2532 = vpack.c.b16 %v2508, %v2496
        %v2533 = vpack.c.b16 %v2509, %v2497
        %v2534 = vpack.c.b16 %v2510, %v2498
        %v2535 = vpack.c.b16 %v2511, %v2499
        %v2536 = vpack.c.b16 %v2512, %v2500
        %v2537 = vpack.c.b16 %v2513, %v2501
        %v2538 = vpack.c.b16 %v2514, %v2502
        %v2539 = vpack.c.b16 %v2515, %v2503
        %v2540 = vpack.c.b16 %v2516, %v2504
        %v2541 = vpack.c.b16 %v2517, %v2505
        %v2542 = vpack.c.b16 %v2518, %v2506
        %v2568 = vsel %vm725, %v2421, 0
        %2570 = vmatprep.subr.bf16.mxu0 %v2520
        %2571 = vmatpush1.bf16.msra.mxu0 %v2519
        %2572 = vmatprep.subr.bf16.mxu0 %v2532
        %2573 = vmatpush1.bf16.msra.mxu0 %v2531
        %2574 = vmatprep.subr.bf16.mxu0 0
        %2575 = vmatpush1.bf16.msra.mxu0 0
        %2576 = vmatprep.subr.bf16.mxu0 0
        %2577 = vmatpush1.bf16.msra.mxu0 0
        %2578 = vmatprep.subr.bf16.mxu0 0
        %2579 = vmatpush1.bf16.msra.mxu0 0
        %2580 = vmatprep.subr.bf16.mxu0 0
        %2581 = vmatpush1.bf16.msra.mxu0 0
        %2582 = vmatprep.subr.bf16.mxu0 0
        %2583 = vmatpush1.bf16.msra.mxu0 0
        %2584 = vmatprep.subr.bf16.mxu0 0
        %2585 = vmatpush1.bf16.msra.mxu0 0
        %2586 = vmatprep.subr.bf16.mxu0 0
        %2587 = vmatpush1.bf16.msra.mxu0 0
        %2588 = vmatprep.subr.bf16.mxu0 0
        %2589 = vmatpush1.bf16.msra.mxu0 0
        %2590 = vmatprep.subr.bf16.mxu0 0
        %2591 = vmatpush1.bf16.msra.mxu0 0
        %2592 = vmatprep.subr.bf16.mxu0 0
        %2593 = vmatpush1.bf16.msra.mxu0 0
        %2594 = vmatprep.subr.bf16.mxu0 0
        %2595 = vmatpush1.bf16.msra.mxu0 0
        %2596 = vmatprep.subr.bf16.mxu0 0
        %2597 = vmatpush1.bf16.msra.mxu0 0
        %2598 = vmatprep.subr.bf16.mxu0 0
        %2599 = vmatpush1.bf16.msra.mxu0 0
        %2600 = vmatprep.subr.bf16.mxu0 0
        %2601 = vmatpush1.bf16.msra.mxu0 0
        %2602 = vmatprep.mubr.bf16.mxu0 0
        %2603 = vmatmul.mubr.bf16.gmra.mrb[0].mxu0 %v2568
        %v2604 = vpop.f32.mrb[0].mxu0
        %v2605 = vadd.f32 0.0, %v2604
        %v2606 = vpop.f32.mrb[0].mxu0
        %v2607 = vadd.f32 0.0, %v2606
        %v2608 = vpop.f32.mrb[0].mxu0
        %v2609 = vadd.f32 0.0, %v2608
        %v2610 = vpop.f32.mrb[0].mxu0
        %v2611 = vadd.f32 0.0, %v2610
        %2612 = vdwg.mxu0
        %2613 = vmatprep.subr.bf16.mxu0 %v2522
        %2614 = vmatpush1.bf16.msra.mxu0 %v2521
        %2615 = vmatprep.subr.bf16.mxu0 %v2534
        %2616 = vmatpush1.bf16.msra.mxu0 %v2533
        %2617 = vmatprep.subr.bf16.mxu0 0
        %2618 = vmatpush1.bf16.msra.mxu0 0
        %2619 = vmatprep.subr.bf16.mxu0 0
        %2620 = vmatpush1.bf16.msra.mxu0 0
        %2621 = vmatprep.subr.bf16.mxu0 0
        %2622 = vmatpush1.bf16.msra.mxu0 0
        %2623 = vmatprep.subr.bf16.mxu0 0
        %2624 = vmatpush1.bf16.msra.mxu0 0
        %2625 = vmatprep.subr.bf16.mxu0 0
        %2626 = vmatpush1.bf16.msra.mxu0 0
        %2627 = vmatprep.subr.bf16.mxu0 0
        %2628 = vmatpush1.bf16.msra.mxu0 0
        %2629 = vmatprep.subr.bf16.mxu0 0
        %2630 = vmatpush1.bf16.msra.mxu0 0
        %2631 = vmatprep.subr.bf16.mxu0 0
        %2632 = vmatpush1.bf16.msra.mxu0 0
        %2633 = vmatprep.subr.bf16.mxu0 0
        %2634 = vmatpush1.bf16.msra.mxu0 0
        %2635 = vmatprep.subr.bf16.mxu0 0
        %2636 = vmatpush1.bf16.msra.mxu0 0
        %2637 = vmatprep.subr.bf16.mxu0 0
        %2638 = vmatpush1.bf16.msra.mxu0 0
        %2639 = vmatprep.subr.bf16.mxu0 0
        %2640 = vmatpush1.bf16.msra.mxu0 0
        %2641 = vmatprep.subr.bf16.mxu0 0
        %2642 = vmatpush1.bf16.msra.mxu0 0
        %2643 = vmatprep.subr.bf16.mxu0 0
        %2644 = vmatpush1.bf16.msra.mxu0 0
        %2645 = vmatprep.mubr.bf16.mxu0 0
        %2646 = vmatmul.mubr.bf16.gmra.mrb[0].mxu0 %v2568
        %v2647 = vpop.f32.mrb[0].mxu0
        %v2648 = vadd.f32 0.0, %v2647
        %v2649 = vpop.f32.mrb[0].mxu0
        %v2650 = vadd.f32 0.0, %v2649
        %v2651 = vpop.f32.mrb[0].mxu0
        %v2652 = vadd.f32 0.0, %v2651
        %v2653 = vpop.f32.mrb[0].mxu0
        %v2654 = vadd.f32 0.0, %v2653
        %2655 = vdwg.mxu0
        %2656 = vmatprep.subr.bf16.mxu0 %v2524
        %2657 = vmatpush1.bf16.msra.mxu0 %v2523
        %2658 = vmatprep.subr.bf16.mxu0 %v2536
        %2659 = vmatpush1.bf16.msra.mxu0 %v2535
        %2660 = vmatprep.subr.bf16.mxu0 0
        %2661 = vmatpush1.bf16.msra.mxu0 0
        %2662 = vmatprep.subr.bf16.mxu0 0
        %2663 = vmatpush1.bf16.msra.mxu0 0
        %2664 = vmatprep.subr.bf16.mxu0 0
        %2665 = vmatpush1.bf16.msra.mxu0 0
        %2666 = vmatprep.subr.bf16.mxu0 0
        %2667 = vmatpush1.bf16.msra.mxu0 0
        %2668 = vmatprep.subr.bf16.mxu0 0
        %2669 = vmatpush1.bf16.msra.mxu0 0
        %2670 = vmatprep.subr.bf16.mxu0 0
        %2671 = vmatpush1.bf16.msra.mxu0 0
        %2672 = vmatprep.subr.bf16.mxu0 0
        %2673 = vmatpush1.bf16.msra.mxu0 0
        %2674 = vmatprep.subr.bf16.mxu0 0
        %2675 = vmatpush1.bf16.msra.mxu0 0
        %2676 = vmatprep.subr.bf16.mxu0 0
        %2677 = vmatpush1.bf16.msra.mxu0 0
        %2678 = vmatprep.subr.bf16.mxu0 0
        %2679 = vmatpush1.bf16.msra.mxu0 0
        %2680 = vmatprep.subr.bf16.mxu0 0
        %2681 = vmatpush1.bf16.msra.mxu0 0
        %2682 = vmatprep.subr.bf16.mxu0 0
        %2683 = vmatpush1.bf16.msra.mxu0 0
        %2684 = vmatprep.subr.bf16.mxu0 0
        %2685 = vmatpush1.bf16.msra.mxu0 0
        %2686 = vmatprep.subr.bf16.mxu0 0
        %2687 = vmatpush1.bf16.msra.mxu0 0
        %2688 = vmatprep.mubr.bf16.mxu0 0
        %2689 = vmatmul.mubr.bf16.gmra.mrb[0].mxu0 %v2568
        %v2690 = vpop.f32.mrb[0].mxu0
        %v2691 = vadd.f32 0.0, %v2690
        %v2692 = vpop.f32.mrb[0].mxu0
        %v2693 = vadd.f32 0.0, %v2692
        %v2694 = vpop.f32.mrb[0].mxu0
        %v2695 = vadd.f32 0.0, %v2694
        %v2696 = vpop.f32.mrb[0].mxu0
        %v2697 = vadd.f32 0.0, %v2696
        %2698 = vdwg.mxu0
        %2699 = vmatprep.subr.bf16.mxu0 %v2526
        %2700 = vmatpush1.bf16.msra.mxu0 %v2525
        %2701 = vmatprep.subr.bf16.mxu0 %v2538
        %2702 = vmatpush1.bf16.msra.mxu0 %v2537
        %2703 = vmatprep.subr.bf16.mxu0 0
        %2704 = vmatpush1.bf16.msra.mxu0 0
        %2705 = vmatprep.subr.bf16.mxu0 0
        %2706 = vmatpush1.bf16.msra.mxu0 0
        %2707 = vmatprep.subr.bf16.mxu0 0
        %2708 = vmatpush1.bf16.msra.mxu0 0
        %2709 = vmatprep.subr.bf16.mxu0 0
        %2710 = vmatpush1.bf16.msra.mxu0 0
        %2711 = vmatprep.subr.bf16.mxu0 0
        %2712 = vmatpush1.bf16.msra.mxu0 0
        %2713 = vmatprep.subr.bf16.mxu0 0
        %2714 = vmatpush1.bf16.msra.mxu0 0
        %2715 = vmatprep.subr.bf16.mxu0 0
        %2716 = vmatpush1.bf16.msra.mxu0 0
        %2717 = vmatprep.subr.bf16.mxu0 0
        %2718 = vmatpush1.bf16.msra.mxu0 0
        %2719 = vmatprep.subr.bf16.mxu0 0
        %2720 = vmatpush1.bf16.msra.mxu0 0
        %2721 = vmatprep.subr.bf16.mxu0 0
        %2722 = vmatpush1.bf16.msra.mxu0 0
        %2723 = vmatprep.subr.bf16.mxu0 0
        %2724 = vmatpush1.bf16.msra.mxu0 0
        %2725 = vmatprep.subr.bf16.mxu0 0
        %2726 = vmatpush1.bf16.msra.mxu0 0
        %2727 = vmatprep.subr.bf16.mxu0 0
        %2728 = vmatpush1.bf16.msra.mxu0 0
        %2729 = vmatprep.subr.bf16.mxu0 0
        %2730 = vmatpush1.bf16.msra.mxu0 0
        %2731 = vmatprep.mubr.bf16.mxu0 0
        %2732 = vmatmul.mubr.bf16.gmra.mrb[0].mxu0 %v2568
        %v2733 = vpop.f32.mrb[0].mxu0
        %v2734 = vadd.f32 0.0, %v2733
        %v2735 = vpop.f32.mrb[0].mxu0
        %v2736 = vadd.f32 0.0, %v2735
        %v2737 = vpop.f32.mrb[0].mxu0
        %v2738 = vadd.f32 0.0, %v2737
        %v2739 = vpop.f32.mrb[0].mxu0
        %v2740 = vadd.f32 0.0, %v2739
        %2741 = vdwg.mxu0
        %2742 = vmatprep.subr.bf16.mxu0 %v2528
        %2743 = vmatpush1.bf16.msra.mxu0 %v2527
        %2744 = vmatprep.subr.bf16.mxu0 %v2540
        %2745 = vmatpush1.bf16.msra.mxu0 %v2539
        %2746 = vmatprep.subr.bf16.mxu0 0
        %2747 = vmatpush1.bf16.msra.mxu0 0
        %2748 = vmatprep.subr.bf16.mxu0 0
        %2749 = vmatpush1.bf16.msra.mxu0 0
        %2750 = vmatprep.subr.bf16.mxu0 0
        %2751 = vmatpush1.bf16.msra.mxu0 0
        %2752 = vmatprep.subr.bf16.mxu0 0
        %2753 = vmatpush1.bf16.msra.mxu0 0
        %2754 = vmatprep.subr.bf16.mxu0 0
        %2755 = vmatpush1.bf16.msra.mxu0 0
        %2756 = vmatprep.subr.bf16.mxu0 0
        %2757 = vmatpush1.bf16.msra.mxu0 0
        %2758 = vmatprep.subr.bf16.mxu0 0
        %2759 = vmatpush1.bf16.msra.mxu0 0
        %2760 = vmatprep.subr.bf16.mxu0 0
        %2761 = vmatpush1.bf16.msra.mxu0 0
        %2762 = vmatprep.subr.bf16.mxu0 0
        %2763 = vmatpush1.bf16.msra.mxu0 0
        %2764 = vmatprep.subr.bf16.mxu0 0
        %2765 = vmatpush1.bf16.msra.mxu0 0
        %2766 = vmatprep.subr.bf16.mxu0 0
        %2767 = vmatpush1.bf16.msra.mxu0 0
        %2768 = vmatprep.subr.bf16.mxu0 0
        %2769 = vmatpush1.bf16.msra.mxu0 0
        %2770 = vmatprep.subr.bf16.mxu0 0
        %2771 = vmatpush1.bf16.msra.mxu0 0
        %2772 = vmatprep.subr.bf16.mxu0 0
        %2773 = vmatpush1.bf16.msra.mxu0 0
        %2774 = vmatprep.mubr.bf16.mxu0 0
        %2775 = vmatmul.mubr.bf16.gmra.mrb[0].mxu0 %v2568
        %v2776 = vpop.f32.mrb[0].mxu0
        %v2777 = vadd.f32 0.0, %v2776
        %v2778 = vpop.f32.mrb[0].mxu0
        %v2779 = vadd.f32 0.0, %v2778
        %v2780 = vpop.f32.mrb[0].mxu0
        %v2781 = vadd.f32 0.0, %v2780
        %v2782 = vpop.f32.mrb[0].mxu0
        %v2783 = vadd.f32 0.0, %v2782
        %2784 = vdwg.mxu0
        %2785 = vmatprep.subr.bf16.mxu0 %v2530
        %2786 = vmatpush1.bf16.msra.mxu0 %v2529
        %2787 = vmatprep.subr.bf16.mxu0 %v2542
        %2788 = vmatpush1.bf16.msra.mxu0 %v2541
        %2789 = vmatprep.subr.bf16.mxu0 0
        %2790 = vmatpush1.bf16.msra.mxu0 0
        %2791 = vmatprep.subr.bf16.mxu0 0
        %2792 = vmatpush1.bf16.msra.mxu0 0
        %2793 = vmatprep.subr.bf16.mxu0 0
        %2794 = vmatpush1.bf16.msra.mxu0 0
        %2795 = vmatprep.subr.bf16.mxu0 0
        %2796 = vmatpush1.bf16.msra.mxu0 0
        %2797 = vmatprep.subr.bf16.mxu0 0
        %2798 = vmatpush1.bf16.msra.mxu0 0
        %2799 = vmatprep.subr.bf16.mxu0 0
        %2800 = vmatpush1.bf16.msra.mxu0 0
        %2801 = vmatprep.subr.bf16.mxu0 0
        %2802 = vmatpush1.bf16.msra.mxu0 0
        %2803 = vmatprep.subr.bf16.mxu0 0
        %2804 = vmatpush1.bf16.msra.mxu0 0
        %2805 = vmatprep.subr.bf16.mxu0 0
        %2806 = vmatpush1.bf16.msra.mxu0 0
        %2807 = vmatprep.subr.bf16.mxu0 0
        %2808 = vmatpush1.bf16.msra.mxu0 0
        %2809 = vmatprep.subr.bf16.mxu0 0
        %2810 = vmatpush1.bf16.msra.mxu0 0
        %2811 = vmatprep.subr.bf16.mxu0 0
        %2812 = vmatpush1.bf16.msra.mxu0 0
        %2813 = vmatprep.subr.bf16.mxu0 0
        %2814 = vmatpush1.bf16.msra.mxu0 0
        %2815 = vmatprep.subr.bf16.mxu0 0
        %2816 = vmatpush1.bf16.msra.mxu0 0
        %2817 = vmatprep.mubr.bf16.mxu0 0
        %2818 = vmatmul.mubr.bf16.gmra.mrb[0].mxu0 %v2568
        %v2819 = vpop.f32.mrb[0].mxu0
        %v2820 = vadd.f32 0.0, %v2819
        %v2821 = vpop.f32.mrb[0].mxu0
        %v2822 = vadd.f32 0.0, %v2821
        %v2823 = vpop.f32.mrb[0].mxu0
        %v2824 = vadd.f32 0.0, %v2823
        %v2825 = vpop.f32.mrb[0].mxu0
        %v2826 = vadd.f32 0.0, %v2825
        %2827 = vdwg.mxu0
        %s2828 = scalar_lea.vmem %s8, 256
        %v2829 = vld [vmem:[%s2828] sm:$0xf]
        %v2830 = vld [vmem:[%s2828 + $0x4] sm:$0xf]
        %v2831 = vld [vmem:[%s2828 + $0x8] sm:$0xf]
        %v2832 = vld [vmem:[%s2828 + $0xc] sm:$0xf]
        %v2833 = vld [vmem:[%s2828 + $0x10] sm:$0xf]
        %v2834 = vld [vmem:[%s2828 + $0x14] sm:$0xf]
        %v2835 = vld [vmem:[%s2828 + $0x18] sm:$0xf]
        %v2836 = vld [vmem:[%s2828 + $0x1c] sm:$0xf]
        %v2837 = vld [vmem:[%s2828 + $0x20] sm:$0xf]
        %v2838 = vld [vmem:[%s2828 + $0x24] sm:$0xf]
        %v2839 = vld [vmem:[%s2828 + $0x28] sm:$0xf]
        %v2840 = vld [vmem:[%s2828 + $0x2c] sm:$0xf]
        %v2841 = vld [vmem:[%s2828 + $0x30] sm:$0xf]
        %v2842 = vld [vmem:[%s2828 + $0x34] sm:$0xf]
        %v2843 = vld [vmem:[%s2828 + $0x38] sm:$0xf]
        %v2844 = vld [vmem:[%s2828 + $0x3c] sm:$0xf]
        %v2845 = vld [vmem:[%s2828 + $0x40] sm:$0xf]
        %v2846 = vld [vmem:[%s2828 + $0x44] sm:$0xf]
        %v2847 = vld [vmem:[%s2828 + $0x48] sm:$0xf]
        %v2848 = vld [vmem:[%s2828 + $0x4c] sm:$0xf]
        %v2849 = vld [vmem:[%s2828 + $0x50] sm:$0xf]
        %v2850 = vld [vmem:[%s2828 + $0x54] sm:$0xf]
        %v2851 = vld [vmem:[%s2828 + $0x58] sm:$0xf]
        %v2852 = vld [vmem:[%s2828 + $0x5c] sm:$0xf]
        %v2853 = vld [vmem:[%s2828 + $0x60] sm:$0xf]
        %v2854 = vld [vmem:[%s2828 + $0x64] sm:$0xf]
        %v2855 = vld [vmem:[%s2828 + $0x68] sm:$0xf]
        %v2856 = vld [vmem:[%s2828 + $0x6c] sm:$0xf]
        %v2857 = vld [vmem:[%s2828 + $0x70] sm:$0xf]
        %v2858 = vld [vmem:[%s2828 + $0x74] sm:$0xf]
        %v2859 = vld [vmem:[%s2828 + $0x78] sm:$0xf]
        %v2860 = vld [vmem:[%s2828 + $0x7c] sm:$0xf]
        %v2861 = vld [vmem:[%s2828 + $0x80] sm:$0xf]
        %v2862 = vld [vmem:[%s2828 + $0x84] sm:$0xf]
        %v2863 = vld [vmem:[%s2828 + $0x88] sm:$0xf]
        %v2864 = vld [vmem:[%s2828 + $0x8c] sm:$0xf]
        %v2865 = vld [vmem:[%s2828 + $0x90] sm:$0xf]
        %v2866 = vld [vmem:[%s2828 + $0x94] sm:$0xf]
        %v2867 = vld [vmem:[%s2828 + $0x98] sm:$0xf]
        %v2868 = vld [vmem:[%s2828 + $0x9c] sm:$0xf]
        %v2869 = vld [vmem:[%s2828 + $0xa0] sm:$0xf]
        %v2870 = vld [vmem:[%s2828 + $0xa4] sm:$0xf]
        %v2871 = vld [vmem:[%s2828 + $0xa8] sm:$0xf]
        %v2872 = vld [vmem:[%s2828 + $0xac] sm:$0xf]
        %v2873 = vld [vmem:[%s2828 + $0xb0] sm:$0xf]
        %v2874 = vld [vmem:[%s2828 + $0xb4] sm:$0xf]
        %v2875 = vld [vmem:[%s2828 + $0xb8] sm:$0xf]
        %v2876 = vld [vmem:[%s2828 + $0xbc] sm:$0xf]
        %v2877 = vld [vmem:[%s2828 + $0xc0] sm:$0xf]
        %v2878 = vld [vmem:[%s2828 + $0xc4] sm:$0xf]
        %v2879 = vld [vmem:[%s2828 + $0xc8] sm:$0xf]
        %v2880 = vld [vmem:[%s2828 + $0xcc] sm:$0xf]
        %v2881 = vld [vmem:[%s2828 + $0xd0] sm:$0xf]
        %v2882 = vld [vmem:[%s2828 + $0xd4] sm:$0xf]
        %v2883 = vld [vmem:[%s2828 + $0xd8] sm:$0xf]
        %v2884 = vld [vmem:[%s2828 + $0xdc] sm:$0xf]
        %v2885 = vld [vmem:[%s2828 + $0xe0] sm:$0xf]
        %v2886 = vld [vmem:[%s2828 + $0xe4] sm:$0xf]
        %v2887 = vld [vmem:[%s2828 + $0xe8] sm:$0xf]
        %v2888 = vld [vmem:[%s2828 + $0xec] sm:$0xf]
        %v2889 = vld [vmem:[%s2828 + $0xf0] sm:$0xf]
        %v2890 = vld [vmem:[%s2828 + $0xf4] sm:$0xf]
        %v2891 = vld [vmem:[%s2828 + $0xf8] sm:$0xf]
        %v2892 = vld [vmem:[%s2828 + $0xfc] sm:$0xf]
        %v2893 = vpack.c.bf16 %v2609, %v2605
        %v2894 = vpack.c.bf16 %v2695, %v2691
        %v2895 = vpack.c.bf16 %v2781, %v2777
        %2896 = vmatprep.subr.bf16.mxu0 0
        %2897 = vmatpush1.bf16.xpose.msra.mxu0 %v2894
        %2898 = vmatprep.subr.bf16.mxu0 0
        %2899 = vmatpush1.bf16.xpose.msra.mxu0 0
        %2900 = vmatprep.subr.bf16.mxu0 0
        %2901 = vmatpush1.bf16.xpose.msra.mxu0 0
        %2902 = vmatprep.subr.bf16.mxu0 0
        %2903 = vmatpush1.bf16.xpose.msra.mxu0 0
        %2904 = vmatprep.subr.bf16.mxu0 0
        %2905 = vmatpush1.bf16.xpose.msra.mxu0 0
        %2906 = vmatprep.subr.bf16.mxu0 0
        %2907 = vmatpush1.bf16.xpose.msra.mxu0 0
        %2908 = vmatprep.subr.bf16.mxu0 0
        %2909 = vmatpush1.bf16.xpose.msra.mxu0 0
        %2910 = vmatprep.subr.bf16.mxu0 0
        %2911 = vmatpush1.bf16.xpose.msra.mxu0 0
        %2912 = vmatprep.subr.bf16.mxu0 0
        %2913 = vmatpush1.bf16.xpose.msra.mxu0 0
        %2914 = vmatprep.subr.bf16.mxu0 0
        %2915 = vmatpush1.bf16.xpose.msra.mxu0 0
        %2916 = vmatprep.subr.bf16.mxu0 0
        %2917 = vmatpush1.bf16.xpose.msra.mxu0 0
        %2918 = vmatprep.subr.bf16.mxu0 0
        %2919 = vmatpush1.bf16.xpose.msra.mxu0 0
        %2920 = vmatprep.subr.bf16.mxu0 0
        %2921 = vmatpush1.bf16.xpose.msra.mxu0 0
        %2922 = vmatprep.subr.bf16.mxu0 0
        %2923 = vmatpush1.bf16.xpose.msra.mxu0 0
        %2924 = vmatprep.subr.bf16.mxu0 0
        %2925 = vmatpush1.bf16.xpose.msra.mxu0 0
        %2926 = vmatprep.subr.bf16.mxu0 0
        %2927 = vmatpush1.bf16.xpose.msra.mxu0 0
        %2928 = vmatprep.mubr.bf16.mxu0 0
        %2929 = vmatmul.mubr.bf16.gmra.mrb[0].mxu0 %v2893
        %v2930 = vpop.f32.mrb[0].mxu0
        %v2931 = vadd.f32 0.0, %v2930
        %v2932 = vpop.f32.mrb[0].mxu0
        %v2933 = vpop.f32.mrb[0].mxu0
        %v2934 = vadd.f32 0.0, %v2933
        %v2935 = vpop.f32.mrb[0].mxu0
        %2936 = vdwg.mxu0
        %v2937 = vmul.f32 %v2931, 0.125
        %v2938 = vmul.f32 %v2934, 0.125
        %v2939 = vsel %vm775, %v2937, -1e+30
        %v2940 = vsel %vm776, %v2938, -1e+30
        %v2941 = vsel %vm1340, %v2939, -inf
        %2942 = vmax.xlane.f32.xlu0 %v2941
        %v2943 = vpop.xlane.xlu0 %2942
        %v2944 = vsel %vm1340, %v2940, -inf
        %2945 = vmax.xlane.f32.xlu0 %v2944
        %v2946 = vpop.xlane.xlu0 %2945
        %v2947 = vsub.f32 %v2939, %v2943
        %v2948 = vsub.f32 %v2940, %v2946
        %v2949 = vmul.f32 %v2947, 1.442695
        %v2950 = vpow.pop %v2949
        %v2951 = vmul.f32 %v2948, 1.442695
        %v2952 = vpow.pop %v2951
        %v2953 = vsel %vm1340, %v2950, 0.0
        %2954 = vadd.xlane.f32.xlu0 %v2953
        %v2955 = vpop.xlane.xlu0 %2954
        %v2956 = vsel %vm1340, %v2952, 0.0
        %2957 = vadd.xlane.f32.xlu0 %v2956
        %v2958 = vpop.xlane.xlu0 %2957
        %v2959 = vrcp.pop %v2955
        %v2960 = vrcp.pop %v2958
        %v2961 = vmul.f32 %v2950, %v2959
        %v2962 = vmul.f32 %v2952, %v2960
        %v2963 = vpack.c.bf16 %v2962, %v2961
        %v2965 = vsel %vm1340, %v2963, 0
        %2967 = vmatprep.subr.bf16.mxu0 0
        %2968 = vmatpush1.bf16.msra.mxu0 %v2895
        %2969 = vmatprep.subr.bf16.mxu0 0
        %2970 = vmatpush1.bf16.msra.mxu0 0
        %2971 = vmatprep.subr.bf16.mxu0 0
        %2972 = vmatpush1.bf16.msra.mxu0 0
        %2973 = vmatprep.subr.bf16.mxu0 0
        %2974 = vmatpush1.bf16.msra.mxu0 0
        %2975 = vmatprep.subr.bf16.mxu0 0
        %2976 = vmatpush1.bf16.msra.mxu0 0
        %2977 = vmatprep.subr.bf16.mxu0 0
        %2978 = vmatpush1.bf16.msra.mxu0 0
        %2979 = vmatprep.subr.bf16.mxu0 0
        %2980 = vmatpush1.bf16.msra.mxu0 0
        %2981 = vmatprep.subr.bf16.mxu0 0
        %2982 = vmatpush1.bf16.msra.mxu0 0
        %2983 = vmatprep.subr.bf16.mxu0 0
        %2984 = vmatpush1.bf16.msra.mxu0 0
        %2985 = vmatprep.subr.bf16.mxu0 0
        %2986 = vmatpush1.bf16.msra.mxu0 0
        %2987 = vmatprep.subr.bf16.mxu0 0
        %2988 = vmatpush1.bf16.msra.mxu0 0
        %2989 = vmatprep.subr.bf16.mxu0 0
        %2990 = vmatpush1.bf16.msra.mxu0 0
        %2991 = vmatprep.subr.bf16.mxu0 0
        %2992 = vmatpush1.bf16.msra.mxu0 0
        %2993 = vmatprep.subr.bf16.mxu0 0
        %2994 = vmatpush1.bf16.msra.mxu0 0
        %2995 = vmatprep.subr.bf16.mxu0 0
        %2996 = vmatpush1.bf16.msra.mxu0 0
        %2997 = vmatprep.subr.bf16.mxu0 0
        %2998 = vmatpush1.bf16.msra.mxu0 0
        %2999 = vmatprep.mubr.bf16.mxu0 0
        %3000 = vmatmul.mubr.bf16.gmra.mrb[0].mxu0 %v2965
        %v3001 = vpop.f32.mrb[0].mxu0
        %v3002 = vadd.f32 0.0, %v3001
        %v3003 = vpop.f32.mrb[0].mxu0
        %v3004 = vpop.f32.mrb[0].mxu0
        %v3005 = vadd.f32 0.0, %v3004
        %v3006 = vpop.f32.mrb[0].mxu0
        %3007 = vdwg.mxu0
        %v3008 = vpack.c.bf16 %v3005, %v3002
        %v3009 = vpack.c.bf16 %v2611, %v2607
        %v3010 = vpack.c.bf16 %v2697, %v2693
        %v3011 = vpack.c.bf16 %v2783, %v2779
        %3012 = vmatprep.subr.bf16.mxu0 0
        %3013 = vmatpush1.bf16.xpose.msra.mxu0 %v3010
        %3014 = vmatprep.subr.bf16.mxu0 0
        %3015 = vmatpush1.bf16.xpose.msra.mxu0 0
        %3016 = vmatprep.subr.bf16.mxu0 0
        %3017 = vmatpush1.bf16.xpose.msra.mxu0 0
        %3018 = vmatprep.subr.bf16.mxu0 0
        %3019 = vmatpush1.bf16.xpose.msra.mxu0 0
        %3020 = vmatprep.subr.bf16.mxu0 0
        %3021 = vmatpush1.bf16.xpose.msra.mxu0 0
        %3022 = vmatprep.subr.bf16.mxu0 0
        %3023 = vmatpush1.bf16.xpose.msra.mxu0 0
        %3024 = vmatprep.subr.bf16.mxu0 0
        %3025 = vmatpush1.bf16.xpose.msra.mxu0 0
        %3026 = vmatprep.subr.bf16.mxu0 0
        %3027 = vmatpush1.bf16.xpose.msra.mxu0 0
        %3028 = vmatprep.subr.bf16.mxu0 0
        %3029 = vmatpush1.bf16.xpose.msra.mxu0 0
        %3030 = vmatprep.subr.bf16.mxu0 0
        %3031 = vmatpush1.bf16.xpose.msra.mxu0 0
        %3032 = vmatprep.subr.bf16.mxu0 0
        %3033 = vmatpush1.bf16.xpose.msra.mxu0 0
        %3034 = vmatprep.subr.bf16.mxu0 0
        %3035 = vmatpush1.bf16.xpose.msra.mxu0 0
        %3036 = vmatprep.subr.bf16.mxu0 0
        %3037 = vmatpush1.bf16.xpose.msra.mxu0 0
        %3038 = vmatprep.subr.bf16.mxu0 0
        %3039 = vmatpush1.bf16.xpose.msra.mxu0 0
        %3040 = vmatprep.subr.bf16.mxu0 0
        %3041 = vmatpush1.bf16.xpose.msra.mxu0 0
        %3042 = vmatprep.subr.bf16.mxu0 0
        %3043 = vmatpush1.bf16.xpose.msra.mxu0 0
        %3044 = vmatprep.mubr.bf16.mxu0 0
        %3045 = vmatmul.mubr.bf16.gmra.mrb[0].mxu0 %v3009
        %v3046 = vpop.f32.mrb[0].mxu0
        %v3047 = vadd.f32 0.0, %v3046
        %v3048 = vpop.f32.mrb[0].mxu0
        %v3049 = vpop.f32.mrb[0].mxu0
        %v3050 = vadd.f32 0.0, %v3049
        %v3051 = vpop.f32.mrb[0].mxu0
        %3052 = vdwg.mxu0
        %v3053 = vmul.f32 %v3047, 0.125
        %v3054 = vmul.f32 %v3050, 0.125
        %v3055 = vsel %vm775, %v3053, -1e+30
        %v3056 = vsel %vm776, %v3054, -1e+30
        %v3057 = vsel %vm1340, %v3055, -inf
        %3058 = vmax.xlane.f32.xlu0 %v3057
        %v3059 = vpop.xlane.xlu0 %3058
        %v3060 = vsel %vm1340, %v3056, -inf
        %3061 = vmax.xlane.f32.xlu0 %v3060
        %v3062 = vpop.xlane.xlu0 %3061
        %v3063 = vsub.f32 %v3055, %v3059
        %v3064 = vsub.f32 %v3056, %v3062
        %v3065 = vmul.f32 %v3063, 1.442695
        %v3066 = vpow.pop %v3065
        %v3067 = vmul.f32 %v3064, 1.442695
        %v3068 = vpow.pop %v3067
        %v3069 = vsel %vm1340, %v3066, 0.0
        %3070 = vadd.xlane.f32.xlu0 %v3069
        %v3071 = vpop.xlane.xlu0 %3070
        %v3072 = vsel %vm1340, %v3068, 0.0
        %3073 = vadd.xlane.f32.xlu0 %v3072
        %v3074 = vpop.xlane.xlu0 %3073
        %v3075 = vrcp.pop %v3071
        %v3076 = vrcp.pop %v3074
        %v3077 = vmul.f32 %v3066, %v3075
        %v3078 = vmul.f32 %v3068, %v3076
        %v3079 = vpack.c.bf16 %v3078, %v3077
        %v3081 = vsel %vm1340, %v3079, 0
        %3083 = vmatprep.subr.bf16.mxu0 0
        %3084 = vmatpush1.bf16.msra.mxu0 %v3011
        %3085 = vmatprep.subr.bf16.mxu0 0
        %3086 = vmatpush1.bf16.msra.mxu0 0
        %3087 = vmatprep.subr.bf16.mxu0 0
        %3088 = vmatpush1.bf16.msra.mxu0 0
        %3089 = vmatprep.subr.bf16.mxu0 0
        %3090 = vmatpush1.bf16.msra.mxu0 0
        %3091 = vmatprep.subr.bf16.mxu0 0
        %3092 = vmatpush1.bf16.msra.mxu0 0
        %3093 = vmatprep.subr.bf16.mxu0 0
        %3094 = vmatpush1.bf16.msra.mxu0 0
        %3095 = vmatprep.subr.bf16.mxu0 0
        %3096 = vmatpush1.bf16.msra.mxu0 0
        %3097 = vmatprep.subr.bf16.mxu0 0
        %3098 = vmatpush1.bf16.msra.mxu0 0
        %3099 = vmatprep.subr.bf16.mxu0 0
        %3100 = vmatpush1.bf16.msra.mxu0 0
        %3101 = vmatprep.subr.bf16.mxu0 0
        %3102 = vmatpush1.bf16.msra.mxu0 0
        %3103 = vmatprep.subr.bf16.mxu0 0
        %3104 = vmatpush1.bf16.msra.mxu0 0
        %3105 = vmatprep.subr.bf16.mxu0 0
        %3106 = vmatpush1.bf16.msra.mxu0 0
        %3107 = vmatprep.subr.bf16.mxu0 0
        %3108 = vmatpush1.bf16.msra.mxu0 0
        %3109 = vmatprep.subr.bf16.mxu0 0
        %3110 = vmatpush1.bf16.msra.mxu0 0
        %3111 = vmatprep.subr.bf16.mxu0 0
        %3112 = vmatpush1.bf16.msra.mxu0 0
        %3113 = vmatprep.subr.bf16.mxu0 0
        %3114 = vmatpush1.bf16.msra.mxu0 0
        %3115 = vmatprep.mubr.bf16.mxu0 0
        %3116 = vmatmul.mubr.bf16.gmra.mrb[0].mxu0 %v3081
        %v3117 = vpop.f32.mrb[0].mxu0
        %v3118 = vadd.f32 0.0, %v3117
        %v3119 = vpop.f32.mrb[0].mxu0
        %v3120 = vpop.f32.mrb[0].mxu0
        %v3121 = vadd.f32 0.0, %v3120
        %v3122 = vpop.f32.mrb[0].mxu0
        %3123 = vdwg.mxu0
        %v3124 = vpack.c.bf16 %v3121, %v3118
        %v3141 = vunpack.c.l.b16 %v2845
        %v3142 = vunpack.c.l.b16 %v2846
        %v3143 = vunpack.c.l.b16 %v2847
        %v3144 = vunpack.c.l.b16 %v2848
        %v3145 = vunpack.c.l.b16 %v2849
        %v3146 = vunpack.c.l.b16 %v2850
        %v3147 = vunpack.c.l.b16 %v2851
        %v3148 = vunpack.c.l.b16 %v2852
        %v3149 = vunpack.c.l.b16 %v2853
        %v3150 = vunpack.c.l.b16 %v2854
        %v3151 = vunpack.c.l.b16 %v2855
        %v3152 = vunpack.c.l.b16 %v2856
        %v3153 = vunpack.c.l.b16 %v2857
        %v3154 = vunpack.c.l.b16 %v2858
        %v3155 = vunpack.c.l.b16 %v2859
        %v3156 = vunpack.c.l.b16 %v2860
        %v3157 = vpack.c.b16 %v3142, %v3141
        %v3158 = vpack.c.b16 %v3144, %v3143
        %v3159 = vpack.c.b16 %v3146, %v3145
        %v3160 = vpack.c.b16 %v3148, %v3147
        %v3161 = vpack.c.b16 %v3150, %v3149
        %v3162 = vpack.c.b16 %v3152, %v3151
        %v3163 = vpack.c.b16 %v3154, %v3153
        %v3164 = vpack.c.b16 %v3156, %v3155
        %3173 = vmatprep.subr.bf16.mxu0 0
        %3174 = vmatpush1.bf16.msra.mxu0 %v3157
        %3175 = vmatprep.subr.bf16.mxu0 0
        %3176 = vmatpush1.bf16.msra.mxu0 %v3158
        %3177 = vmatprep.subr.bf16.mxu0 0
        %3178 = vmatpush1.bf16.msra.mxu0 %v3159
        %3179 = vmatprep.subr.bf16.mxu0 0
        %3180 = vmatpush1.bf16.msra.mxu0 %v3160
        %3181 = vmatprep.subr.bf16.mxu0 0
        %3182 = vmatpush1.bf16.msra.mxu0 %v3161
        %3183 = vmatprep.subr.bf16.mxu0 0
        %3184 = vmatpush1.bf16.msra.mxu0 %v3162
        %3185 = vmatprep.subr.bf16.mxu0 0
        %3186 = vmatpush1.bf16.msra.mxu0 %v3163
        %3187 = vmatprep.subr.bf16.mxu0 0
        %3188 = vmatpush1.bf16.msra.mxu0 %v3164
        %3189 = vmatprep.subr.bf16.mxu0 0
        %3190 = vmatpush1.bf16.msra.mxu0 0
        %3191 = vmatprep.subr.bf16.mxu0 0
        %3192 = vmatpush1.bf16.msra.mxu0 0
        %3193 = vmatprep.subr.bf16.mxu0 0
        %3194 = vmatpush1.bf16.msra.mxu0 0
        %3195 = vmatprep.subr.bf16.mxu0 0
        %3196 = vmatpush1.bf16.msra.mxu0 0
        %3197 = vmatprep.subr.bf16.mxu0 0
        %3198 = vmatpush1.bf16.msra.mxu0 0
        %3199 = vmatprep.subr.bf16.mxu0 0
        %3200 = vmatpush1.bf16.msra.mxu0 0
        %3201 = vmatprep.subr.bf16.mxu0 0
        %3202 = vmatpush1.bf16.msra.mxu0 0
        %3203 = vmatprep.subr.bf16.mxu0 0
        %3204 = vmatpush1.bf16.msra.mxu0 0
        %3205 = vmatprep.mubr.bf16.mxu0 0
        %3206 = vmatmul.mubr.bf16.gmra.mrb[0].mxu0 %v3124
        %v3207 = vpop.f32.mrb[0].mxu0
        %v3208 = vadd.f32 0.0, %v3207
        %v3209 = vpop.f32.mrb[0].mxu0
        %v3210 = vpop.f32.mrb[0].mxu0
        %v3211 = vadd.f32 0.0, %v3210
        %v3212 = vpop.f32.mrb[0].mxu0
        %3213 = vdwg.mxu0
        %v3230 = vunpack.c.l.b16 %v2829
        %v3231 = vunpack.c.l.b16 %v2830
        %v3232 = vunpack.c.l.b16 %v2831
        %v3233 = vunpack.c.l.b16 %v2832
        %v3234 = vunpack.c.l.b16 %v2833
        %v3235 = vunpack.c.l.b16 %v2834
        %v3236 = vunpack.c.l.b16 %v2835
        %v3237 = vunpack.c.l.b16 %v2836
        %v3238 = vunpack.c.l.b16 %v2837
        %v3239 = vunpack.c.l.b16 %v2838
        %v3240 = vunpack.c.l.b16 %v2839
        %v3241 = vunpack.c.l.b16 %v2840
        %v3242 = vunpack.c.l.b16 %v2841
        %v3243 = vunpack.c.l.b16 %v2842
        %v3244 = vunpack.c.l.b16 %v2843
        %v3245 = vunpack.c.l.b16 %v2844
        %v3246 = vpack.c.b16 %v3231, %v3230
        %v3247 = vpack.c.b16 %v3233, %v3232
        %v3248 = vpack.c.b16 %v3235, %v3234
        %v3249 = vpack.c.b16 %v3237, %v3236
        %v3250 = vpack.c.b16 %v3239, %v3238
        %v3251 = vpack.c.b16 %v3241, %v3240
        %v3252 = vpack.c.b16 %v3243, %v3242
        %v3253 = vpack.c.b16 %v3245, %v3244
        %3262 = vmatprep.subr.bf16.mxu0 0
        %3263 = vmatpush1.bf16.msra.mxu0 %v3246
        %3264 = vmatprep.subr.bf16.mxu0 0
        %3265 = vmatpush1.bf16.msra.mxu0 %v3247
        %3266 = vmatprep.subr.bf16.mxu0 0
        %3267 = vmatpush1.bf16.msra.mxu0 %v3248
        %3268 = vmatprep.subr.bf16.mxu0 0
        %3269 = vmatpush1.bf16.msra.mxu0 %v3249
        %3270 = vmatprep.subr.bf16.mxu0 0
        %3271 = vmatpush1.bf16.msra.mxu0 %v3250
        %3272 = vmatprep.subr.bf16.mxu0 0
        %3273 = vmatpush1.bf16.msra.mxu0 %v3251
        %3274 = vmatprep.subr.bf16.mxu0 0
        %3275 = vmatpush1.bf16.msra.mxu0 %v3252
        %3276 = vmatprep.subr.bf16.mxu0 0
        %3277 = vmatpush1.bf16.msra.mxu0 %v3253
        %3278 = vmatprep.subr.bf16.mxu0 0
        %3279 = vmatpush1.bf16.msra.mxu0 0
        %3280 = vmatprep.subr.bf16.mxu0 0
        %3281 = vmatpush1.bf16.msra.mxu0 0
        %3282 = vmatprep.subr.bf16.mxu0 0
        %3283 = vmatpush1.bf16.msra.mxu0 0
        %3284 = vmatprep.subr.bf16.mxu0 0
        %3285 = vmatpush1.bf16.msra.mxu0 0
        %3286 = vmatprep.subr.bf16.mxu0 0
        %3287 = vmatpush1.bf16.msra.mxu0 0
        %3288 = vmatprep.subr.bf16.mxu0 0
        %3289 = vmatpush1.bf16.msra.mxu0 0
        %3290 = vmatprep.subr.bf16.mxu0 0
        %3291 = vmatpush1.bf16.msra.mxu0 0
        %3292 = vmatprep.subr.bf16.mxu0 0
        %3293 = vmatpush1.bf16.msra.mxu0 0
        %3294 = vmatprep.mubr.bf16.mxu0 0
        %3295 = vmatmul.mubr.bf16.gmra.mrb[0].mxu0 %v3008
        %v3296 = vpop.f32.mrb[0].mxu0
        %v3297 = vadd.f32 %v3208, %v3296
        %v3298 = vpop.f32.mrb[0].mxu0
        %v3299 = vpop.f32.mrb[0].mxu0
        %v3300 = vadd.f32 %v3211, %v3299
        %v3301 = vpop.f32.mrb[0].mxu0
        %3302 = vdwg.mxu0
        %v3303 = vpack.c.bf16 %v2652, %v2648
        %v3304 = vpack.c.bf16 %v2738, %v2734
        %v3305 = vpack.c.bf16 %v2824, %v2820
        %3306 = vmatprep.subr.bf16.mxu0 0
        %3307 = vmatpush1.bf16.xpose.msra.mxu0 %v3304
        %3308 = vmatprep.subr.bf16.mxu0 0
        %3309 = vmatpush1.bf16.xpose.msra.mxu0 0
        %3310 = vmatprep.subr.bf16.mxu0 0
        %3311 = vmatpush1.bf16.xpose.msra.mxu0 0
        %3312 = vmatprep.subr.bf16.mxu0 0
        %3313 = vmatpush1.bf16.xpose.msra.mxu0 0
        %3314 = vmatprep.subr.bf16.mxu0 0
        %3315 = vmatpush1.bf16.xpose.msra.mxu0 0
        %3316 = vmatprep.subr.bf16.mxu0 0
        %3317 = vmatpush1.bf16.xpose.msra.mxu0 0
        %3318 = vmatprep.subr.bf16.mxu0 0
        %3319 = vmatpush1.bf16.xpose.msra.mxu0 0
        %3320 = vmatprep.subr.bf16.mxu0 0
        %3321 = vmatpush1.bf16.xpose.msra.mxu0 0
        %3322 = vmatprep.subr.bf16.mxu0 0
        %3323 = vmatpush1.bf16.xpose.msra.mxu0 0
        %3324 = vmatprep.subr.bf16.mxu0 0
        %3325 = vmatpush1.bf16.xpose.msra.mxu0 0
        %3326 = vmatprep.subr.bf16.mxu0 0
        %3327 = vmatpush1.bf16.xpose.msra.mxu0 0
        %3328 = vmatprep.subr.bf16.mxu0 0
        %3329 = vmatpush1.bf16.xpose.msra.mxu0 0
        %3330 = vmatprep.subr.bf16.mxu0 0
        %3331 = vmatpush1.bf16.xpose.msra.mxu0 0
        %3332 = vmatprep.subr.bf16.mxu0 0
        %3333 = vmatpush1.bf16.xpose.msra.mxu0 0
        %3334 = vmatprep.subr.bf16.mxu0 0
        %3335 = vmatpush1.bf16.xpose.msra.mxu0 0
        %3336 = vmatprep.subr.bf16.mxu0 0
        %3337 = vmatpush1.bf16.xpose.msra.mxu0 0
        %3338 = vmatprep.mubr.bf16.mxu0 0
        %3339 = vmatmul.mubr.bf16.gmra.mrb[0].mxu0 %v3303
        %v3340 = vpop.f32.mrb[0].mxu0
        %v3341 = vadd.f32 0.0, %v3340
        %v3342 = vpop.f32.mrb[0].mxu0
        %v3343 = vpop.f32.mrb[0].mxu0
        %v3344 = vadd.f32 0.0, %v3343
        %v3345 = vpop.f32.mrb[0].mxu0
        %3346 = vdwg.mxu0
        %v3347 = vmul.f32 %v3341, 0.125
        %v3348 = vmul.f32 %v3344, 0.125
        %v3349 = vsel %vm775, %v3347, -1e+30
        %v3350 = vsel %vm776, %v3348, -1e+30
        %v3351 = vsel %vm1340, %v3349, -inf
        %3352 = vmax.xlane.f32.xlu0 %v3351
        %v3353 = vpop.xlane.xlu0 %3352
        %v3354 = vsel %vm1340, %v3350, -inf
        %3355 = vmax.xlane.f32.xlu0 %v3354
        %v3356 = vpop.xlane.xlu0 %3355
        %v3357 = vsub.f32 %v3349, %v3353
        %v3358 = vsub.f32 %v3350, %v3356
        %v3359 = vmul.f32 %v3357, 1.442695
        %v3360 = vpow.pop %v3359
        %v3361 = vmul.f32 %v3358, 1.442695
        %v3362 = vpow.pop %v3361
        %v3363 = vsel %vm1340, %v3360, 0.0
        %3364 = vadd.xlane.f32.xlu0 %v3363
        %v3365 = vpop.xlane.xlu0 %3364
        %v3366 = vsel %vm1340, %v3362, 0.0
        %3367 = vadd.xlane.f32.xlu0 %v3366
        %v3368 = vpop.xlane.xlu0 %3367
        %v3369 = vrcp.pop %v3365
        %v3370 = vrcp.pop %v3368
        %v3371 = vmul.f32 %v3360, %v3369
        %v3372 = vmul.f32 %v3362, %v3370
        %v3373 = vpack.c.bf16 %v3372, %v3371
        %v3375 = vsel %vm1340, %v3373, 0
        %3377 = vmatprep.subr.bf16.mxu0 0
        %3378 = vmatpush1.bf16.msra.mxu0 %v3305
        %3379 = vmatprep.subr.bf16.mxu0 0
        %3380 = vmatpush1.bf16.msra.mxu0 0
        %3381 = vmatprep.subr.bf16.mxu0 0
        %3382 = vmatpush1.bf16.msra.mxu0 0
        %3383 = vmatprep.subr.bf16.mxu0 0
        %3384 = vmatpush1.bf16.msra.mxu0 0
        %3385 = vmatprep.subr.bf16.mxu0 0
        %3386 = vmatpush1.bf16.msra.mxu0 0
        %3387 = vmatprep.subr.bf16.mxu0 0
        %3388 = vmatpush1.bf16.msra.mxu0 0
        %3389 = vmatprep.subr.bf16.mxu0 0
        %3390 = vmatpush1.bf16.msra.mxu0 0
        %3391 = vmatprep.subr.bf16.mxu0 0
        %3392 = vmatpush1.bf16.msra.mxu0 0
        %3393 = vmatprep.subr.bf16.mxu0 0
        %3394 = vmatpush1.bf16.msra.mxu0 0
        %3395 = vmatprep.subr.bf16.mxu0 0
        %3396 = vmatpush1.bf16.msra.mxu0 0
        %3397 = vmatprep.subr.bf16.mxu0 0
        %3398 = vmatpush1.bf16.msra.mxu0 0
        %3399 = vmatprep.subr.bf16.mxu0 0
        %3400 = vmatpush1.bf16.msra.mxu0 0
        %3401 = vmatprep.subr.bf16.mxu0 0
        %3402 = vmatpush1.bf16.msra.mxu0 0
        %3403 = vmatprep.subr.bf16.mxu0 0
        %3404 = vmatpush1.bf16.msra.mxu0 0
        %3405 = vmatprep.subr.bf16.mxu0 0
        %3406 = vmatpush1.bf16.msra.mxu0 0
        %3407 = vmatprep.subr.bf16.mxu0 0
        %3408 = vmatpush1.bf16.msra.mxu0 0
        %3409 = vmatprep.mubr.bf16.mxu0 0
        %3410 = vmatmul.mubr.bf16.gmra.mrb[0].mxu0 %v3375
        %v3411 = vpop.f32.mrb[0].mxu0
        %v3412 = vadd.f32 0.0, %v3411
        %v3413 = vpop.f32.mrb[0].mxu0
        %v3414 = vpop.f32.mrb[0].mxu0
        %v3415 = vadd.f32 0.0, %v3414
        %v3416 = vpop.f32.mrb[0].mxu0
        %3417 = vdwg.mxu0
        %v3418 = vpack.c.bf16 %v3415, %v3412
        %v3435 = vunpack.c.l.b16 %v2861
        %v3436 = vunpack.c.l.b16 %v2862
        %v3437 = vunpack.c.l.b16 %v2863
        %v3438 = vunpack.c.l.b16 %v2864
        %v3439 = vunpack.c.l.b16 %v2865
        %v3440 = vunpack.c.l.b16 %v2866
        %v3441 = vunpack.c.l.b16 %v2867
        %v3442 = vunpack.c.l.b16 %v2868
        %v3443 = vunpack.c.l.b16 %v2869
        %v3444 = vunpack.c.l.b16 %v2870
        %v3445 = vunpack.c.l.b16 %v2871
        %v3446 = vunpack.c.l.b16 %v2872
        %v3447 = vunpack.c.l.b16 %v2873
        %v3448 = vunpack.c.l.b16 %v2874
        %v3449 = vunpack.c.l.b16 %v2875
        %v3450 = vunpack.c.l.b16 %v2876
        %v3451 = vpack.c.b16 %v3436, %v3435
        %v3452 = vpack.c.b16 %v3438, %v3437
        %v3453 = vpack.c.b16 %v3440, %v3439
        %v3454 = vpack.c.b16 %v3442, %v3441
        %v3455 = vpack.c.b16 %v3444, %v3443
        %v3456 = vpack.c.b16 %v3446, %v3445
        %v3457 = vpack.c.b16 %v3448, %v3447
        %v3458 = vpack.c.b16 %v3450, %v3449
        %3467 = vmatprep.subr.bf16.mxu0 0
        %3468 = vmatpush1.bf16.msra.mxu0 %v3451
        %3469 = vmatprep.subr.bf16.mxu0 0
        %3470 = vmatpush1.bf16.msra.mxu0 %v3452
        %3471 = vmatprep.subr.bf16.mxu0 0
        %3472 = vmatpush1.bf16.msra.mxu0 %v3453
        %3473 = vmatprep.subr.bf16.mxu0 0
        %3474 = vmatpush1.bf16.msra.mxu0 %v3454
        %3475 = vmatprep.subr.bf16.mxu0 0
        %3476 = vmatpush1.bf16.msra.mxu0 %v3455
        %3477 = vmatprep.subr.bf16.mxu0 0
        %3478 = vmatpush1.bf16.msra.mxu0 %v3456
        %3479 = vmatprep.subr.bf16.mxu0 0
        %3480 = vmatpush1.bf16.msra.mxu0 %v3457
        %3481 = vmatprep.subr.bf16.mxu0 0
        %3482 = vmatpush1.bf16.msra.mxu0 %v3458
        %3483 = vmatprep.subr.bf16.mxu0 0
        %3484 = vmatpush1.bf16.msra.mxu0 0
        %3485 = vmatprep.subr.bf16.mxu0 0
        %3486 = vmatpush1.bf16.msra.mxu0 0
        %3487 = vmatprep.subr.bf16.mxu0 0
        %3488 = vmatpush1.bf16.msra.mxu0 0
        %3489 = vmatprep.subr.bf16.mxu0 0
        %3490 = vmatpush1.bf16.msra.mxu0 0
        %3491 = vmatprep.subr.bf16.mxu0 0
        %3492 = vmatpush1.bf16.msra.mxu0 0
        %3493 = vmatprep.subr.bf16.mxu0 0
        %3494 = vmatpush1.bf16.msra.mxu0 0
        %3495 = vmatprep.subr.bf16.mxu0 0
        %3496 = vmatpush1.bf16.msra.mxu0 0
        %3497 = vmatprep.subr.bf16.mxu0 0
        %3498 = vmatpush1.bf16.msra.mxu0 0
        %3499 = vmatprep.mubr.bf16.mxu0 0
        %3500 = vmatmul.mubr.bf16.gmra.mrb[0].mxu0 %v3418
        %v3501 = vpop.f32.mrb[0].mxu0
        %v3502 = vadd.f32 0.0, %v3501
        %v3503 = vpop.f32.mrb[0].mxu0
        %v3504 = vpop.f32.mrb[0].mxu0
        %v3505 = vadd.f32 0.0, %v3504
        %v3506 = vpop.f32.mrb[0].mxu0
        %3507 = vdwg.mxu0
        %v3508 = vadd.f32 %v3297, %v3502
        %v3509 = vadd.f32 %v3300, %v3505
        %v3510 = vpack.c.bf16 %v2654, %v2650
        %v3511 = vpack.c.bf16 %v2740, %v2736
        %v3512 = vpack.c.bf16 %v2826, %v2822
        %3513 = vmatprep.subr.bf16.mxu0 0
        %3514 = vmatpush1.bf16.xpose.msra.mxu0 %v3511
        %3515 = vmatprep.subr.bf16.mxu0 0
        %3516 = vmatpush1.bf16.xpose.msra.mxu0 0
        %3517 = vmatprep.subr.bf16.mxu0 0
        %3518 = vmatpush1.bf16.xpose.msra.mxu0 0
        %3519 = vmatprep.subr.bf16.mxu0 0
        %3520 = vmatpush1.bf16.xpose.msra.mxu0 0
        %3521 = vmatprep.subr.bf16.mxu0 0
        %3522 = vmatpush1.bf16.xpose.msra.mxu0 0
        %3523 = vmatprep.subr.bf16.mxu0 0
        %3524 = vmatpush1.bf16.xpose.msra.mxu0 0
        %3525 = vmatprep.subr.bf16.mxu0 0
        %3526 = vmatpush1.bf16.xpose.msra.mxu0 0
        %3527 = vmatprep.subr.bf16.mxu0 0
        %3528 = vmatpush1.bf16.xpose.msra.mxu0 0
        %3529 = vmatprep.subr.bf16.mxu0 0
        %3530 = vmatpush1.bf16.xpose.msra.mxu0 0
        %3531 = vmatprep.subr.bf16.mxu0 0
        %3532 = vmatpush1.bf16.xpose.msra.mxu0 0
        %3533 = vmatprep.subr.bf16.mxu0 0
        %3534 = vmatpush1.bf16.xpose.msra.mxu0 0
        %3535 = vmatprep.subr.bf16.mxu0 0
        %3536 = vmatpush1.bf16.xpose.msra.mxu0 0
        %3537 = vmatprep.subr.bf16.mxu0 0
        %3538 = vmatpush1.bf16.xpose.msra.mxu0 0
        %3539 = vmatprep.subr.bf16.mxu0 0
        %3540 = vmatpush1.bf16.xpose.msra.mxu0 0
        %3541 = vmatprep.subr.bf16.mxu0 0
        %3542 = vmatpush1.bf16.xpose.msra.mxu0 0
        %3543 = vmatprep.subr.bf16.mxu0 0
        %3544 = vmatpush1.bf16.xpose.msra.mxu0 0
        %3545 = vmatprep.mubr.bf16.mxu0 0
        %3546 = vmatmul.mubr.bf16.gmra.mrb[0].mxu0 %v3510
        %v3547 = vpop.f32.mrb[0].mxu0
        %v3548 = vadd.f32 0.0, %v3547
        %v3549 = vpop.f32.mrb[0].mxu0
        %v3550 = vpop.f32.mrb[0].mxu0
        %v3551 = vadd.f32 0.0, %v3550
        %v3552 = vpop.f32.mrb[0].mxu0
        %3553 = vdwg.mxu0
        %v3554 = vmul.f32 %v3548, 0.125
        %v3555 = vmul.f32 %v3551, 0.125
        %v3556 = vsel %vm775, %v3554, -1e+30
        %v3557 = vsel %vm776, %v3555, -1e+30
        %v3558 = vsel %vm1340, %v3556, -inf
        %3559 = vmax.xlane.f32.xlu0 %v3558
        %v3560 = vpop.xlane.xlu0 %3559
        %v3561 = vsel %vm1340, %v3557, -inf
        %3562 = vmax.xlane.f32.xlu0 %v3561
        %v3563 = vpop.xlane.xlu0 %3562
        %v3564 = vsub.f32 %v3556, %v3560
        %v3565 = vsub.f32 %v3557, %v3563
        %v3566 = vmul.f32 %v3564, 1.442695
        %v3567 = vpow.pop %v3566
        %v3568 = vmul.f32 %v3565, 1.442695
        %v3569 = vpow.pop %v3568
        %v3570 = vsel %vm1340, %v3567, 0.0
        %3571 = vadd.xlane.f32.xlu0 %v3570
        %v3572 = vpop.xlane.xlu0 %3571
        %v3573 = vsel %vm1340, %v3569, 0.0
        %3574 = vadd.xlane.f32.xlu0 %v3573
        %v3575 = vpop.xlane.xlu0 %3574
        %v3576 = vrcp.pop %v3572
        %v3577 = vrcp.pop %v3575
        %v3578 = vmul.f32 %v3567, %v3576
        %v3579 = vmul.f32 %v3569, %v3577
        %v3580 = vpack.c.bf16 %v3579, %v3578
        %v3582 = vsel %vm1340, %v3580, 0
        %3584 = vmatprep.subr.bf16.mxu0 0
        %3585 = vmatpush1.bf16.msra.mxu0 %v3512
        %3586 = vmatprep.subr.bf16.mxu0 0
        %3587 = vmatpush1.bf16.msra.mxu0 0
        %3588 = vmatprep.subr.bf16.mxu0 0
        %3589 = vmatpush1.bf16.msra.mxu0 0
        %3590 = vmatprep.subr.bf16.mxu0 0
        %3591 = vmatpush1.bf16.msra.mxu0 0
        %3592 = vmatprep.subr.bf16.mxu0 0
        %3593 = vmatpush1.bf16.msra.mxu0 0
        %3594 = vmatprep.subr.bf16.mxu0 0
        %3595 = vmatpush1.bf16.msra.mxu0 0
        %3596 = vmatprep.subr.bf16.mxu0 0
        %3597 = vmatpush1.bf16.msra.mxu0 0
        %3598 = vmatprep.subr.bf16.mxu0 0
        %3599 = vmatpush1.bf16.msra.mxu0 0
        %3600 = vmatprep.subr.bf16.mxu0 0
        %3601 = vmatpush1.bf16.msra.mxu0 0
        %3602 = vmatprep.subr.bf16.mxu0 0
        %3603 = vmatpush1.bf16.msra.mxu0 0
        %3604 = vmatprep.subr.bf16.mxu0 0
        %3605 = vmatpush1.bf16.msra.mxu0 0
        %3606 = vmatprep.subr.bf16.mxu0 0
        %3607 = vmatpush1.bf16.msra.mxu0 0
        %3608 = vmatprep.subr.bf16.mxu0 0
        %3609 = vmatpush1.bf16.msra.mxu0 0
        %3610 = vmatprep.subr.bf16.mxu0 0
        %3611 = vmatpush1.bf16.msra.mxu0 0
        %3612 = vmatprep.subr.bf16.mxu0 0
        %3613 = vmatpush1.bf16.msra.mxu0 0
        %3614 = vmatprep.subr.bf16.mxu0 0
        %3615 = vmatpush1.bf16.msra.mxu0 0
        %3616 = vmatprep.mubr.bf16.mxu0 0
        %3617 = vmatmul.mubr.bf16.gmra.mrb[0].mxu0 %v3582
        %v3618 = vpop.f32.mrb[0].mxu0
        %v3619 = vadd.f32 0.0, %v3618
        %v3620 = vpop.f32.mrb[0].mxu0
        %v3621 = vpop.f32.mrb[0].mxu0
        %v3622 = vadd.f32 0.0, %v3621
        %v3623 = vpop.f32.mrb[0].mxu0
        %3624 = vdwg.mxu0
        %v3625 = vpack.c.bf16 %v3622, %v3619
        %v3642 = vunpack.c.l.b16 %v2877
        %v3643 = vunpack.c.l.b16 %v2878
        %v3644 = vunpack.c.l.b16 %v2879
        %v3645 = vunpack.c.l.b16 %v2880
        %v3646 = vunpack.c.l.b16 %v2881
        %v3647 = vunpack.c.l.b16 %v2882
        %v3648 = vunpack.c.l.b16 %v2883
        %v3649 = vunpack.c.l.b16 %v2884
        %v3650 = vunpack.c.l.b16 %v2885
        %v3651 = vunpack.c.l.b16 %v2886
        %v3652 = vunpack.c.l.b16 %v2887
        %v3653 = vunpack.c.l.b16 %v2888
        %v3654 = vunpack.c.l.b16 %v2889
        %v3655 = vunpack.c.l.b16 %v2890
        %v3656 = vunpack.c.l.b16 %v2891
        %v3657 = vunpack.c.l.b16 %v2892
        %v3658 = vpack.c.b16 %v3643, %v3642
        %v3659 = vpack.c.b16 %v3645, %v3644
        %v3660 = vpack.c.b16 %v3647, %v3646
        %v3661 = vpack.c.b16 %v3649, %v3648
        %v3662 = vpack.c.b16 %v3651, %v3650
        %v3663 = vpack.c.b16 %v3653, %v3652
        %v3664 = vpack.c.b16 %v3655, %v3654
        %v3665 = vpack.c.b16 %v3657, %v3656
        %3674 = vmatprep.subr.bf16.mxu0 0
        %3675 = vmatpush1.bf16.msra.mxu0 %v3658
        %3676 = vmatprep.subr.bf16.mxu0 0
        %3677 = vmatpush1.bf16.msra.mxu0 %v3659
        %3678 = vmatprep.subr.bf16.mxu0 0
        %3679 = vmatpush1.bf16.msra.mxu0 %v3660
        %3680 = vmatprep.subr.bf16.mxu0 0
        %3681 = vmatpush1.bf16.msra.mxu0 %v3661
        %3682 = vmatprep.subr.bf16.mxu0 0
        %3683 = vmatpush1.bf16.msra.mxu0 %v3662
        %3684 = vmatprep.subr.bf16.mxu0 0
        %3685 = vmatpush1.bf16.msra.mxu0 %v3663
        %3686 = vmatprep.subr.bf16.mxu0 0
        %3687 = vmatpush1.bf16.msra.mxu0 %v3664
        %3688 = vmatprep.subr.bf16.mxu0 0
        %3689 = vmatpush1.bf16.msra.mxu0 %v3665
        %3690 = vmatprep.subr.bf16.mxu0 0
        %3691 = vmatpush1.bf16.msra.mxu0 0
        %3692 = vmatprep.subr.bf16.mxu0 0
        %3693 = vmatpush1.bf16.msra.mxu0 0
        %3694 = vmatprep.subr.bf16.mxu0 0
        %3695 = vmatpush1.bf16.msra.mxu0 0
        %3696 = vmatprep.subr.bf16.mxu0 0
        %3697 = vmatpush1.bf16.msra.mxu0 0
        %3698 = vmatprep.subr.bf16.mxu0 0
        %3699 = vmatpush1.bf16.msra.mxu0 0
        %3700 = vmatprep.subr.bf16.mxu0 0
        %3701 = vmatpush1.bf16.msra.mxu0 0
        %3702 = vmatprep.subr.bf16.mxu0 0
        %3703 = vmatpush1.bf16.msra.mxu0 0
        %3704 = vmatprep.subr.bf16.mxu0 0
        %3705 = vmatpush1.bf16.msra.mxu0 0
        %3706 = vmatprep.mubr.bf16.mxu0 0
        %3707 = vmatmul.mubr.bf16.gmra.mrb[0].mxu0 %v3625
        %v3708 = vpop.f32.mrb[0].mxu0
        %v3709 = vadd.f32 0.0, %v3708
        %v3710 = vpop.f32.mrb[0].mxu0
        %v3711 = vpop.f32.mrb[0].mxu0
        %v3712 = vadd.f32 0.0, %v3711
        %v3713 = vpop.f32.mrb[0].mxu0
        %3714 = vdwg.mxu0
        %v3715 = vadd.f32 %v3508, %v3709
        %v3716 = vadd.f32 %v3509, %v3712
        %v3717 = vadd.f32 %v2373, %v3715
        %v3718 = vadd.f32 %v2374, %v3716
        %s3719 = scalar_lea.vmem %s9, 1
        %v3720 = vld [vmem:[%s3719] sm:$0x1]
        %v3722 = vlaneseq
        %v3723 = vshrl.u32 %v3722, 7
        %v3724 = vsub.s32 0, %v3723
        %v3725 = vrot.slane %v3720, %v3724
        %v3727 = vadd.f32 %v3717, %v3725
        %v3728 = vadd.f32 %v3718, %v3725
        %s3729 = scalar_lea.vmem %s10, 1
        %v3730 = vld [vmem:[%s3729] sm:$0x1]
        %s3731 = scalar_lea.vmem %s11, 1
        %v3732 = vld [vmem:[%s3731] sm:$0x1]
        %v3733 = vsel %vm725, %v3727, 0.0
        %3734 = vadd.xlane.f32.xlu0 %v3733
        %v3735 = vpop.xlane.xlu0 %3734
        %v3736 = vsel %vm725, %v3728, 0.0
        %3737 = vadd.xlane.f32.xlu0 %v3736
        %v3738 = vpop.xlane.xlu0 %3737
        %v3739 = vmul.f32 %v3735, %v785
        %v3740 = vmul.f32 %v3738, %v785
        %v3741 = vsub.f32 %v3727, %v3739
        %v3742 = vsub.f32 %v3728, %v3740
        %v3743 = vmul.f32 %v3741, %v3741
        %v3744 = vmul.f32 %v3742, %v3742
        %v3745 = vsel %vm725, %v3743, 0.0
        %3746 = vadd.xlane.f32.xlu0 %v3745
        %v3747 = vpop.xlane.xlu0 %3746
        %v3748 = vsel %vm725, %v3744, 0.0
        %3749 = vadd.xlane.f32.xlu0 %v3748
        %v3750 = vpop.xlane.xlu0 %3749
        %v3751 = vmul.f32 %v3747, %v785
        %v3752 = vmul.f32 %v3750, %v785
        %v3753 = vadd.f32 %v3751, 1e-05
        %v3754 = vadd.f32 %v3752, 1e-05
        %v3755 = vrsqrt.pop %v3753
        %v3756 = vrsqrt.pop %v3754
        %v3757 = vmul.f32 %v3741, %v3755
        %v3758 = vmul.f32 %v3742, %v3756
        %v3760 = vlaneseq
        %v3761 = vshrl.u32 %v3760, 7
        %v3762 = vsub.s32 0, %v3761
        %v3763 = vrot.slane %v3730, %v3762
        %v3765 = vmul.f32 %v3757, %v3763
        %v3766 = vmul.f32 %v3758, %v3763
        %v3768 = vlaneseq
        %v3769 = vshrl.u32 %v3768, 7
        %v3770 = vsub.s32 0, %v3769
        %v3771 = vrot.slane %v3732, %v3770
        %v3773 = vadd.f32 %v3765, %v3771
        %v3774 = vadd.f32 %v3766, %v3771
        %v3775 = vpack.c.bf16 %v3774, %v3773
        %s3776 = scalar_lea.vmem %s12, 16
        %v3777 = vld [vmem:[%s3776] sm:$0xf]
        %v3778 = vld [vmem:[%s3776 + $0x4] sm:$0xf]
        %v3779 = vld [vmem:[%s3776 + $0x8] sm:$0xf]
        %v3780 = vld [vmem:[%s3776 + $0xc] sm:$0xf]
        %s3781 = scalar_lea.vmem %s13, 1
        %v3782 = vld [vmem:[%s3781] sm:$0x1]
        %v3784 = vlaneseq
        %v3785 = vshrl.u32 %v3784, 7
        %v3786 = vsub.s32 0, %v3785
        %v3787 = vrot.slane %v3782, %v3786
        %v3793 = vunpack.c.l.b16 %v3777
        %v3794 = vunpack.c.l.b16 %v3778
        %v3795 = vunpack.c.l.b16 %v3779
        %v3796 = vunpack.c.l.b16 %v3780
        %v3797 = vpack.c.b16 %v3794, %v3793
        %v3798 = vpack.c.b16 %v3796, %v3795
        %v3802 = vsel %vm725, %v3775, 0
        %3804 = vmatprep.subr.bf16.mxu0 0
        %3805 = vmatpush1.bf16.msra.mxu0 %v3797
        %3806 = vmatprep.subr.bf16.mxu0 0
        %3807 = vmatpush1.bf16.msra.mxu0 %v3798
        %3808 = vmatprep.subr.bf16.mxu0 0
        %3809 = vmatpush1.bf16.msra.mxu0 0
        %3810 = vmatprep.subr.bf16.mxu0 0
        %3811 = vmatpush1.bf16.msra.mxu0 0
        %3812 = vmatprep.subr.bf16.mxu0 0
        %3813 = vmatpush1.bf16.msra.mxu0 0
        %3814 = vmatprep.subr.bf16.mxu0 0
        %3815 = vmatpush1.bf16.msra.mxu0 0
        %3816 = vmatprep.subr.bf16.mxu0 0
        %3817 = vmatpush1.bf16.msra.mxu0 0
        %3818 = vmatprep.subr.bf16.mxu0 0
        %3819 = vmatpush1.bf16.msra.mxu0 0
        %3820 = vmatprep.subr.bf16.mxu0 0
        %3821 = vmatpush1.bf16.msra.mxu0 0
        %3822 = vmatprep.subr.bf16.mxu0 0
        %3823 = vmatpush1.bf16.msra.mxu0 0
        %3824 = vmatprep.subr.bf16.mxu0 0
        %3825 = vmatpush1.bf16.msra.mxu0 0
        %3826 = vmatprep.subr.bf16.mxu0 0
        %3827 = vmatpush1.bf16.msra.mxu0 0
        %3828 = vmatprep.subr.bf16.mxu0 0
        %3829 = vmatpush1.bf16.msra.mxu0 0
        %3830 = vmatprep.subr.bf16.mxu0 0
        %3831 = vmatpush1.bf16.msra.mxu0 0
        %3832 = vmatprep.subr.bf16.mxu0 0
        %3833 = vmatpush1.bf16.msra.mxu0 0
        %3834 = vmatprep.subr.bf16.mxu0 0
        %3835 = vmatpush1.bf16.msra.mxu0 0
        %3836 = vmatprep.mubr.bf16.mxu0 0
        %3837 = vmatmul.mubr.bf16.gmra.mrb[0].mxu0 %v3802
        %v3838 = vpop.f32.mrb[0].mxu0
        %v3839 = vadd.f32 %v3787, %v3838
        %v3840 = vpop.f32.mrb[0].mxu0
        %v3841 = vpop.f32.mrb[0].mxu0
        %v3842 = vadd.f32 %v3787, %v3841
        %v3843 = vpop.f32.mrb[0].mxu0
        %3844 = vdwg.mxu0
        %v3845 = vmul.f32 %v3839, %v3839
        %v3846 = vmul.f32 %v3842, %v3842
        %v3847 = vmul.f32 %v3839, %v3845
        %v3848 = vmul.f32 %v3842, %v3846
        %v3849 = vmul.f32 %v3847, 0.044715
        %v3850 = vmul.f32 %v3848, 0.044715
        %v3851 = vadd.f32 %v3839, %v3849
        %v3852 = vadd.f32 %v3842, %v3850
        %v3853 = vmul.f32 %v3851, 0.7978846
        %v3854 = vmul.f32 %v3852, 0.7978846
        %v3855 = vtanh.pop %v3853
        %v3856 = vtanh.pop %v3854
        %v3857 = vadd.f32 %v3855, 1.0
        %v3858 = vadd.f32 %v3856, 1.0
        %v3859 = vmul.f32 %v3857, 0.5
        %v3860 = vmul.f32 %v3858, 0.5
        %v3861 = vmul.f32 %v3839, %v3859
        %v3862 = vmul.f32 %v3842, %v3860
        %v3863 = vpack.c.bf16 %v3862, %v3861
        %s3864 = scalar_lea.vmem %s14, 64
        %v3865 = vld [vmem:[%s3864] sm:$0xf]
        %v3866 = vld [vmem:[%s3864 + $0x4] sm:$0xf]
        %v3867 = vld [vmem:[%s3864 + $0x8] sm:$0xf]
        %v3868 = vld [vmem:[%s3864 + $0xc] sm:$0xf]
        %v3869 = vld [vmem:[%s3864 + $0x10] sm:$0xf]
        %v3870 = vld [vmem:[%s3864 + $0x14] sm:$0xf]
        %v3871 = vld [vmem:[%s3864 + $0x18] sm:$0xf]
        %v3872 = vld [vmem:[%s3864 + $0x1c] sm:$0xf]
        %v3873 = vld [vmem:[%s3864 + $0x20] sm:$0xf]
        %v3874 = vld [vmem:[%s3864 + $0x24] sm:$0xf]
        %v3875 = vld [vmem:[%s3864 + $0x28] sm:$0xf]
        %v3876 = vld [vmem:[%s3864 + $0x2c] sm:$0xf]
        %v3877 = vld [vmem:[%s3864 + $0x30] sm:$0xf]
        %v3878 = vld [vmem:[%s3864 + $0x34] sm:$0xf]
        %v3879 = vld [vmem:[%s3864 + $0x38] sm:$0xf]
        %v3880 = vld [vmem:[%s3864 + $0x3c] sm:$0xf]
        %v3897 = vunpack.c.l.b16 %v3865
        %v3898 = vunpack.c.l.b16 %v3866
        %v3899 = vunpack.c.l.b16 %v3867
        %v3900 = vunpack.c.l.b16 %v3868
        %v3901 = vunpack.c.l.b16 %v3869
        %v3902 = vunpack.c.l.b16 %v3870
        %v3903 = vunpack.c.l.b16 %v3871
        %v3904 = vunpack.c.l.b16 %v3872
        %v3905 = vunpack.c.l.b16 %v3873
        %v3906 = vunpack.c.l.b16 %v3874
        %v3907 = vunpack.c.l.b16 %v3875
        %v3908 = vunpack.c.l.b16 %v3876
        %v3909 = vunpack.c.l.b16 %v3877
        %v3910 = vunpack.c.l.b16 %v3878
        %v3911 = vunpack.c.l.b16 %v3879
        %v3912 = vunpack.c.l.b16 %v3880
        %v3913 = vpack.c.b16 %v3898, %v3897
        %v3914 = vpack.c.b16 %v3900, %v3899
        %v3915 = vpack.c.b16 %v3902, %v3901
        %v3916 = vpack.c.b16 %v3904, %v3903
        %v3917 = vpack.c.b16 %v3906, %v3905
        %v3918 = vpack.c.b16 %v3908, %v3907
        %v3919 = vpack.c.b16 %v3910, %v3909
        %v3920 = vpack.c.b16 %v3912, %v3911
        %3929 = vmatprep.subr.bf16.mxu0 0
        %3930 = vmatpush1.bf16.msra.mxu0 %v3913
        %3931 = vmatprep.subr.bf16.mxu0 0
        %3932 = vmatpush1.bf16.msra.mxu0 %v3914
        %3933 = vmatprep.subr.bf16.mxu0 0
        %3934 = vmatpush1.bf16.msra.mxu0 %v3915
        %3935 = vmatprep.subr.bf16.mxu0 0
        %3936 = vmatpush1.bf16.msra.mxu0 %v3916
        %3937 = vmatprep.subr.bf16.mxu0 0
        %3938 = vmatpush1.bf16.msra.mxu0 %v3917
        %3939 = vmatprep.subr.bf16.mxu0 0
        %3940 = vmatpush1.bf16.msra.mxu0 %v3918
        %3941 = vmatprep.subr.bf16.mxu0 0
        %3942 = vmatpush1.bf16.msra.mxu0 %v3919
        %3943 = vmatprep.subr.bf16.mxu0 0
        %3944 = vmatpush1.bf16.msra.mxu0 %v3920
        %3945 = vmatprep.subr.bf16.mxu0 0
        %3946 = vmatpush1.bf16.msra.mxu0 0
        %3947 = vmatprep.subr.bf16.mxu0 0
        %3948 = vmatpush1.bf16.msra.mxu0 0
        %3949 = vmatprep.subr.bf16.mxu0 0
        %3950 = vmatpush1.bf16.msra.mxu0 0
        %3951 = vmatprep.subr.bf16.mxu0 0
        %3952 = vmatpush1.bf16.msra.mxu0 0
        %3953 = vmatprep.subr.bf16.mxu0 0
        %3954 = vmatpush1.bf16.msra.mxu0 0
        %3955 = vmatprep.subr.bf16.mxu0 0
        %3956 = vmatpush1.bf16.msra.mxu0 0
        %3957 = vmatprep.subr.bf16.mxu0 0
        %3958 = vmatpush1.bf16.msra.mxu0 0
        %3959 = vmatprep.subr.bf16.mxu0 0
        %3960 = vmatpush1.bf16.msra.mxu0 0
        %3961 = vmatprep.mubr.bf16.mxu0 0
        %3962 = vmatmul.mubr.bf16.gmra.mrb[0].mxu0 %v3863
        %v3963 = vpop.f32.mrb[0].mxu0
        %v3964 = vadd.f32 0.0, %v3963
        %v3965 = vpop.f32.mrb[0].mxu0
        %v3966 = vpop.f32.mrb[0].mxu0
        %v3967 = vadd.f32 0.0, %v3966
        %v3968 = vpop.f32.mrb[0].mxu0
        %3969 = vdwg.mxu0
        %v3970 = vadd.f32 %v3727, %v3964
        %v3971 = vadd.f32 %v3728, %v3967
        %s3972 = scalar_lea.vmem %s15, 1
        %v3973 = vld [vmem:[%s3972] sm:$0x1]
        %v3975 = vlaneseq
        %v3976 = vshrl.u32 %v3975, 7
        %v3977 = vsub.s32 0, %v3976
        %v3978 = vrot.slane %v3973, %v3977
        %v3980 = vadd.f32 %v3970, %v3978
        %v3981 = vadd.f32 %v3971, %v3978
        %v3982 = vld [vmem:[%s16] sm:$0x1]
        %v3983 = vld [vmem:[%s17] sm:$0x1]
        %v3984 = vsel %vm725, %v3980, 0.0
        %3985 = vadd.xlane.f32.xlu0 %v3984
        %v3986 = vpop.xlane.xlu0 %3985
        %v3987 = vsel %vm725, %v3981, 0.0
        %3988 = vadd.xlane.f32.xlu0 %v3987
        %v3989 = vpop.xlane.xlu0 %3988
        %v3990 = vmul.f32 %v3986, %v785
        %v3991 = vmul.f32 %v3989, %v785
        %v3992 = vsub.f32 %v3980, %v3990
        %v3993 = vsub.f32 %v3981, %v3991
        %v3994 = vmul.f32 %v3992, %v3992
        %v3995 = vmul.f32 %v3993, %v3993
        %v3996 = vsel %vm725, %v3994, 0.0
        %3997 = vadd.xlane.f32.xlu0 %v3996
        %v3998 = vpop.xlane.xlu0 %3997
        %v3999 = vsel %vm725, %v3995, 0.0
        %4000 = vadd.xlane.f32.xlu0 %v3999
        %v4001 = vpop.xlane.xlu0 %4000
        %v4002 = vmul.f32 %v3998, %v785
        %v4003 = vmul.f32 %v4001, %v785
        %v4004 = vadd.f32 %v4002, 1e-05
        %v4005 = vadd.f32 %v4003, 1e-05
        %v4006 = vrsqrt.pop %v4004
        %v4007 = vrsqrt.pop %v4005
        %v4008 = vmul.f32 %v3992, %v4006
        %v4009 = vmul.f32 %v3993, %v4007
        %v4011 = vlaneseq
        %v4012 = vshrl.u32 %v4011, 7
        %v4013 = vsub.s32 0, %v4012
        %v4014 = vrot.slane %v3982, %v4013
        %v4016 = vmul.f32 %v4008, %v4014
        %v4017 = vmul.f32 %v4009, %v4014
        %v4019 = vlaneseq
        %v4020 = vshrl.u32 %v4019, 7
        %v4021 = vsub.s32 0, %v4020
        %v4022 = vrot.slane %v3983, %v4021
        %v4024 = vadd.f32 %v4016, %v4022
        %v4025 = vadd.f32 %v4017, %v4022
        %v4026 = vpack.c.bf16 %v4025, %v4024
        %v4027 = vld [vmem:[%s18] sm:$0xf]
        %v4028 = vld [vmem:[%s18 + $0x4] sm:$0xf]
        %v4029 = vld [vmem:[%s18 + $0x8] sm:$0xf]
        %v4030 = vld [vmem:[%s18 + $0xc] sm:$0xf]
        %v4031 = vld [vmem:[%s19] sm:$0x1]
        %v4033 = vlaneseq
        %v4034 = vshrl.u32 %v4033, 7
        %v4035 = vsub.s32 0, %v4034
        %v4036 = vrot.slane %v4031, %v4035
        %v4042 = vunpack.c.l.b16 %v4027
        %v4043 = vunpack.c.l.b16 %v4028
        %v4044 = vunpack.c.l.b16 %v4029
        %v4045 = vunpack.c.l.b16 %v4030
        %v4046 = vpack.c.b16 %v4043, %v4042
        %v4047 = vpack.c.b16 %v4045, %v4044
        %v4051 = vsel %vm725, %v4026, 0
        %4053 = vmatprep.subr.bf16.mxu0 0
        %4054 = vmatpush1.bf16.msra.mxu0 %v4046
        %4055 = vmatprep.subr.bf16.mxu0 0
        %4056 = vmatpush1.bf16.msra.mxu0 %v4047
        %4057 = vmatprep.subr.bf16.mxu0 0
        %4058 = vmatpush1.bf16.msra.mxu0 0
        %4059 = vmatprep.subr.bf16.mxu0 0
        %4060 = vmatpush1.bf16.msra.mxu0 0
        %4061 = vmatprep.subr.bf16.mxu0 0
        %4062 = vmatpush1.bf16.msra.mxu0 0
        %4063 = vmatprep.subr.bf16.mxu0 0
        %4064 = vmatpush1.bf16.msra.mxu0 0
        %4065 = vmatprep.subr.bf16.mxu0 0
        %4066 = vmatpush1.bf16.msra.mxu0 0
        %4067 = vmatprep.subr.bf16.mxu0 0
        %4068 = vmatpush1.bf16.msra.mxu0 0
        %4069 = vmatprep.subr.bf16.mxu0 0
        %4070 = vmatpush1.bf16.msra.mxu0 0
        %4071 = vmatprep.subr.bf16.mxu0 0
        %4072 = vmatpush1.bf16.msra.mxu0 0
        %4073 = vmatprep.subr.bf16.mxu0 0
        %4074 = vmatpush1.bf16.msra.mxu0 0
        %4075 = vmatprep.subr.bf16.mxu0 0
        %4076 = vmatpush1.bf16.msra.mxu0 0
        %4077 = vmatprep.subr.bf16.mxu0 0
        %4078 = vmatpush1.bf16.msra.mxu0 0
        %4079 = vmatprep.subr.bf16.mxu0 0
        %4080 = vmatpush1.bf16.msra.mxu0 0
        %4081 = vmatprep.subr.bf16.mxu0 0
        %4082 = vmatpush1.bf16.msra.mxu0 0
        %4083 = vmatprep.subr.bf16.mxu0 0
        %4084 = vmatpush1.bf16.msra.mxu0 0
        %4085 = vmatprep.mubr.bf16.mxu0 0
        %4086 = vmatmul.mubr.bf16.gmra.mrb[0].mxu0 %v4051
        %v4087 = vpop.f32.mrb[0].mxu0
        %v4088 = vadd.f32 %v4036, %v4087
        %v4089 = vpop.f32.mrb[0].mxu0
        %v4090 = vpop.f32.mrb[0].mxu0
        %v4091 = vadd.f32 %v4036, %v4090
        %v4092 = vpop.f32.mrb[0].mxu0
        %4093 = vdwg.mxu0
        %4094 = vst [vmem:[%s623] sm:$0xff] %v4088
        %4095 = vst [vmem:[%s623 + $0x8] sm:$0xff] %v4091
        %p4096 = scmp.lt.s32.totalorder %s32, 1
        %s4097 = scalar_select %p4096, %s32, 1
        %s4098 = smul.addr %s4097, 2
        %s4099 = smul.addr %s4098, 8
        %s4100 = scalar_lea.vmem %s20, %s4099
        // Predicated region
        $region105: #{xtransformer_forward.1} parent=99 // pred_check
          %p4101 = pneg %p470
        $region106: #{xtransformer_forward.1} parent=99 // pred_check_branch
          %4103 = sbr.rel (%p4101) target = $region108
        $region107: #{xtransformer_forward.1} parent=99 // pred_region
          _
        $region108: #{xtransformer_forward.1} parent=99 // pred_fallthru
          _
      $region100: #{xtransformer_forward.1} parent=5 // pred_fallthru
        _
      %p4104 = scmp.le.s32.totalorder 2, %s27
      // Predicated region
      $region109: #{xtransformer_forward.1} parent=5 // pred_check
        %p4105 = pneg %p4104
      $region110: #{xtransformer_forward.1} parent=5 // pred_check_branch
        %4107 = sbr.rel (%p4105) target = $region112
      $region111: #{xtransformer_forward.1} parent=5 // pred_region
        %s4108 = ssub.s32 %s27, 2
        // Predicated region
        $region113: #{xtransformer_forward.1} parent=111 // pred_check
          %p4109 = pneg %p476
        $region114: #{xtransformer_forward.1} parent=111 // pred_check_branch
          %4111 = sbr.rel (%p4109) target = $region116
        $region115: #{xtransformer_forward.1} parent=111 // pred_region
          %p4112 = scmp.lt.s32.totalorder %s33, 1
          %s4113 = scalar_select %p4112, %s33, 1
          %s4114 = smul.addr %s4113, 2
          %s4115 = smul.addr %s4114, 8
          %s4116 = scalar_lea.vmem %s20, %s4115
        $region116: #{xtransformer_forward.1} parent=111 // pred_fallthru
          _
      $region112: #{xtransformer_forward.1} parent=5 // pred_fallthru
        _
    $region6: #{xtransformer_forward.1} parent=1 // loop_footer
      %s31 = sadd.s32 1, %s27
    $region7: #{xtransformer_forward.1} parent=1 // loop_footer_branch
      %26 = sbr.rel target = $region3
    $region8: #{xtransformer_forward.1} parent=1 // loop_exit
      _
    %4117 = vsyncpa [#allocation3], 1
    %s4118 = scalar_lea.sflag [#allocation3], 1
    %4119 = vsyncpa %s4118, 1

</llo_original>
